<compile_context>
chip_gen: v5e
topology: v5e:2x2
jax: 0.10.0
libtpu: 0.0.40
codegen_flags: <defaults>
</compile_context>

<pallas_src>
import functools

import jax
import jax.numpy as jnp
import numpy as np
from jax.experimental import pallas as pl
from jax.experimental.pallas import tpu as pltpu

_HIGH = jax.lax.Precision.HIGHEST  # reference only


# ------------------------------- Pallas kernel ------------------------------ #

def _block_kernel(x_ref, w1_ref, b1_ref, w2_ref, b2_ref, w3_ref, b3_ref,
                  *rest, H, W, TH, stride, shortcut):
    """One fused inverted-residual block over a (batch, output-row-tile) grid.

    x_ref holds the whole (halo-padded, NHWC) image of one batch element; the
    row window needed by this tile is sliced with a dynamic pl.ds offset.
    """
    if shortcut == "conv":
        wsc_ref, bsc_ref, o_ref = rest
    else:
        (o_ref,) = rest

    s = stride
    t = pl.program_id(1)
    R = TH * s + 2                # stride-1 rows needed for TH output rows (+halo)
    Wt = W + 1 + s                # padded width held in VMEM
    Cin = x_ref.shape[-1]
    P = w1_ref.shape[-1]

    # ---- input row window for this tile (includes the conv2 halo ring) -----
    xt = x_ref[0, pl.ds(t * (TH * s), R), :, :]            # (R, Wt, Cin)

    # ---- conv1 (1x1 expand, BN1 scale folded into w1) + bias + ReLU --------
    e = jnp.dot(xt.reshape(R * Wt, Cin), w1_ref[...],
                preferred_element_type=jnp.float32)
    e = jnp.maximum(e + b1_ref[...], 0.0).reshape(R, Wt, P)

    # ---- re-zero the conv2 padding ring in the *expanded* domain -----------
    # (zero input padding does not survive conv1's BN bias + ReLU)
    row_g = t * (TH * s) - 1 + jax.lax.broadcasted_iota(jnp.int32, (R, 1, 1), 0)
    col_g = jax.lax.broadcasted_iota(jnp.int32, (1, Wt, 1), 1) - 1
    valid = (row_g >= 0) & (row_g < H) & (col_g >= 0) & (col_g < W)
    e = e * valid.astype(e.dtype)

    # ---- conv2 (3x3 depthwise, BN2 scale folded into w2) + bias + ReLU -----
    # Row striding is applied in-kernel; columns are computed at stride 1 and
    # (for stride > 1) subsampled on the small final output in the wrapper.
    acc = jnp.zeros((TH, W, P), jnp.float32)
    for dy in range(3):
        rows = e[dy:dy + TH * s]                           # (TH*s, Wt, P)
        if s > 1:
            rows = rows.reshape(TH, s, Wt, P)[:, 0]        # keep every s-th row
        for dx in range(3):
            acc = acc + rows[:, dx:dx + W, :] * w2_ref[dy, dx, :]
    d = jnp.maximum(acc + b2_ref[...], 0.0)                # (TH, W, P)

    # ---- conv3 (1x1 project, BN3 scale folded into w3) + bias --------------
    y = jnp.dot(d.reshape(TH * W, P), w3_ref[...],
                preferred_element_type=jnp.float32) + b3_ref[...]

    # ---- shortcut (stride == 1 only) ----------------------------------------
    if shortcut != "none":
        xres = xt[1:TH + 1, 1:W + 1, :].reshape(TH * W, Cin)
        if shortcut == "identity":
            y = y + xres
        else:  # 1x1 conv + BN shortcut, scale folded into wsc
            y = y + jnp.dot(xres, wsc_ref[...],
                            preferred_element_type=jnp.float32) + bsc_ref[...]

    # ---- store channel-major so the minor (store) dim is lane-dense --------
    o_ref[0] = y.T.astype(o_ref.dtype)                     # (Cout, TH*W)


# ------------------------------ kernel wrapper ------------------------------ #

def _pick_row_tile(H_out, W, P, stride, budget_bytes=4 << 20):
    """Largest output-row tile TH with TH | H_out, a lane-dense output block
    (TH*W % 128 == 0, or the full image), and a bounded expanded-tile size
    (conservative so double-buffered blocks also fit v7x's smaller VMEM)."""
    def tile_bytes(th):
        r = th * stride + 2
        return 4 * (r * (W + 1 + stride) * P + th * W * P)

    cands = [th for th in range(1, H_out + 1)
             if H_out % th == 0
             and ((th * W) % 128 == 0 or th == H_out)
             and tile_bytes(th) <= budget_bytes]
    pipelined = [th for th in cands if H_out // th >= 2]
    if pipelined:
        return max(pipelined)
    if cands:
        return max(cands)
    return H_out


def block_forward(x_nchw, params, *, in_planes, out_planes, stride):
    """Pallas implementation of Block.forward. Input/output are NCHW fp32."""
    N, Cin, H, W = x_nchw.shape
    s = stride
    H_out = (H - 1) // s + 1
    P = params["w1"].shape[1]

    # NCHW -> NHWC once (channels on lanes) + the conv2 halo ring on the small
    # Cin-wide input.  Ring values are re-zeroed in the expanded domain inside
    # the kernel, so only their presence (not their value) matters here.
    x = jnp.transpose(x_nchw, (0, 2, 3, 1))
    xp = jnp.pad(x, ((0, 0), (1, s), (1, s), (0, 0)))
    Hp, Wt = H + 1 + s, W + 1 + s

    # Fold inference-mode BN scales into the conv weights (host side).
    w1 = (params["w1"] * params["s1"][None, :]).astype(jnp.float32)
    w2 = (params["w2"] * params["s2"][None, None, :]).astype(jnp.float32)
    w3 = (params["w3"] * params["s3"][None, :]).astype(jnp.float32)
    b1 = params["b1"].reshape(1, P).astype(jnp.float32)
    b2 = params["b2"].reshape(1, P).astype(jnp.float32)
    b3 = params["b3"].reshape(1, out_planes).astype(jnp.float32)

    if s == 1:
        shortcut = "identity" if in_planes == out_planes else "conv"
    else:
        shortcut = "none"

    TH = _pick_row_tile(H_out, W, P, s)
    T = H_out // TH

    args = [xp, w1, b1, w2, b2, w3, b3]
    in_specs = [
        pl.BlockSpec((1, Hp, Wt, Cin), lambda n, t: (n, 0, 0, 0)),
        pl.BlockSpec((Cin, P), lambda n, t: (0, 0)),
        pl.BlockSpec((1, P), lambda n, t: (0, 0)),
        pl.BlockSpec((3, 3, P), lambda n, t: (0, 0, 0)),
        pl.BlockSpec((1, P), lambda n, t: (0, 0)),
        pl.BlockSpec((P, out_planes), lambda n, t: (0, 0)),
        pl.BlockSpec((1, out_planes), lambda n, t: (0, 0)),
    ]
    if shortcut == "conv":
        wsc = (params["wsc"] * params["ssc"][None, :]).astype(jnp.float32)
        bsc = params["bsc"].reshape(1, out_planes).astype(jnp.float32)
        args += [wsc, bsc]
        in_specs += [
            pl.BlockSpec((Cin, out_planes), lambda n, t: (0, 0)),
            pl.BlockSpec((1, out_planes), lambda n, t: (0, 0)),
        ]

    kernel = functools.partial(_block_kernel, H=H, W=W, TH=TH, stride=s,
                               shortcut=shortcut)
    out = pl.pallas_call(
        kernel,
        out_shape=jax.ShapeDtypeStruct((N, out_planes, H_out * W), x.dtype),
        grid=(N, T),
        in_specs=in_specs,
        out_specs=pl.BlockSpec((1, out_planes, TH * W), lambda n, t: (n, 0, t)),
        compiler_params=pltpu.CompilerParams(
            dimension_semantics=("parallel", "parallel")),
    )(*args)

    out = out.reshape(N, out_planes, H_out, W)     # already NCHW (rows strided)
    if s != 1:
        out = out[:, :, :, ::s]                    # column stride on small output
    return out


# ------------------------- params / reference / main ------------------------ #

def _fold_bn(key, c, eps=1e-5):
    k1, k2, k3, k4 = jax.random.split(key, 4)
    gamma = jax.random.uniform(k1, (c,), jnp.float32, 0.5, 1.5)
    beta = 0.1 * jax.random.normal(k2, (c,), jnp.float32)
    mean = 0.1 * jax.random.normal(k3, (c,), jnp.float32)
    var = jax.random.uniform(k4, (c,), jnp.float32, 0.5, 1.5)
    scale = gamma / jnp.sqrt(var + eps)
    bias = beta - mean * scale
    return scale, bias


def make_block_params(key, in_planes, out_planes, expansion, stride):
    planes = expansion * in_planes
    ks = jax.random.split(key, 8)
    p = {}
    p["w1"] = 0.1 * jax.random.normal(ks[0], (in_planes, planes), jnp.float32)
    p["s1"], p["b1"] = _fold_bn(ks[1], planes)
    p["w2"] = 0.1 * jax.random.normal(ks[2], (3, 3, planes), jnp.float32)
    p["s2"], p["b2"] = _fold_bn(ks[3], planes)
    p["w3"] = 0.1 * jax.random.normal(ks[4], (planes, out_planes), jnp.float32)
    p["s3"], p["b3"] = _fold_bn(ks[5], out_planes)
    if stride == 1 and in_planes != out_planes:
        p["wsc"] = 0.1 * jax.random.normal(ks[6], (in_planes, out_planes),
                                           jnp.float32)
        p["ssc"], p["bsc"] = _fold_bn(ks[7], out_planes)
    return p


def block_reference(x_nchw, params, *, in_planes, out_planes, stride):
    """Pure-JAX reference (same folded-BN semantics, HIGHEST precision)."""
    x = jnp.transpose(x_nchw, (0, 2, 3, 1))

    def pw(v, w, s, b, relu):
        y = jnp.einsum("nhwc,cd->nhwd", v, w, precision=_HIGH) * s + b
        return jnp.maximum(y, 0.0) if relu else y

    out = pw(x, params["w1"], params["s1"], params["b1"], True)
    N, H, W, P = out.shape
    Ho = (H - 1) // stride + 1
    Wo = (W - 1) // stride + 1
    xp = jnp.pad(out, ((0, 0), (1, 1), (1, 1), (0, 0)))
    acc = jnp.zeros((N, Ho, Wo, P), jnp.float32)
    for ky in range(3):
        for kx in range(3):
            patch = xp[:, ky:ky + (Ho - 1) * stride + 1:stride,
                       kx:kx + (Wo - 1) * stride + 1:stride, :]
            acc = acc + patch * params["w2"][ky, kx, :]
    out = jnp.maximum(acc * params["s2"] + params["b2"], 0.0)
    y = pw(out, params["w3"], params["s3"], params["b3"], False)
    if stride == 1:
        if in_planes == out_planes:
            sc = x
        else:
            sc = pw(x, params["wsc"], params["ssc"], params["bsc"], False)
        y = y + sc
    return jnp.transpose(y, (0, 3, 1, 2))


if __name__ == "__main__":
    key = jax.random.PRNGKey(0)
    kx, kp1, kp2, kx3, kp3 = jax.random.split(key, 5)

    N, Cin, H, W = 2, 8, 16, 16
    expansion = 4
    x = jax.random.normal(kx, (N, Cin, H, W), jnp.float32)

    # Default-precision matmuls (bf16 MXU passes) vs a HIGHEST-precision
    # reference => tolerance is relaxed from the previous 1e-4.
    RTOL = ATOL = 2e-2

    # Config 1: stride=1, in != out -> shortcut 1x1 conv + fused residual add.
    out_planes1 = 16
    p1 = make_block_params(kp1, Cin, out_planes1, expansion, stride=1)
    y1 = jax.block_until_ready(
        block_forward(x, p1, in_planes=Cin, out_planes=out_planes1, stride=1))
    r1 = block_reference(x, p1, in_planes=Cin, out_planes=out_planes1, stride=1)
    np.testing.assert_allclose(np.asarray(y1), np.asarray(r1),
                               rtol=RTOL, atol=ATOL)
    assert y1.shape == (N, out_planes1, H, W)

    # Config 2: stride=2 -> no residual branch, in-kernel row striding.
    out_planes2 = 16
    p2 = make_block_params(kp2, Cin, out_planes2, expansion, stride=2)
    y2 = jax.block_until_ready(
        block_forward(x, p2, in_planes=Cin, out_planes=out_planes2, stride=2))
    r2 = block_reference(x, p2, in_planes=Cin, out_planes=out_planes2, stride=2)
    np.testing.assert_allclose(np.asarray(y2), np.asarray(r2),
                               rtol=RTOL, atol=ATOL)
    assert y2.shape == (N, out_planes2, H // 2, W // 2)

    # Config 3: stride=1, in == out -> identity shortcut path.
    Cin3, H3, W3, out_planes3 = 16, 8, 8, 16
    x3 = jax.random.normal(kx3, (N, Cin3, H3, W3), jnp.float32)
    p3 = make_block_params(kp3, Cin3, out_planes3, expansion, stride=1)
    y3 = jax.block_until_ready(
        block_forward(x3, p3, in_planes=Cin3, out_planes=out_planes3, stride=1))
    r3 = block_reference(x3, p3, in_planes=Cin3, out_planes=out_planes3,
                         stride=1)
    np.testing.assert_allclose(np.asarray(y3), np.asarray(r3),
                               rtol=RTOL, atol=ATOL)
    assert y3.shape == (N, out_planes3, H3, W3)

    print("KERNEL_OK")
</pallas_src>

<mosaic_0001>
module attributes {stable_mosaic.version = 11 : i64} {
  func.func @_block_kernel(%arg0: i32, %arg1: i32, %arg2: memref<1x18x18x8xf32, #tpu.memory_space<vmem>>, %arg3: memref<8x32xf32, #tpu.memory_space<vmem>>, %arg4: memref<1x32xf32, #tpu.memory_space<vmem>>, %arg5: memref<3x3x32xf32, #tpu.memory_space<vmem>>, %arg6: memref<1x32xf32, #tpu.memory_space<vmem>>, %arg7: memref<32x16xf32, #tpu.memory_space<vmem>>, %arg8: memref<1x16xf32, #tpu.memory_space<vmem>>, %arg9: memref<8x16xf32, #tpu.memory_space<vmem>>, %arg10: memref<1x16xf32, #tpu.memory_space<vmem>>, %arg11: memref<1x16x128xf32, #tpu.memory_space<vmem>>) attributes {dimension_semantics = [#tpu.dimension_semantics<parallel>, #tpu.dimension_semantics<parallel>], iteration_bounds = array<i64: 2, 2>, scalar_prefetch = 0 : i64, scratch_operands = 0 : i64, tpu.core_type = #tpu.core_type<tc>, window_params = [{transform_indices = @transform_0, window_bounds = array<i64: 1, 18, 18, 8>}, {pipeline_mode = #tpu.pipeline_mode<synchronous>, transform_indices = @transform_1, window_bounds = array<i64: 8, 32>}, {pipeline_mode = #tpu.pipeline_mode<synchronous>, transform_indices = @transform_2, window_bounds = array<i64: 1, 32>}, {pipeline_mode = #tpu.pipeline_mode<synchronous>, transform_indices = @transform_3, window_bounds = array<i64: 3, 3, 32>}, {pipeline_mode = #tpu.pipeline_mode<synchronous>, transform_indices = @transform_4, window_bounds = array<i64: 1, 32>}, {pipeline_mode = #tpu.pipeline_mode<synchronous>, transform_indices = @transform_5, window_bounds = array<i64: 32, 16>}, {pipeline_mode = #tpu.pipeline_mode<synchronous>, transform_indices = @transform_6, window_bounds = array<i64: 1, 16>}, {pipeline_mode = #tpu.pipeline_mode<synchronous>, transform_indices = @transform_7, window_bounds = array<i64: 8, 16>}, {pipeline_mode = #tpu.pipeline_mode<synchronous>, transform_indices = @transform_8, window_bounds = array<i64: 1, 16>}, {transform_indices = @transform_9, window_bounds = array<i64: 1, 16, 128>}]} {
    %c8_i32 = arith.constant 8 : i32
    %0 = arith.muli %arg1, %c8_i32 : i32
    %c0 = arith.constant 0 : index
    %1 = arith.index_cast %0 : i32 to index
    %c0_0 = arith.constant 0 : index
    %c0_1 = arith.constant 0 : index
    %2 = vector.load %arg2[%c0, %1, %c0_0, %c0_1] : memref<1x18x18x8xf32, #tpu.memory_space<vmem>>, vector<1x10x18x8xf32>
    %3 = vector.shape_cast %2 : vector<1x10x18x8xf32> to vector<10x18x8xf32>
    %4 = vector.shape_cast %3 : vector<10x18x8xf32> to vector<180x8xf32>
    %c0_2 = arith.constant 0 : index
    %c0_3 = arith.constant 0 : index
    %5 = vector.load %arg3[%c0_2, %c0_3] : memref<8x32xf32, #tpu.memory_space<vmem>>, vector<8x32xf32>
    %cst = arith.constant dense<0.000000e+00> : vector<180x32xf32>
    %6 = tpu.matmul %4, %5, %cst {dimension_numbers = #tpu.dot_dimension_numbers<[1], [0], [0], [1], [0, 0, 1, 1], [], []>} : vector<180x8xf32>, vector<8x32xf32>, vector<180x32xf32> -> vector<180x32xf32>
    %c0_4 = arith.constant 0 : index
    %c0_5 = arith.constant 0 : index
    %7 = vector.load %arg4[%c0_4, %c0_5] : memref<1x32xf32, #tpu.memory_space<vmem>>, vector<1x32xf32>
    %8 = vector.broadcast %7 : vector<1x32xf32> to vector<180x32xf32>
    %9 = arith.addf %6, %8 : vector<180x32xf32>
    %cst_6 = arith.constant 0.000000e+00 : f32
    %10 = vector.broadcast %cst_6 : f32 to vector<180x32xf32>
    %11 = arith.maximumf %9, %10 : vector<180x32xf32>
    %12 = vector.shape_cast %11 : vector<180x32xf32> to vector<10x18x32xf32>
    %c8_i32_7 = arith.constant 8 : i32
    %13 = arith.muli %arg1, %c8_i32_7 : i32
    %c1_i32 = arith.constant 1 : i32
    %14 = arith.subi %13, %c1_i32 : i32
    %15 = tpu.iota {dimensions = array<i32: 0>} : vector<10x1x1xi32>
    %16 = vector.broadcast %14 : i32 to vector<10x1x1xi32>
    %17 = arith.addi %16, %15 : vector<10x1x1xi32>
    %18 = tpu.iota {dimensions = array<i32: 1>} : vector<1x18x1xi32>
    %c1_i32_8 = arith.constant 1 : i32
    %19 = vector.broadcast %c1_i32_8 : i32 to vector<1x18x1xi32>
    %20 = arith.subi %18, %19 : vector<1x18x1xi32>
    %c0_i32 = arith.constant 0 : i32
    %21 = vector.broadcast %c0_i32 : i32 to vector<10x1x1xi32>
    %22 = arith.cmpi sge, %17, %21 : vector<10x1x1xi32>
    %c16_i32 = arith.constant 16 : i32
    %23 = vector.broadcast %c16_i32 : i32 to vector<10x1x1xi32>
    %24 = arith.cmpi slt, %17, %23 : vector<10x1x1xi32>
    %25 = arith.andi %22, %24 : vector<10x1x1xi1>
    %c0_i32_9 = arith.constant 0 : i32
    %26 = vector.broadcast %c0_i32_9 : i32 to vector<1x18x1xi32>
    %27 = arith.cmpi sge, %20, %26 : vector<1x18x1xi32>
    %28 = vector.broadcast %25 : vector<10x1x1xi1> to vector<10x18x1xi1>
    %29 = vector.broadcast %27 : vector<1x18x1xi1> to vector<10x18x1xi1>
    %30 = arith.andi %28, %29 : vector<10x18x1xi1>
    %c16_i32_10 = arith.constant 16 : i32
    %31 = vector.broadcast %c16_i32_10 : i32 to vector<1x18x1xi32>
    %32 = arith.cmpi slt, %20, %31 : vector<1x18x1xi32>
    %33 = vector.broadcast %32 : vector<1x18x1xi1> to vector<10x18x1xi1>
    %34 = arith.andi %30, %33 : vector<10x18x1xi1>
    %35 = arith.extui %34 : vector<10x18x1xi1> to vector<10x18x1xi32>
    %36 = arith.sitofp %35 : vector<10x18x1xi32> to vector<10x18x1xf32>
    %37 = vector.broadcast %36 : vector<10x18x1xf32> to vector<10x18x32xf32>
    %38 = arith.mulf %12, %37 : vector<10x18x32xf32>
    %cst_11 = arith.constant 0.000000e+00 : f32
    %39 = vector.broadcast %cst_11 : f32 to vector<8x16x32xf32>
    %40 = vector.extract_strided_slice %38 {offsets = [0, 0, 0], sizes = [8, 18, 32], strides = [1, 1, 1]} : vector<10x18x32xf32> to vector<8x18x32xf32>
    %41 = vector.extract_strided_slice %40 {offsets = [0, 0, 0], sizes = [8, 16, 32], strides = [1, 1, 1]} : vector<8x18x32xf32> to vector<8x16x32xf32>
    %c0_12 = arith.constant 0 : index
    %c0_13 = arith.constant 0 : index
    %c0_14 = arith.constant 0 : index
    %42 = vector.load %arg5[%c0_12, %c0_13, %c0_14] : memref<3x3x32xf32, #tpu.memory_space<vmem>>, vector<1x1x32xf32>
    %43 = vector.shape_cast %42 : vector<1x1x32xf32> to vector<32xf32>
    %44 = vector.shape_cast %43 : vector<32xf32> to vector<1x1x32xf32>
    %45 = vector.broadcast %44 : vector<1x1x32xf32> to vector<8x16x32xf32>
    %46 = arith.mulf %41, %45 : vector<8x16x32xf32>
    %47 = arith.addf %39, %46 : vector<8x16x32xf32>
    %48 = vector.extract_strided_slice %40 {offsets = [0, 1, 0], sizes = [8, 16, 32], strides = [1, 1, 1]} : vector<8x18x32xf32> to vector<8x16x32xf32>
    %c0_15 = arith.constant 0 : index
    %c1 = arith.constant 1 : index
    %c0_16 = arith.constant 0 : index
    %49 = vector.load %arg5[%c0_15, %c1, %c0_16] : memref<3x3x32xf32, #tpu.memory_space<vmem>>, vector<1x1x32xf32>
    %50 = vector.shape_cast %49 : vector<1x1x32xf32> to vector<32xf32>
    %51 = vector.shape_cast %50 : vector<32xf32> to vector<1x1x32xf32>
    %52 = vector.broadcast %51 : vector<1x1x32xf32> to vector<8x16x32xf32>
    %53 = arith.mulf %48, %52 : vector<8x16x32xf32>
    %54 = arith.addf %47, %53 : vector<8x16x32xf32>
    %55 = vector.extract_strided_slice %40 {offsets = [0, 2, 0], sizes = [8, 16, 32], strides = [1, 1, 1]} : vector<8x18x32xf32> to vector<8x16x32xf32>
    %c0_17 = arith.constant 0 : index
    %c2 = arith.constant 2 : index
    %c0_18 = arith.constant 0 : index
    %56 = vector.load %arg5[%c0_17, %c2, %c0_18] : memref<3x3x32xf32, #tpu.memory_space<vmem>>, vector<1x1x32xf32>
    %57 = vector.shape_cast %56 : vector<1x1x32xf32> to vector<32xf32>
    %58 = vector.shape_cast %57 : vector<32xf32> to vector<1x1x32xf32>
    %59 = vector.broadcast %58 : vector<1x1x32xf32> to vector<8x16x32xf32>
    %60 = arith.mulf %55, %59 : vector<8x16x32xf32>
    %61 = arith.addf %54, %60 : vector<8x16x32xf32>
    %62 = vector.extract_strided_slice %38 {offsets = [1, 0, 0], sizes = [8, 18, 32], strides = [1, 1, 1]} : vector<10x18x32xf32> to vector<8x18x32xf32>
    %63 = vector.extract_strided_slice %62 {offsets = [0, 0, 0], sizes = [8, 16, 32], strides = [1, 1, 1]} : vector<8x18x32xf32> to vector<8x16x32xf32>
    %c1_19 = arith.constant 1 : index
    %c0_20 = arith.constant 0 : index
    %c0_21 = arith.constant 0 : index
    %64 = vector.load %arg5[%c1_19, %c0_20, %c0_21] : memref<3x3x32xf32, #tpu.memory_space<vmem>>, vector<1x1x32xf32>
    %65 = vector.shape_cast %64 : vector<1x1x32xf32> to vector<32xf32>
    %66 = vector.shape_cast %65 : vector<32xf32> to vector<1x1x32xf32>
    %67 = vector.broadcast %66 : vector<1x1x32xf32> to vector<8x16x32xf32>
    %68 = arith.mulf %63, %67 : vector<8x16x32xf32>
    %69 = arith.addf %61, %68 : vector<8x16x32xf32>
    %70 = vector.extract_strided_slice %62 {offsets = [0, 1, 0], sizes = [8, 16, 32], strides = [1, 1, 1]} : vector<8x18x32xf32> to vector<8x16x32xf32>
    %c1_22 = arith.constant 1 : index
    %c1_23 = arith.constant 1 : index
    %c0_24 = arith.constant 0 : index
    %71 = vector.load %arg5[%c1_22, %c1_23, %c0_24] : memref<3x3x32xf32, #tpu.memory_space<vmem>>, vector<1x1x32xf32>
    %72 = vector.shape_cast %71 : vector<1x1x32xf32> to vector<32xf32>
    %73 = vector.shape_cast %72 : vector<32xf32> to vector<1x1x32xf32>
    %74 = vector.broadcast %73 : vector<1x1x32xf32> to vector<8x16x32xf32>
    %75 = arith.mulf %70, %74 : vector<8x16x32xf32>
    %76 = arith.addf %69, %75 : vector<8x16x32xf32>
    %77 = vector.extract_strided_slice %62 {offsets = [0, 2, 0], sizes = [8, 16, 32], strides = [1, 1, 1]} : vector<8x18x32xf32> to vector<8x16x32xf32>
    %c1_25 = arith.constant 1 : index
    %c2_26 = arith.constant 2 : index
    %c0_27 = arith.constant 0 : index
    %78 = vector.load %arg5[%c1_25, %c2_26, %c0_27] : memref<3x3x32xf32, #tpu.memory_space<vmem>>, vector<1x1x32xf32>
    %79 = vector.shape_cast %78 : vector<1x1x32xf32> to vector<32xf32>
    %80 = vector.shape_cast %79 : vector<32xf32> to vector<1x1x32xf32>
    %81 = vector.broadcast %80 : vector<1x1x32xf32> to vector<8x16x32xf32>
    %82 = arith.mulf %77, %81 : vector<8x16x32xf32>
    %83 = arith.addf %76, %82 : vector<8x16x32xf32>
    %84 = vector.extract_strided_slice %38 {offsets = [2, 0, 0], sizes = [8, 18, 32], strides = [1, 1, 1]} : vector<10x18x32xf32> to vector<8x18x32xf32>
    %85 = vector.extract_strided_slice %84 {offsets = [0, 0, 0], sizes = [8, 16, 32], strides = [1, 1, 1]} : vector<8x18x32xf32> to vector<8x16x32xf32>
    %c2_28 = arith.constant 2 : index
    %c0_29 = arith.constant 0 : index
    %c0_30 = arith.constant 0 : index
    %86 = vector.load %arg5[%c2_28, %c0_29, %c0_30] : memref<3x3x32xf32, #tpu.memory_space<vmem>>, vector<1x1x32xf32>
    %87 = vector.shape_cast %86 : vector<1x1x32xf32> to vector<32xf32>
    %88 = vector.shape_cast %87 : vector<32xf32> to vector<1x1x32xf32>
    %89 = vector.broadcast %88 : vector<1x1x32xf32> to vector<8x16x32xf32>
    %90 = arith.mulf %85, %89 : vector<8x16x32xf32>
    %91 = arith.addf %83, %90 : vector<8x16x32xf32>
    %92 = vector.extract_strided_slice %84 {offsets = [0, 1, 0], sizes = [8, 16, 32], strides = [1, 1, 1]} : vector<8x18x32xf32> to vector<8x16x32xf32>
    %c2_31 = arith.constant 2 : index
    %c1_32 = arith.constant 1 : index
    %c0_33 = arith.constant 0 : index
    %93 = vector.load %arg5[%c2_31, %c1_32, %c0_33] : memref<3x3x32xf32, #tpu.memory_space<vmem>>, vector<1x1x32xf32>
    %94 = vector.shape_cast %93 : vector<1x1x32xf32> to vector<32xf32>
    %95 = vector.shape_cast %94 : vector<32xf32> to vector<1x1x32xf32>
    %96 = vector.broadcast %95 : vector<1x1x32xf32> to vector<8x16x32xf32>
    %97 = arith.mulf %92, %96 : vector<8x16x32xf32>
    %98 = arith.addf %91, %97 : vector<8x16x32xf32>
    %99 = vector.extract_strided_slice %84 {offsets = [0, 2, 0], sizes = [8, 16, 32], strides = [1, 1, 1]} : vector<8x18x32xf32> to vector<8x16x32xf32>
    %c2_34 = arith.constant 2 : index
    %c2_35 = arith.constant 2 : index
    %c0_36 = arith.constant 0 : index
    %100 = vector.load %arg5[%c2_34, %c2_35, %c0_36] : memref<3x3x32xf32, #tpu.memory_space<vmem>>, vector<1x1x32xf32>
    %101 = vector.shape_cast %100 : vector<1x1x32xf32> to vector<32xf32>
    %102 = vector.shape_cast %101 : vector<32xf32> to vector<1x1x32xf32>
    %103 = vector.broadcast %102 : vector<1x1x32xf32> to vector<8x16x32xf32>
    %104 = arith.mulf %99, %103 : vector<8x16x32xf32>
    %105 = arith.addf %98, %104 : vector<8x16x32xf32>
    %c0_37 = arith.constant 0 : index
    %c0_38 = arith.constant 0 : index
    %106 = vector.load %arg6[%c0_37, %c0_38] : memref<1x32xf32, #tpu.memory_space<vmem>>, vector<1x32xf32>
    %107 = vector.shape_cast %106 : vector<1x32xf32> to vector<1x1x32xf32>
    %108 = vector.broadcast %107 : vector<1x1x32xf32> to vector<8x16x32xf32>
    %109 = arith.addf %105, %108 : vector<8x16x32xf32>
    %cst_39 = arith.constant 0.000000e+00 : f32
    %110 = vector.broadcast %cst_39 : f32 to vector<8x16x32xf32>
    %111 = arith.maximumf %109, %110 : vector<8x16x32xf32>
    %112 = vector.shape_cast %111 : vector<8x16x32xf32> to vector<128x32xf32>
    %c0_40 = arith.constant 0 : index
    %c0_41 = arith.constant 0 : index
    %113 = vector.load %arg7[%c0_40, %c0_41] : memref<32x16xf32, #tpu.memory_space<vmem>>, vector<32x16xf32>
    %cst_42 = arith.constant dense<0.000000e+00> : vector<128x16xf32>
    %114 = tpu.matmul %112, %113, %cst_42 {dimension_numbers = #tpu.dot_dimension_numbers<[1], [0], [0], [1], [0, 0, 1, 1], [], []>} : vector<128x32xf32>, vector<32x16xf32>, vector<128x16xf32> -> vector<128x16xf32>
    %c0_43 = arith.constant 0 : index
    %c0_44 = arith.constant 0 : index
    %115 = vector.load %arg8[%c0_43, %c0_44] : memref<1x16xf32, #tpu.memory_space<vmem>>, vector<1x16xf32>
    %116 = vector.broadcast %115 : vector<1x16xf32> to vector<128x16xf32>
    %117 = arith.addf %114, %116 : vector<128x16xf32>
    %118 = vector.extract_strided_slice %3 {offsets = [1, 1, 0], sizes = [8, 16, 8], strides = [1, 1, 1]} : vector<10x18x8xf32> to vector<8x16x8xf32>
    %119 = vector.shape_cast %118 : vector<8x16x8xf32> to vector<128x8xf32>
    %c0_45 = arith.constant 0 : index
    %c0_46 = arith.constant 0 : index
    %120 = vector.load %arg9[%c0_45, %c0_46] : memref<8x16xf32, #tpu.memory_space<vmem>>, vector<8x16xf32>
    %cst_47 = arith.constant dense<0.000000e+00> : vector<128x16xf32>
    %121 = tpu.matmul %119, %120, %cst_47 {dimension_numbers = #tpu.dot_dimension_numbers<[1], [0], [0], [1], [0, 0, 1, 1], [], []>} : vector<128x8xf32>, vector<8x16xf32>, vector<128x16xf32> -> vector<128x16xf32>
    %122 = arith.addf %117, %121 : vector<128x16xf32>
    %c0_48 = arith.constant 0 : index
    %c0_49 = arith.constant 0 : index
    %123 = vector.load %arg10[%c0_48, %c0_49] : memref<1x16xf32, #tpu.memory_space<vmem>>, vector<1x16xf32>
    %124 = vector.broadcast %123 : vector<1x16xf32> to vector<128x16xf32>
    %125 = arith.addf %122, %124 : vector<128x16xf32>
    %126 = tpu.transpose %125, [1, 0] : vector<128x16xf32> -> vector<16x128xf32>
    %c0_50 = arith.constant 0 : index
    %c0_51 = arith.constant 0 : index
    %c0_52 = arith.constant 0 : index
    %127 = vector.load %arg11[%c0_50, %c0_51, %c0_52] : memref<1x16x128xf32, #tpu.memory_space<vmem>>, vector<1x16x128xf32>
    %128 = vector.shape_cast %127 : vector<1x16x128xf32> to vector<16x128xf32>
    %129 = vector.shape_cast %126 : vector<16x128xf32> to vector<1x16x128xf32>
    tpu.vector_store %arg11[%c0_50, %c0_51, %c0_52], %129 {strides = array<i32>} : memref<1x16x128xf32, #tpu.memory_space<vmem>>, vector<1x16x128xf32>,
    return
  }
  func.func @transform_0(%arg0: i32, %arg1: i32) -> (i32, i32, i32, i32) {
    %c0_i32 = arith.constant 0 : i32
    %c0_i32_0 = arith.constant 0 : i32
    %c0_i32_1 = arith.constant 0 : i32
    %c0_i32_2 = arith.constant 0 : i32
    return %arg0, %c0_i32, %c0_i32_0, %c0_i32_1 : i32, i32, i32, i32
  }
  func.func @transform_1(%arg0: i32, %arg1: i32) -> (i32, i32) {
    %c0_i32 = arith.constant 0 : i32
    %c0_i32_0 = arith.constant 0 : i32
    %c0_i32_1 = arith.constant 0 : i32
    return %c0_i32, %c0_i32_0 : i32, i32
  }
  func.func @transform_2(%arg0: i32, %arg1: i32) -> (i32, i32) {
    %c0_i32 = arith.constant 0 : i32
    %c0_i32_0 = arith.constant 0 : i32
    %c0_i32_1 = arith.constant 0 : i32
    return %c0_i32, %c0_i32_0 : i32, i32
  }
  func.func @transform_3(%arg0: i32, %arg1: i32) -> (i32, i32, i32) {
    %c0_i32 = arith.constant 0 : i32
    %c0_i32_0 = arith.constant 0 : i32
    %c0_i32_1 = arith.constant 0 : i32
    %c0_i32_2 = arith.constant 0 : i32
    return %c0_i32, %c0_i32_0, %c0_i32_1 : i32, i32, i32
  }
  func.func @transform_4(%arg0: i32, %arg1: i32) -> (i32, i32) {
    %c0_i32 = arith.constant 0 : i32
    %c0_i32_0 = arith.constant 0 : i32
    %c0_i32_1 = arith.constant 0 : i32
    return %c0_i32, %c0_i32_0 : i32, i32
  }
  func.func @transform_5(%arg0: i32, %arg1: i32) -> (i32, i32) {
    %c0_i32 = arith.constant 0 : i32
    %c0_i32_0 = arith.constant 0 : i32
    %c0_i32_1 = arith.constant 0 : i32
    return %c0_i32, %c0_i32_0 : i32, i32
  }
  func.func @transform_6(%arg0: i32, %arg1: i32) -> (i32, i32) {
    %c0_i32 = arith.constant 0 : i32
    %c0_i32_0 = arith.constant 0 : i32
    %c0_i32_1 = arith.constant 0 : i32
    return %c0_i32, %c0_i32_0 : i32, i32
  }
  func.func @transform_7(%arg0: i32, %arg1: i32) -> (i32, i32) {
    %c0_i32 = arith.constant 0 : i32
    %c0_i32_0 = arith.constant 0 : i32
    %c0_i32_1 = arith.constant 0 : i32
    return %c0_i32, %c0_i32_0 : i32, i32
  }
  func.func @transform_8(%arg0: i32, %arg1: i32) -> (i32, i32) {
    %c0_i32 = arith.constant 0 : i32
    %c0_i32_0 = arith.constant 0 : i32
    %c0_i32_1 = arith.constant 0 : i32
    return %c0_i32, %c0_i32_0 : i32, i32
  }
  func.func @transform_9(%arg0: i32, %arg1: i32) -> (i32, i32, i32) {
    %c0_i32 = arith.constant 0 : i32
    %c0_i32_0 = arith.constant 0 : i32
    return %arg0, %c0_i32, %arg1 : i32, i32, i32
  }
}

</mosaic_0001>

<llo_original>
// kernel: tpu_custom_call.1
$region0: #{tpu_custom_call.1}
  #allocation0 [shape = 'u32[]', space=smem, size = 0x4, offset = 0x4, fixed_abs, tag = 'smem constant byte address 0x4 - core index']
  #allocation1 [shape = 'u32[72,128]{1,0:T(1,128)}', space=vmem, size = 0x9000, scoped, tag = 'internal scratch']
  %s0 = inlined_call_operand.vmem [shape: f32[2,18,18,8], index: 0, kind: input, shape index: {}]
  %s1 = inlined_call_operand.vmem [shape: f32[8,32], index: 1, kind: input, shape index: {}]
  %s2 = inlined_call_operand.vmem [shape: f32[1,32], index: 2, kind: input, shape index: {}]
  %s3 = inlined_call_operand.vmem [shape: f32[3,3,32], index: 3, kind: input, shape index: {}]
  %s4 = inlined_call_operand.vmem [shape: f32[1,32], index: 4, kind: input, shape index: {}]
  %s5 = inlined_call_operand.vmem [shape: f32[32,16], index: 5, kind: input, shape index: {}]
  %s6 = inlined_call_operand.vmem [shape: f32[1,16], index: 6, kind: input, shape index: {}]
  %s7 = inlined_call_operand.vmem [shape: f32[8,16], index: 7, kind: input, shape index: {}]
  %s8 = inlined_call_operand.vmem [shape: f32[1,16], index: 8, kind: input, shape index: {}]
  %s9 = inlined_call_operand.hbm [shape: f32[2,16,256], index: 9, kind: output, shape index: {}]
  %s10 = sld [smem:[#allocation0]]
  $region69: #{tpu_custom_call.1} parent=0
    _
  %s12 = ssub.s32 1, %s10
  %s13 = scalar_select 0, %s12, %s10
  $region1: #{tpu_custom_call.1} parent=0
    #allocation2 [shape = 'u8[16384]{0}', space=vmem, size = 0x4000, scoped, tag = 'output window, operand 0']
    #allocation3 [shape = 's32[2]{0}', space=sflag, size = 0x8, scoped, tag = 'scoped memory for tpu_custom_call.1']
    %14 = vsyncpa [#allocation3], 0
    %s15 = scalar_lea.sflag [#allocation3], 1
    %16 = vsyncpa %s15, 0
    loop: start=0, step=1, limit=6
    $region2: #{tpu_custom_call.1} parent=1 // loop_pre_header
      _
    $region3: #{tpu_custom_call.1} parent=1 // loop_header
      %s18 = sphi 0, %s22
      %p19 = scmp.ge.s32.totalorder %s18, 6
      %s25 = sphi 0, %s37
      %s26 = sphi 0, %s33
      %s27 = sphi 0, %s25
      %s28 = sphi 0, %s26
      %s29 = sphi 0, %s27
      %s30 = sphi 0, %s28
      %s40 = sphi 0, %s42
      %s43 = sphi 0, %s40
      %s44 = sphi 0, %s43
      %s60 = sphi 0, %s44
      %s64 = sphi 0, %s64
      %s66 = sphi 0, %s64
      %s67 = sphi 0, %s66
      %s81 = sphi 0, %s67
      %s85 = sphi 0, %s85
      %s87 = sphi 0, %s85
      %s88 = sphi 0, %s87
      %s102 = sphi 0, %s88
      %s106 = sphi 0, %s106
      %s108 = sphi 0, %s106
      %s109 = sphi 0, %s108
      %s123 = sphi 0, %s109
      %s127 = sphi 0, %s127
      %s129 = sphi 0, %s127
      %s130 = sphi 0, %s129
      %s144 = sphi 0, %s130
      %s148 = sphi 0, %s148
      %s150 = sphi 0, %s148
      %s151 = sphi 0, %s150
      %s165 = sphi 0, %s151
      %s169 = sphi 0, %s169
      %s171 = sphi 0, %s169
      %s172 = sphi 0, %s171
      %s186 = sphi 0, %s172
      %s190 = sphi 0, %s190
      %s192 = sphi 0, %s190
      %s193 = sphi 0, %s192
      %s207 = sphi 0, %s193
      %s211 = sphi 0, %s211
      %s213 = sphi 0, %s211
      %s214 = sphi 0, %s213
      %s228 = sphi 0, %s214
      %s236 = sphi 0, %s238
      %s239 = sphi 0, %s236
      %s240 = sphi 0, %s239
      %s256 = sphi 0, %s240
    $region4: #{tpu_custom_call.1} parent=1 // loop_header_branch
      %21 = sbr.rel (%p19) target = $region8
    $region5: #{tpu_custom_call.1} parent=1 // loop_body
      %s23 = ssub.s32 %s18, 1
      %s24 = ssub.s32 %s18, 2
      %s31 = sadd.s32 1, %s26
      %p32 = scmp.ge.s32.totalorder %s31, 2
      %s33 = scalar_select %p32, 0, %s31
      %s34 = sadd.s32 1, %s25
      %s35 = scalar_select %p32, %s34, %s25
      %p36 = scmp.ge.s32.totalorder %s35, 2
      %s37 = scalar_select %p36, 0, %s35
      %s38 = ssub.s32 %s25, %s37
      %p39 = scmp.eq.s32.totalorder %s38, 0
      %s41 = sadd.s32 %s40, 1
      %s42 = scalar_select %p39, %s40, %s41
      %p45 = pneg %p39
      %p46 = scmp.eq.s32.totalorder %s18, 3
      %p47 = por %p45, %p46
      %p48 = scmp.ne.s32.totalorder %s40, %s43
      %p49 = scmp.eq.s32.totalorder %s18, 0
      %p50 = por %p48, %p49
      %p51 = scmp.ne.s32.totalorder %s40, %s43
      %p52 = scmp.eq.s32.totalorder %s23, 3
      %p53 = por %p51, %p52
      %p54 = scmp.ne.s32.totalorder %s43, %s44
      %p55 = scmp.eq.s32.totalorder %s23, 0
      %p56 = por %p54, %p55
      %p57 = scmp.ne.s32.totalorder %s43, %s44
      %p58 = scmp.eq.s32.totalorder %s24, 3
      %p59 = por %p57, %p58
      %p61 = scmp.ne.s32.totalorder %s44, %s60
      %p62 = scmp.eq.s32.totalorder %s24, 0
      %p63 = por %p61, %p62
      %s65 = sadd.s32 %s64, 1
      %p68 = scmp.eq.s32.totalorder %s18, 3
      %p69 = scmp.ne.s32.totalorder %s64, %s66
      %p70 = scmp.eq.s32.totalorder %s18, 0
      %p71 = por %p69, %p70
      %p72 = scmp.ne.s32.totalorder %s64, %s66
      %p73 = scmp.eq.s32.totalorder %s23, 3
      %p74 = por %p72, %p73
      %p75 = scmp.ne.s32.totalorder %s66, %s67
      %p76 = scmp.eq.s32.totalorder %s23, 0
      %p77 = por %p75, %p76
      %p78 = scmp.ne.s32.totalorder %s66, %s67
      %p79 = scmp.eq.s32.totalorder %s24, 3
      %p80 = por %p78, %p79
      %p82 = scmp.ne.s32.totalorder %s67, %s81
      %p83 = scmp.eq.s32.totalorder %s24, 0
      %p84 = por %p82, %p83
      %s86 = sadd.s32 %s85, 1
      %p89 = scmp.eq.s32.totalorder %s18, 3
      %p90 = scmp.ne.s32.totalorder %s85, %s87
      %p91 = scmp.eq.s32.totalorder %s18, 0
      %p92 = por %p90, %p91
      %p93 = scmp.ne.s32.totalorder %s85, %s87
      %p94 = scmp.eq.s32.totalorder %s23, 3
      %p95 = por %p93, %p94
      %p96 = scmp.ne.s32.totalorder %s87, %s88
      %p97 = scmp.eq.s32.totalorder %s23, 0
      %p98 = por %p96, %p97
      %p99 = scmp.ne.s32.totalorder %s87, %s88
      %p100 = scmp.eq.s32.totalorder %s24, 3
      %p101 = por %p99, %p100
      %p103 = scmp.ne.s32.totalorder %s88, %s102
      %p104 = scmp.eq.s32.totalorder %s24, 0
      %p105 = por %p103, %p104
      %s107 = sadd.s32 %s106, 1
      %p110 = scmp.eq.s32.totalorder %s18, 3
      %p111 = scmp.ne.s32.totalorder %s106, %s108
      %p112 = scmp.eq.s32.totalorder %s18, 0
      %p113 = por %p111, %p112
      %p114 = scmp.ne.s32.totalorder %s106, %s108
      %p115 = scmp.eq.s32.totalorder %s23, 3
      %p116 = por %p114, %p115
      %p117 = scmp.ne.s32.totalorder %s108, %s109
      %p118 = scmp.eq.s32.totalorder %s23, 0
      %p119 = por %p117, %p118
      %p120 = scmp.ne.s32.totalorder %s108, %s109
      %p121 = scmp.eq.s32.totalorder %s24, 3
      %p122 = por %p120, %p121
      %p124 = scmp.ne.s32.totalorder %s109, %s123
      %p125 = scmp.eq.s32.totalorder %s24, 0
      %p126 = por %p124, %p125
      %s128 = sadd.s32 %s127, 1
      %p131 = scmp.eq.s32.totalorder %s18, 3
      %p132 = scmp.ne.s32.totalorder %s127, %s129
      %p133 = scmp.eq.s32.totalorder %s18, 0
      %p134 = por %p132, %p133
      %p135 = scmp.ne.s32.totalorder %s127, %s129
      %p136 = scmp.eq.s32.totalorder %s23, 3
      %p137 = por %p135, %p136
      %p138 = scmp.ne.s32.totalorder %s129, %s130
      %p139 = scmp.eq.s32.totalorder %s23, 0
      %p140 = por %p138, %p139
      %p141 = scmp.ne.s32.totalorder %s129, %s130
      %p142 = scmp.eq.s32.totalorder %s24, 3
      %p143 = por %p141, %p142
      %p145 = scmp.ne.s32.totalorder %s130, %s144
      %p146 = scmp.eq.s32.totalorder %s24, 0
      %p147 = por %p145, %p146
      %s149 = sadd.s32 %s148, 1
      %p152 = scmp.eq.s32.totalorder %s18, 3
      %p153 = scmp.ne.s32.totalorder %s148, %s150
      %p154 = scmp.eq.s32.totalorder %s18, 0
      %p155 = por %p153, %p154
      %p156 = scmp.ne.s32.totalorder %s148, %s150
      %p157 = scmp.eq.s32.totalorder %s23, 3
      %p158 = por %p156, %p157
      %p159 = scmp.ne.s32.totalorder %s150, %s151
      %p160 = scmp.eq.s32.totalorder %s23, 0
      %p161 = por %p159, %p160
      %p162 = scmp.ne.s32.totalorder %s150, %s151
      %p163 = scmp.eq.s32.totalorder %s24, 3
      %p164 = por %p162, %p163
      %p166 = scmp.ne.s32.totalorder %s151, %s165
      %p167 = scmp.eq.s32.totalorder %s24, 0
      %p168 = por %p166, %p167
      %s170 = sadd.s32 %s169, 1
      %p173 = scmp.eq.s32.totalorder %s18, 3
      %p174 = scmp.ne.s32.totalorder %s169, %s171
      %p175 = scmp.eq.s32.totalorder %s18, 0
      %p176 = por %p174, %p175
      %p177 = scmp.ne.s32.totalorder %s169, %s171
      %p178 = scmp.eq.s32.totalorder %s23, 3
      %p179 = por %p177, %p178
      %p180 = scmp.ne.s32.totalorder %s171, %s172
      %p181 = scmp.eq.s32.totalorder %s23, 0
      %p182 = por %p180, %p181
      %p183 = scmp.ne.s32.totalorder %s171, %s172
      %p184 = scmp.eq.s32.totalorder %s24, 3
      %p185 = por %p183, %p184
      %p187 = scmp.ne.s32.totalorder %s172, %s186
      %p188 = scmp.eq.s32.totalorder %s24, 0
      %p189 = por %p187, %p188
      %s191 = sadd.s32 %s190, 1
      %p194 = scmp.eq.s32.totalorder %s18, 3
      %p195 = scmp.ne.s32.totalorder %s190, %s192
      %p196 = scmp.eq.s32.totalorder %s18, 0
      %p197 = por %p195, %p196
      %p198 = scmp.ne.s32.totalorder %s190, %s192
      %p199 = scmp.eq.s32.totalorder %s23, 3
      %p200 = por %p198, %p199
      %p201 = scmp.ne.s32.totalorder %s192, %s193
      %p202 = scmp.eq.s32.totalorder %s23, 0
      %p203 = por %p201, %p202
      %p204 = scmp.ne.s32.totalorder %s192, %s193
      %p205 = scmp.eq.s32.totalorder %s24, 3
      %p206 = por %p204, %p205
      %p208 = scmp.ne.s32.totalorder %s193, %s207
      %p209 = scmp.eq.s32.totalorder %s24, 0
      %p210 = por %p208, %p209
      %s212 = sadd.s32 %s211, 1
      %p215 = scmp.eq.s32.totalorder %s18, 3
      %p216 = scmp.ne.s32.totalorder %s211, %s213
      %p217 = scmp.eq.s32.totalorder %s18, 0
      %p218 = por %p216, %p217
      %p219 = scmp.ne.s32.totalorder %s211, %s213
      %p220 = scmp.eq.s32.totalorder %s23, 3
      %p221 = por %p219, %p220
      %p222 = scmp.ne.s32.totalorder %s213, %s214
      %p223 = scmp.eq.s32.totalorder %s23, 0
      %p224 = por %p222, %p223
      %p225 = scmp.ne.s32.totalorder %s213, %s214
      %p226 = scmp.eq.s32.totalorder %s24, 3
      %p227 = por %p225, %p226
      %p229 = scmp.ne.s32.totalorder %s214, %s228
      %p230 = scmp.eq.s32.totalorder %s24, 0
      %p231 = por %p229, %p230
      %s232 = ssub.s32 %s25, %s37
      %s233 = ssub.s32 %s26, %s33
      %s234 = sor.u32 %s232, %s233
      %p235 = scmp.eq.s32.totalorder %s234, 0
      %s237 = sadd.s32 %s236, 1
      %s238 = scalar_select %p235, %s236, %s237
      %p241 = pneg %p235
      %p242 = scmp.eq.s32.totalorder %s18, 3
      %p243 = por %p241, %p242
      %p244 = scmp.ne.s32.totalorder %s236, %s239
      %p245 = scmp.eq.s32.totalorder %s18, 0
      %p246 = por %p244, %p245
      %p247 = scmp.ne.s32.totalorder %s236, %s239
      %p248 = scmp.eq.s32.totalorder %s23, 3
      %p249 = por %p247, %p248
      %p250 = scmp.ne.s32.totalorder %s239, %s240
      %p251 = scmp.eq.s32.totalorder %s23, 0
      %p252 = por %p250, %p251
      %p253 = scmp.ne.s32.totalorder %s239, %s240
      %p254 = scmp.eq.s32.totalorder %s24, 3
      %p255 = por %p253, %p254
      %p257 = scmp.ne.s32.totalorder %s240, %s256
      %p258 = scmp.eq.s32.totalorder %s24, 0
      %p259 = por %p257, %p258
      %p260 = scmp.le.s32.totalorder 1, %s18
      %p261 = scmp.lt.s32.totalorder %s18, 5
      %p262 = pnand %p260, %p261
      %p263 = pneg %p262
      // Predicated region
      $region9: #{tpu_custom_call.1} parent=5 // pred_check
        _
      $region10: #{tpu_custom_call.1} parent=5 // pred_check_branch
        %265 = sbr.rel (%p262) target = $region12
      $region11: #{tpu_custom_call.1} parent=5 // pred_region
        %s266 = ssub.s32 %s18, 1
        // Predicated region
        $region13: #{tpu_custom_call.1} parent=11 // pred_check
          %p267 = pneg %p77
        $region14: #{tpu_custom_call.1} parent=11 // pred_check_branch
          %269 = sbr.rel (%p267) target = $region16
        $region15: #{tpu_custom_call.1} parent=11 // pred_region
          _
        $region16: #{tpu_custom_call.1} parent=11 // pred_fallthru
          _
        // Predicated region
        $region17: #{tpu_custom_call.1} parent=11 // pred_check
          %p270 = pneg %p98
        $region18: #{tpu_custom_call.1} parent=11 // pred_check_branch
          %272 = sbr.rel (%p270) target = $region20
        $region19: #{tpu_custom_call.1} parent=11 // pred_region
          _
        $region20: #{tpu_custom_call.1} parent=11 // pred_fallthru
          _
        // Predicated region
        $region21: #{tpu_custom_call.1} parent=11 // pred_check
          %p273 = pneg %p119
        $region22: #{tpu_custom_call.1} parent=11 // pred_check_branch
          %275 = sbr.rel (%p273) target = $region24
        $region23: #{tpu_custom_call.1} parent=11 // pred_region
          _
        $region24: #{tpu_custom_call.1} parent=11 // pred_fallthru
          _
        // Predicated region
        $region25: #{tpu_custom_call.1} parent=11 // pred_check
          %p276 = pneg %p140
        $region26: #{tpu_custom_call.1} parent=11 // pred_check_branch
          %278 = sbr.rel (%p276) target = $region28
        $region27: #{tpu_custom_call.1} parent=11 // pred_region
          _
        $region28: #{tpu_custom_call.1} parent=11 // pred_fallthru
          _
        // Predicated region
        $region29: #{tpu_custom_call.1} parent=11 // pred_check
          %p279 = pneg %p161
        $region30: #{tpu_custom_call.1} parent=11 // pred_check_branch
          %281 = sbr.rel (%p279) target = $region32
        $region31: #{tpu_custom_call.1} parent=11 // pred_region
          _
        $region32: #{tpu_custom_call.1} parent=11 // pred_fallthru
          _
        // Predicated region
        $region33: #{tpu_custom_call.1} parent=11 // pred_check
          %p282 = pneg %p182
        $region34: #{tpu_custom_call.1} parent=11 // pred_check_branch
          %284 = sbr.rel (%p282) target = $region36
        $region35: #{tpu_custom_call.1} parent=11 // pred_region
          _
        $region36: #{tpu_custom_call.1} parent=11 // pred_fallthru
          _
        // Predicated region
        $region37: #{tpu_custom_call.1} parent=11 // pred_check
          %p285 = pneg %p203
        $region38: #{tpu_custom_call.1} parent=11 // pred_check_branch
          %287 = sbr.rel (%p285) target = $region40
        $region39: #{tpu_custom_call.1} parent=11 // pred_region
          _
        $region40: #{tpu_custom_call.1} parent=11 // pred_fallthru
          _
        // Predicated region
        $region41: #{tpu_custom_call.1} parent=11 // pred_check
          %p288 = pneg %p224
        $region42: #{tpu_custom_call.1} parent=11 // pred_check_branch
          %290 = sbr.rel (%p288) target = $region44
        $region43: #{tpu_custom_call.1} parent=11 // pred_region
          _
        $region44: #{tpu_custom_call.1} parent=11 // pred_fallthru
          _
      $region12: #{tpu_custom_call.1} parent=5 // pred_fallthru
        _
      %p291 = scmp.lt.s32.totalorder %s18, 4
      // Predicated region
      $region45: #{tpu_custom_call.1} parent=5 // pred_check
        %p292 = pneg %p291
      $region46: #{tpu_custom_call.1} parent=5 // pred_check_branch
        %294 = sbr.rel (%p292) target = $region48
      $region47: #{tpu_custom_call.1} parent=5 // pred_region
        // Predicated region
        $region49: #{tpu_custom_call.1} parent=47 // pred_check
          %p295 = pneg %p50
        $region50: #{tpu_custom_call.1} parent=47 // pred_check_branch
          %297 = sbr.rel (%p295) target = $region52
        $region51: #{tpu_custom_call.1} parent=47 // pred_region
          %p298 = scmp.lt.s32.totalorder %s25, 1
          %s299 = scalar_select %p298, %s25, 1
          %s300 = smul.addr %s299, 54
          %s301 = smul.addr %s300, 8
          %s302 = scalar_lea.vmem %s0, %s301
        $region52: #{tpu_custom_call.1} parent=47 // pred_fallthru
          _
      $region48: #{tpu_custom_call.1} parent=5 // pred_fallthru
        _
      %p303 = scmp.le.s32.totalorder 1, %s18
      %p304 = scmp.lt.s32.totalorder %s18, 5
      %p305 = pnand %p303, %p304
      %p306 = pneg %p305
      // Predicated region
      $region53: #{tpu_custom_call.1} parent=5 // pred_check
        _
      $region54: #{tpu_custom_call.1} parent=5 // pred_check_branch
        %308 = sbr.rel (%p305) target = $region56
      $region55: #{tpu_custom_call.1} parent=5 // pred_region
        %s309 = ssub.s32 %s18, 1
        %p310 = scmp.lt.s32.totalorder %s27, 1
        %s311 = scalar_select %p310, %s27, 1
        %s312 = smul.addr %s311, 54
        %s313 = smul.addr %s312, 8
        %s314 = scalar_lea.vmem %s0, %s313
        %p315 = pneg %p56
        %p316 = pneg %p53
        %p317 = pneg %p77
        %p318 = pneg %p74
        %p319 = pneg %p98
        %p320 = pneg %p95
        %p321 = pneg %p119
        %p322 = pneg %p116
        %p323 = pneg %p140
        %p324 = pneg %p137
        %p325 = pneg %p161
        %p326 = pneg %p158
        %p327 = pneg %p182
        %p328 = pneg %p179
        %p329 = pneg %p203
        %p330 = pneg %p200
        %p331 = pneg %p224
        %p332 = pneg %p221
        %p333 = pneg %p252
        %p334 = pneg %p249
        %s335 = sand.u32 %s239, 1
        %s336 = scalar_lea.sflag [#allocation3], %s335
        %s337 = sand.u32 %s239, 1
        %s338 = smul.addr %s337, 16
        %s339 = scalar_lea.vmem [#allocation2], %s338
        %p340 = scmp.lt.s32.totalorder %s27, 1
        %s341 = scalar_select %p340, %s27, 1
        %s342 = smul.addr %s341, 54
        %s343 = smul.addr %s342, 8
        %s344 = scalar_lea.vmem %s0, %s343
        %s345 = smul.u32 %s28, 8
        %s346 = smul.u32 %s345, 24
        %s347 = scalar_lea.vmem %s344, %s346
        %v348 = vld [vmem:[%s347] sm:$0xff]
        %v349 = vld [vmem:[%s347 + $0x8] sm:$0xff]
        %v350 = vld [vmem:[%s347 + $0x10] sm:$0x3]
        %v351 = vld [vmem:[%s347 + $0x18] sm:$0xff]
        %v352 = vld [vmem:[%s347 + $0x20] sm:$0xff]
        %v353 = vld [vmem:[%s347 + $0x28] sm:$0x3]
        %v354 = vld [vmem:[%s347 + $0x30] sm:$0xff]
        %v355 = vld [vmem:[%s347 + $0x38] sm:$0xff]
        %v356 = vld [vmem:[%s347 + $0x40] sm:$0x3]
        %v357 = vld [vmem:[%s347 + $0x48] sm:$0xff]
        %v358 = vld [vmem:[%s347 + $0x50] sm:$0xff]
        %v359 = vld [vmem:[%s347 + $0x58] sm:$0x3]
        %v360 = vld [vmem:[%s347 + $0x60] sm:$0xff]
        %v361 = vld [vmem:[%s347 + $0x68] sm:$0xff]
        %v362 = vld [vmem:[%s347 + $0x70] sm:$0x3]
        %v363 = vld [vmem:[%s347 + $0x78] sm:$0xff]
        %v364 = vld [vmem:[%s347 + $0x80] sm:$0xff]
        %v365 = vld [vmem:[%s347 + $0x88] sm:$0x3]
        %v366 = vld [vmem:[%s347 + $0x90] sm:$0xff]
        %v367 = vld [vmem:[%s347 + $0x98] sm:$0xff]
        %v368 = vld [vmem:[%s347 + $0xa0] sm:$0x3]
        %v369 = vld [vmem:[%s347 + $0xa8] sm:$0xff]
        %v370 = vld [vmem:[%s347 + $0xb0] sm:$0xff]
        %v371 = vld [vmem:[%s347 + $0xb8] sm:$0x3]
        %v372 = vld [vmem:[%s347 + $0xc0] sm:$0xff]
        %v373 = vld [vmem:[%s347 + $0xc8] sm:$0xff]
        %v374 = vld [vmem:[%s347 + $0xd0] sm:$0x3]
        %v375 = vld [vmem:[%s347 + $0xd8] sm:$0xff]
        %v376 = vld [vmem:[%s347 + $0xe0] sm:$0xff]
        %v377 = vld [vmem:[%s347 + $0xe8] sm:$0x3]
        %v408 = vrot.slane %v348, 2
        %v409 = vrot.slane %v348, 4
        %v410 = vrot.slane %v348, 6
        %v411 = vrot.slane %v349, 2
        %v412 = vrot.slane %v349, 4
        %v413 = vrot.slane %v349, 6
        %v414 = vrot.slane %v351, 2
        %v415 = vrot.slane %v351, 4
        %v416 = vrot.slane %v351, 6
        %v417 = vrot.slane %v352, 2
        %v418 = vrot.slane %v352, 4
        %v419 = vrot.slane %v352, 6
        %v420 = vrot.slane %v354, 2
        %v421 = vrot.slane %v354, 4
        %v422 = vrot.slane %v354, 6
        %v423 = vrot.slane %v355, 2
        %v424 = vrot.slane %v355, 4
        %v425 = vrot.slane %v355, 6
        %v426 = vrot.slane %v357, 2
        %v427 = vrot.slane %v357, 4
        %v428 = vrot.slane %v357, 6
        %v429 = vrot.slane %v358, 2
        %v430 = vrot.slane %v358, 4
        %v431 = vrot.slane %v358, 6
        %v432 = vrot.slane %v360, 2
        %v433 = vrot.slane %v360, 4
        %v434 = vrot.slane %v360, 6
        %v435 = vrot.slane %v361, 2
        %v436 = vrot.slane %v361, 4
        %v437 = vrot.slane %v361, 6
        %v438 = vrot.slane %v363, 2
        %v439 = vrot.slane %v363, 4
        %v440 = vrot.slane %v363, 6
        %v441 = vrot.slane %v364, 2
        %v442 = vrot.slane %v364, 4
        %v443 = vrot.slane %v364, 6
        %v444 = vrot.slane %v366, 2
        %v445 = vrot.slane %v366, 4
        %v446 = vrot.slane %v366, 6
        %v447 = vrot.slane %v367, 2
        %v448 = vrot.slane %v367, 4
        %v449 = vrot.slane %v367, 6
        %v450 = vrot.slane %v369, 2
        %v451 = vrot.slane %v369, 4
        %v452 = vrot.slane %v369, 6
        %v453 = vrot.slane %v370, 2
        %v454 = vrot.slane %v370, 4
        %v455 = vrot.slane %v370, 6
        %v456 = vrot.slane %v372, 2
        %v457 = vrot.slane %v372, 4
        %v458 = vrot.slane %v372, 6
        %v459 = vrot.slane %v373, 2
        %v460 = vrot.slane %v373, 4
        %v461 = vrot.slane %v373, 6
        %v462 = vrot.slane %v375, 2
        %v463 = vrot.slane %v375, 4
        %v464 = vrot.slane %v375, 6
        %v465 = vrot.slane %v376, 2
        %v466 = vrot.slane %v376, 4
        %v467 = vrot.slane %v376, 6
        %v468 = vld [vmem:[%s1] sm:$0xff]
        %v469 = vld [vmem:[%s2] sm:$0x1]
        %v471 = vperm.slane %v469, 0
        %473 = vst [vmem:[#allocation1] ss:$4 sm:$0xff] %v348
        %s474 = scalar_lea.vmem [#allocation1], 1
        %475 = vst [vmem:[%s474] ss:$4 sm:$0xff] %v408
        %s476 = scalar_lea.vmem [#allocation1], 2
        %477 = vst [vmem:[%s476] ss:$4 sm:$0xff] %v409
        %s478 = scalar_lea.vmem [#allocation1], 3
        %479 = vst [vmem:[%s478] ss:$4 sm:$0xff] %v410
        %s480 = scalar_lea.vmem [#allocation1], 32
        %481 = vst [vmem:[%s480] ss:$4 sm:$0xff] %v349
        %s482 = scalar_lea.vmem [#allocation1], 33
        %483 = vst [vmem:[%s482] ss:$4 sm:$0xff] %v411
        %s484 = scalar_lea.vmem [#allocation1], 34
        %485 = vst [vmem:[%s484] ss:$4 sm:$0xff] %v412
        %s486 = scalar_lea.vmem [#allocation1], 35
        %487 = vst [vmem:[%s486] ss:$4 sm:$0xff] %v413
        %v488 = vld.sshfl [vmem:[#allocation1] sm:$0xff pattern:$0x73625140]
        %v489 = vld.sshfl [vmem:[#allocation1 + $0x20] sm:$0xff pattern:$0x73625140]
        %490 = vst [vmem:[#allocation1] ss:$4 sm:$0xff] %v350
        %491 = vst [vmem:[%s474] ss:$4 sm:$0xff] %v351
        %492 = vst [vmem:[%s476] ss:$4 sm:$0xff] %v414
        %493 = vst [vmem:[%s478] ss:$4 sm:$0xff] %v415
        %494 = vst [vmem:[%s480] ss:$4 sm:$0xff] %v416
        %495 = vst [vmem:[%s482] ss:$4 sm:$0xff] %v352
        %496 = vst [vmem:[%s484] ss:$4 sm:$0xff] %v417
        %497 = vst [vmem:[%s486] ss:$4 sm:$0xff] %v418
        %v498 = vld.sshfl [vmem:[#allocation1] sm:$0xff pattern:$0x73625140]
        %v499 = vld.sshfl [vmem:[#allocation1 + $0x20] sm:$0xff pattern:$0x73625140]
        %500 = vst [vmem:[#allocation1] ss:$4 sm:$0xff] %v419
        %501 = vst [vmem:[%s474] ss:$4 sm:$0xff] %v353
        %502 = vst [vmem:[%s476] ss:$4 sm:$0xff] %v354
        %503 = vst [vmem:[%s478] ss:$4 sm:$0xff] %v420
        %504 = vst [vmem:[%s480] ss:$4 sm:$0xff] %v421
        %505 = vst [vmem:[%s482] ss:$4 sm:$0xff] %v422
        %506 = vst [vmem:[%s484] ss:$4 sm:$0xff] %v355
        %507 = vst [vmem:[%s486] ss:$4 sm:$0xff] %v423
        %v508 = vld.sshfl [vmem:[#allocation1] sm:$0xff pattern:$0x73625140]
        %v509 = vld.sshfl [vmem:[#allocation1 + $0x20] sm:$0xff pattern:$0x73625140]
        %510 = vst [vmem:[#allocation1] ss:$4 sm:$0xff] %v424
        %511 = vst [vmem:[%s474] ss:$4 sm:$0xff] %v425
        %512 = vst [vmem:[%s476] ss:$4 sm:$0xff] %v356
        %513 = vst [vmem:[%s478] ss:$4 sm:$0xff] %v357
        %514 = vst [vmem:[%s480] ss:$4 sm:$0xff] %v426
        %515 = vst [vmem:[%s482] ss:$4 sm:$0xff] %v427
        %516 = vst [vmem:[%s484] ss:$4 sm:$0xff] %v428
        %517 = vst [vmem:[%s486] ss:$4 sm:$0xff] %v358
        %v518 = vld.sshfl [vmem:[#allocation1] sm:$0xff pattern:$0x73625140]
        %v519 = vld.sshfl [vmem:[#allocation1 + $0x20] sm:$0xff pattern:$0x73625140]
        %520 = vst [vmem:[#allocation1] ss:$4 sm:$0xff] %v429
        %521 = vst [vmem:[%s474] ss:$4 sm:$0xff] %v430
        %522 = vst [vmem:[%s476] ss:$4 sm:$0xff] %v431
        %523 = vst [vmem:[%s478] ss:$4 sm:$0xff] %v359
        %524 = vst [vmem:[%s480] ss:$4 sm:$0xff] %v360
        %525 = vst [vmem:[%s482] ss:$4 sm:$0xff] %v432
        %526 = vst [vmem:[%s484] ss:$4 sm:$0xff] %v433
        %527 = vst [vmem:[%s486] ss:$4 sm:$0xff] %v434
        %v528 = vld.sshfl [vmem:[#allocation1] sm:$0xff pattern:$0x73625140]
        %v529 = vld.sshfl [vmem:[#allocation1 + $0x20] sm:$0xff pattern:$0x73625140]
        %530 = vst [vmem:[#allocation1] ss:$4 sm:$0xff] %v361
        %531 = vst [vmem:[%s474] ss:$4 sm:$0xff] %v435
        %532 = vst [vmem:[%s476] ss:$4 sm:$0xff] %v436
        %533 = vst [vmem:[%s478] ss:$4 sm:$0xff] %v437
        %534 = vst [vmem:[%s480] ss:$4 sm:$0xff] %v362
        %535 = vst [vmem:[%s482] ss:$4 sm:$0xff] %v363
        %536 = vst [vmem:[%s484] ss:$4 sm:$0xff] %v438
        %537 = vst [vmem:[%s486] ss:$4 sm:$0xff] %v439
        %v538 = vld.sshfl [vmem:[#allocation1] sm:$0xff pattern:$0x73625140]
        %v539 = vld.sshfl [vmem:[#allocation1 + $0x20] sm:$0xff pattern:$0x73625140]
        %540 = vst [vmem:[#allocation1] ss:$4 sm:$0xff] %v440
        %541 = vst [vmem:[%s474] ss:$4 sm:$0xff] %v364
        %542 = vst [vmem:[%s476] ss:$4 sm:$0xff] %v441
        %543 = vst [vmem:[%s478] ss:$4 sm:$0xff] %v442
        %544 = vst [vmem:[%s480] ss:$4 sm:$0xff] %v443
        %545 = vst [vmem:[%s482] ss:$4 sm:$0xff] %v365
        %546 = vst [vmem:[%s484] ss:$4 sm:$0xff] %v366
        %547 = vst [vmem:[%s486] ss:$4 sm:$0xff] %v444
        %v548 = vld.sshfl [vmem:[#allocation1] sm:$0xff pattern:$0x73625140]
        %v549 = vld.sshfl [vmem:[#allocation1 + $0x20] sm:$0xff pattern:$0x73625140]
        %550 = vst [vmem:[#allocation1] ss:$4 sm:$0xff] %v445
        %551 = vst [vmem:[%s474] ss:$4 sm:$0xff] %v446
        %552 = vst [vmem:[%s476] ss:$4 sm:$0xff] %v367
        %553 = vst [vmem:[%s478] ss:$4 sm:$0xff] %v447
        %554 = vst [vmem:[%s480] ss:$4 sm:$0xff] %v448
        %555 = vst [vmem:[%s482] ss:$4 sm:$0xff] %v449
        %556 = vst [vmem:[%s484] ss:$4 sm:$0xff] %v368
        %557 = vst [vmem:[%s486] ss:$4 sm:$0xff] %v369
        %v558 = vld.sshfl [vmem:[#allocation1] sm:$0xff pattern:$0x73625140]
        %v559 = vld.sshfl [vmem:[#allocation1 + $0x20] sm:$0xff pattern:$0x73625140]
        %560 = vst [vmem:[#allocation1] ss:$4 sm:$0xff] %v450
        %561 = vst [vmem:[%s474] ss:$4 sm:$0xff] %v451
        %562 = vst [vmem:[%s476] ss:$4 sm:$0xff] %v452
        %563 = vst [vmem:[%s478] ss:$4 sm:$0xff] %v370
        %564 = vst [vmem:[%s480] ss:$4 sm:$0xff] %v453
        %565 = vst [vmem:[%s482] ss:$4 sm:$0xff] %v454
        %566 = vst [vmem:[%s484] ss:$4 sm:$0xff] %v455
        %567 = vst [vmem:[%s486] ss:$4 sm:$0xff] %v371
        %v568 = vld.sshfl [vmem:[#allocation1] sm:$0xff pattern:$0x73625140]
        %v569 = vld.sshfl [vmem:[#allocation1 + $0x20] sm:$0xff pattern:$0x73625140]
        %570 = vst [vmem:[#allocation1] ss:$4 sm:$0xff] %v372
        %571 = vst [vmem:[%s474] ss:$4 sm:$0xff] %v456
        %572 = vst [vmem:[%s476] ss:$4 sm:$0xff] %v457
        %573 = vst [vmem:[%s478] ss:$4 sm:$0xff] %v458
        %574 = vst [vmem:[%s480] ss:$4 sm:$0xff] %v373
        %575 = vst [vmem:[%s482] ss:$4 sm:$0xff] %v459
        %576 = vst [vmem:[%s484] ss:$4 sm:$0xff] %v460
        %577 = vst [vmem:[%s486] ss:$4 sm:$0xff] %v461
        %v578 = vld.sshfl [vmem:[#allocation1] sm:$0xff pattern:$0x73625140]
        %v579 = vld.sshfl [vmem:[#allocation1 + $0x20] sm:$0xff pattern:$0x73625140]
        %580 = vst [vmem:[#allocation1] ss:$4 sm:$0xff] %v374
        %581 = vst [vmem:[%s474] ss:$4 sm:$0xff] %v375
        %582 = vst [vmem:[%s476] ss:$4 sm:$0xff] %v462
        %583 = vst [vmem:[%s478] ss:$4 sm:$0xff] %v463
        %584 = vst [vmem:[%s480] ss:$4 sm:$0xff] %v464
        %585 = vst [vmem:[%s482] ss:$4 sm:$0xff] %v376
        %586 = vst [vmem:[%s484] ss:$4 sm:$0xff] %v465
        %587 = vst [vmem:[%s486] ss:$4 sm:$0xff] %v466
        %v588 = vld.sshfl [vmem:[#allocation1] sm:$0xff pattern:$0x73625140]
        %v589 = vld.sshfl [vmem:[#allocation1 + $0x20] sm:$0xff pattern:$0x73625140]
        %590 = vst [vmem:[#allocation1] ss:$4 sm:$0xff] %v467
        %591 = vst [vmem:[%s474] ss:$4 sm:$0xff] %v377
        %v592 = vld.sshfl [vmem:[#allocation1] sm:$0xff pattern:$0x73625140]
        %vm593 = vcmask 64512
        %v594 = vsel %vm593, %v488, 0
        %v596 = vsel %vm593, %v489, 0
        %v598 = vsel %vm593, %v498, 0
        %v600 = vsel %vm593, %v499, 0
        %v602 = vsel %vm593, %v508, 0
        %v604 = vsel %vm593, %v509, 0
        %v606 = vsel %vm593, %v518, 0
        %v608 = vsel %vm593, %v519, 0
        %v610 = vsel %vm593, %v528, 0
        %v612 = vsel %vm593, %v529, 0
        %v614 = vsel %vm593, %v538, 0
        %v616 = vsel %vm593, %v539, 0
        %v618 = vsel %vm593, %v548, 0
        %v620 = vsel %vm593, %v549, 0
        %v622 = vsel %vm593, %v558, 0
        %v624 = vsel %vm593, %v559, 0
        %v626 = vsel %vm593, %v568, 0
        %v628 = vsel %vm593, %v569, 0
        %v630 = vsel %vm593, %v578, 0
        %v632 = vsel %vm593, %v579, 0
        %v634 = vsel %vm593, %v588, 0
        %v636 = vsel %vm593, %v589, 0
        %v638 = vsel %vm593, %v592, 0
        %640 = vmatpush.msra.mxu0 0.0
        %641 = vmatpush.msra.mxu0 0.0
        %642 = vmatpush.msra.mxu0 0.0
        %643 = vmatpush.msra.mxu0 0.0
        %644 = vmatpush.msra.mxu0 0.0
        %645 = vmatpush.msra.mxu0 0.0
        %646 = vmatpush.msra.mxu0 0.0
        %647 = vmatpush.msra.mxu0 0.0
        %648 = vmatpush.msra.mxu0 0.0
        %649 = vmatpush.msra.mxu0 0.0
        %650 = vmatpush.msra.mxu0 0.0
        %651 = vmatpush.msra.mxu0 0.0
        %652 = vmatpush.msra.mxu0 0.0
        %653 = vmatpush.msra.mxu0 0.0
        %654 = vmatpush.msra.mxu0 0.0
        %655 = vmatpush.msra.mxu0 %v468
        %656 = vmatmul.f32.gmra.mxu0 %v594
        %v657 = vpop.f32.mrf.mxu0
        %v658 = vadd.f32 %v471, %v657
        %659 = vmatmul.f32.gmra.mxu0 %v596
        %v660 = vpop.f32.mrf.mxu0
        %v661 = vadd.f32 %v471, %v660
        %662 = vmatmul.f32.gmra.mxu0 %v598
        %v663 = vpop.f32.mrf.mxu0
        %v664 = vadd.f32 %v471, %v663
        %665 = vmatmul.f32.gmra.mxu0 %v600
        %v666 = vpop.f32.mrf.mxu0
        %v667 = vadd.f32 %v471, %v666
        %668 = vmatmul.f32.gmra.mxu0 %v602
        %v669 = vpop.f32.mrf.mxu0
        %v670 = vadd.f32 %v471, %v669
        %671 = vmatmul.f32.gmra.mxu0 %v604
        %v672 = vpop.f32.mrf.mxu0
        %v673 = vadd.f32 %v471, %v672
        %674 = vmatmul.f32.gmra.mxu0 %v606
        %v675 = vpop.f32.mrf.mxu0
        %v676 = vadd.f32 %v471, %v675
        %677 = vmatmul.f32.gmra.mxu0 %v608
        %v678 = vpop.f32.mrf.mxu0
        %v679 = vadd.f32 %v471, %v678
        %680 = vmatmul.f32.gmra.mxu0 %v610
        %v681 = vpop.f32.mrf.mxu0
        %v682 = vadd.f32 %v471, %v681
        %683 = vmatmul.f32.gmra.mxu0 %v612
        %v684 = vpop.f32.mrf.mxu0
        %v685 = vadd.f32 %v471, %v684
        %686 = vmatmul.f32.gmra.mxu0 %v614
        %v687 = vpop.f32.mrf.mxu0
        %v688 = vadd.f32 %v471, %v687
        %689 = vmatmul.f32.gmra.mxu0 %v616
        %v690 = vpop.f32.mrf.mxu0
        %v691 = vadd.f32 %v471, %v690
        %692 = vmatmul.f32.gmra.mxu0 %v618
        %v693 = vpop.f32.mrf.mxu0
        %v694 = vadd.f32 %v471, %v693
        %695 = vmatmul.f32.gmra.mxu0 %v620
        %v696 = vpop.f32.mrf.mxu0
        %v697 = vadd.f32 %v471, %v696
        %698 = vmatmul.f32.gmra.mxu0 %v622
        %v699 = vpop.f32.mrf.mxu0
        %v700 = vadd.f32 %v471, %v699
        %701 = vmatmul.f32.gmra.mxu0 %v624
        %v702 = vpop.f32.mrf.mxu0
        %v703 = vadd.f32 %v471, %v702
        %704 = vmatmul.f32.gmra.mxu0 %v626
        %v705 = vpop.f32.mrf.mxu0
        %v706 = vadd.f32 %v471, %v705
        %707 = vmatmul.f32.gmra.mxu0 %v628
        %v708 = vpop.f32.mrf.mxu0
        %v709 = vadd.f32 %v471, %v708
        %710 = vmatmul.f32.gmra.mxu0 %v630
        %v711 = vpop.f32.mrf.mxu0
        %v712 = vadd.f32 %v471, %v711
        %713 = vmatmul.f32.gmra.mxu0 %v632
        %v714 = vpop.f32.mrf.mxu0
        %v715 = vadd.f32 %v471, %v714
        %716 = vmatmul.f32.gmra.mxu0 %v634
        %v717 = vpop.f32.mrf.mxu0
        %v718 = vadd.f32 %v471, %v717
        %719 = vmatmul.f32.gmra.mxu0 %v636
        %v720 = vpop.f32.mrf.mxu0
        %v721 = vadd.f32 %v471, %v720
        %722 = vmatmul.f32.gmra.mxu0 %v638
        %v723 = vpop.f32.mrf.mxu0
        %v724 = vadd.f32 %v471, %v723
        %725 = vdwg.mxu0
        %v726 = vmax.f32 %v658, 0.0
        %v727 = vmax.f32 %v661, 0.0
        %v728 = vmax.f32 %v664, 0.0
        %v729 = vmax.f32 %v667, 0.0
        %v730 = vmax.f32 %v670, 0.0
        %v731 = vmax.f32 %v673, 0.0
        %v732 = vmax.f32 %v676, 0.0
        %v733 = vmax.f32 %v679, 0.0
        %v734 = vmax.f32 %v682, 0.0
        %v735 = vmax.f32 %v685, 0.0
        %v736 = vmax.f32 %v688, 0.0
        %v737 = vmax.f32 %v691, 0.0
        %v738 = vmax.f32 %v694, 0.0
        %v739 = vmax.f32 %v697, 0.0
        %v740 = vmax.f32 %v700, 0.0
        %v741 = vmax.f32 %v703, 0.0
        %v742 = vmax.f32 %v706, 0.0
        %v743 = vmax.f32 %v709, 0.0
        %v744 = vmax.f32 %v712, 0.0
        %v745 = vmax.f32 %v715, 0.0
        %v746 = vmax.f32 %v718, 0.0
        %v747 = vmax.f32 %v721, 0.0
        %v748 = vmax.f32 %v724, 0.0
        %v772 = vrot.slane %v726, 2
        %v773 = vrot.slane %v726, 4
        %v774 = vrot.slane %v726, 6
        %v775 = vrot.slane %v727, 2
        %v776 = vrot.slane %v727, 4
        %v777 = vrot.slane %v727, 6
        %v778 = vrot.slane %v728, 2
        %v779 = vrot.slane %v728, 4
        %v780 = vrot.slane %v728, 6
        %v781 = vrot.slane %v729, 2
        %v782 = vrot.slane %v729, 4
        %v783 = vrot.slane %v729, 6
        %v784 = vrot.slane %v730, 2
        %v785 = vrot.slane %v730, 4
        %v786 = vrot.slane %v730, 6
        %v787 = vrot.slane %v731, 2
        %v788 = vrot.slane %v731, 4
        %v789 = vrot.slane %v731, 6
        %v790 = vrot.slane %v732, 2
        %v791 = vrot.slane %v732, 4
        %v792 = vrot.slane %v732, 6
        %v793 = vrot.slane %v733, 2
        %v794 = vrot.slane %v733, 4
        %v795 = vrot.slane %v733, 6
        %v796 = vrot.slane %v734, 2
        %v797 = vrot.slane %v734, 4
        %v798 = vrot.slane %v734, 6
        %v799 = vrot.slane %v735, 2
        %v800 = vrot.slane %v735, 4
        %v801 = vrot.slane %v735, 6
        %v802 = vrot.slane %v736, 2
        %v803 = vrot.slane %v736, 4
        %v804 = vrot.slane %v736, 6
        %v805 = vrot.slane %v737, 2
        %v806 = vrot.slane %v737, 4
        %v807 = vrot.slane %v737, 6
        %v808 = vrot.slane %v738, 2
        %v809 = vrot.slane %v738, 4
        %v810 = vrot.slane %v738, 6
        %v811 = vrot.slane %v739, 2
        %v812 = vrot.slane %v739, 4
        %v813 = vrot.slane %v739, 6
        %v814 = vrot.slane %v740, 2
        %v815 = vrot.slane %v740, 4
        %v816 = vrot.slane %v740, 6
        %v817 = vrot.slane %v741, 2
        %v818 = vrot.slane %v741, 4
        %v819 = vrot.slane %v741, 6
        %v820 = vrot.slane %v742, 2
        %v821 = vrot.slane %v742, 4
        %v822 = vrot.slane %v742, 6
        %v823 = vrot.slane %v743, 2
        %v824 = vrot.slane %v743, 4
        %v825 = vrot.slane %v743, 6
        %v826 = vrot.slane %v744, 2
        %v827 = vrot.slane %v744, 4
        %v828 = vrot.slane %v744, 6
        %v829 = vrot.slane %v745, 2
        %v830 = vrot.slane %v745, 4
        %v831 = vrot.slane %v745, 6
        %v832 = vrot.slane %v746, 2
        %v833 = vrot.slane %v746, 4
        %v834 = vrot.slane %v746, 6
        %v835 = vrot.slane %v747, 2
        %v836 = vrot.slane %v747, 4
        %v837 = vrot.slane %v747, 6
        %v838 = vrot.slane %v748, 2
        %s906 = ssub.s32 %s345, 1
        %v907 = vstv %s906
        %v908 = vadd.s32 %v907, 1
        %v909 = vadd.s32 %v907, 2
        %v910 = vadd.s32 %v907, 3
        %v911 = vadd.s32 %v907, 4
        %v912 = vadd.s32 %v907, 5
        %v913 = vadd.s32 %v907, 6
        %v914 = vadd.s32 %v907, 7
        %v915 = vadd.s32 %v907, 8
        %v916 = vadd.s32 %v907, 9
        %v917 = vlaneseq
        %v918 = vshrl.u32 %v917, 7
        %v919 = vadd.s32 %v918, 8
        %v920 = vadd.s32 %v918, 16
        %v921 = vsub.s32 %v918, 1
        %v922 = vsub.s32 %v919, 1
        %v923 = vsub.s32 %v920, 1
        %vm924 = vcmp.ge.s32.totalorder %v907, 0
        %vm925 = vcmp.ge.s32.totalorder %v908, 0
        %vm926 = vcmp.ge.s32.totalorder %v909, 0
        %vm927 = vcmp.ge.s32.totalorder %v910, 0
        %vm928 = vcmp.ge.s32.totalorder %v911, 0
        %vm929 = vcmp.ge.s32.totalorder %v912, 0
        %vm930 = vcmp.ge.s32.totalorder %v913, 0
        %vm931 = vcmp.ge.s32.totalorder %v914, 0
        %vm932 = vcmp.ge.s32.totalorder %v915, 0
        %vm933 = vcmp.ge.s32.totalorder %v916, 0
        %vm934 = vcmp.lt.s32.totalorder %v907, 16
        %vm935 = vcmp.lt.s32.totalorder %v908, 16
        %vm936 = vcmp.lt.s32.totalorder %v909, 16
        %vm937 = vcmp.lt.s32.totalorder %v910, 16
        %vm938 = vcmp.lt.s32.totalorder %v911, 16
        %vm939 = vcmp.lt.s32.totalorder %v912, 16
        %vm940 = vcmp.lt.s32.totalorder %v913, 16
        %vm941 = vcmp.lt.s32.totalorder %v914, 16
        %vm942 = vcmp.lt.s32.totalorder %v915, 16
        %vm943 = vcmp.lt.s32.totalorder %v916, 16
        %vm944 = vmand %vm924, %vm934
        %vm945 = vmand %vm925, %vm935
        %vm946 = vmand %vm926, %vm936
        %vm947 = vmand %vm927, %vm937
        %vm948 = vmand %vm928, %vm938
        %vm949 = vmand %vm929, %vm939
        %vm950 = vmand %vm930, %vm940
        %vm951 = vmand %vm931, %vm941
        %vm952 = vmand %vm932, %vm942
        %vm953 = vmand %vm933, %vm943
        %vm954 = vcmp.ge.s32.totalorder %v921, 0
        %vm955 = vcmp.ge.s32.totalorder %v922, 0
        %vm956 = vcmp.ge.s32.totalorder %v923, 0
        %v957 = vsel %vm944, 1, 0
        %v958 = vsel %vm945, 1, 0
        %v959 = vsel %vm946, 1, 0
        %v960 = vsel %vm947, 1, 0
        %v961 = vsel %vm948, 1, 0
        %v962 = vsel %vm949, 1, 0
        %v963 = vsel %vm950, 1, 0
        %v964 = vsel %vm951, 1, 0
        %v965 = vsel %vm952, 1, 0
        %v966 = vsel %vm953, 1, 0
        %vm967 = vcmp.eq.s32.totalorder %v957, 1
        %vm968 = vcmp.eq.s32.totalorder %v958, 1
        %vm969 = vcmp.eq.s32.totalorder %v959, 1
        %vm970 = vcmp.eq.s32.totalorder %v960, 1
        %vm971 = vcmp.eq.s32.totalorder %v961, 1
        %vm972 = vcmp.eq.s32.totalorder %v962, 1
        %vm973 = vcmp.eq.s32.totalorder %v963, 1
        %vm974 = vcmp.eq.s32.totalorder %v964, 1
        %vm975 = vcmp.eq.s32.totalorder %v965, 1
        %vm976 = vcmp.eq.s32.totalorder %v966, 1
        %v977 = vsel %vm954, 1, 0
        %v978 = vsel %vm955, 1, 0
        %v979 = vsel %vm956, 1, 0
        %vm980 = vcmp.eq.s32.totalorder %v977, 1
        %vm981 = vcmp.eq.s32.totalorder %v978, 1
        %vm982 = vcmp.eq.s32.totalorder %v979, 1
        %vm983 = vmand %vm967, %vm980
        %vm984 = vmand %vm967, %vm981
        %vm985 = vmand %vm967, %vm982
        %vm986 = vmand %vm968, %vm980
        %vm987 = vmand %vm968, %vm981
        %vm988 = vmand %vm968, %vm982
        %vm989 = vmand %vm969, %vm980
        %vm990 = vmand %vm969, %vm981
        %vm991 = vmand %vm969, %vm982
        %vm992 = vmand %vm970, %vm980
        %vm993 = vmand %vm970, %vm981
        %vm994 = vmand %vm970, %vm982
        %vm995 = vmand %vm971, %vm980
        %vm996 = vmand %vm971, %vm981
        %vm997 = vmand %vm971, %vm982
        %vm998 = vmand %vm972, %vm980
        %vm999 = vmand %vm972, %vm981
        %vm1000 = vmand %vm972, %vm982
        %vm1001 = vmand %vm973, %vm980
        %vm1002 = vmand %vm973, %vm981
        %vm1003 = vmand %vm973, %vm982
        %vm1004 = vmand %vm974, %vm980
        %vm1005 = vmand %vm974, %vm981
        %vm1006 = vmand %vm974, %vm982
        %vm1007 = vmand %vm975, %vm980
        %vm1008 = vmand %vm975, %vm981
        %vm1009 = vmand %vm975, %vm982
        %vm1010 = vmand %vm976, %vm980
        %vm1011 = vmand %vm976, %vm981
        %vm1012 = vmand %vm976, %vm982
        %vm1013 = vcmp.lt.s32.totalorder %v921, 16
        %vm1014 = vcmp.lt.s32.totalorder %v922, 16
        %vm1015 = vcmp.lt.s32.totalorder %v923, 16
        %v1016 = vsel %vm1013, 1, 0
        %v1017 = vsel %vm1014, 1, 0
        %v1018 = vsel %vm1015, 1, 0
        %vm1019 = vcmp.eq.s32.totalorder %v1016, 1
        %vm1020 = vcmp.eq.s32.totalorder %v1017, 1
        %vm1021 = vcmp.eq.s32.totalorder %v1018, 1
        %vm1022 = vmand %vm983, %vm1019
        %vm1023 = vmand %vm984, %vm1020
        %vm1024 = vmand %vm985, %vm1021
        %vm1025 = vmand %vm986, %vm1019
        %vm1026 = vmand %vm987, %vm1020
        %vm1027 = vmand %vm988, %vm1021
        %vm1028 = vmand %vm989, %vm1019
        %vm1029 = vmand %vm990, %vm1020
        %vm1030 = vmand %vm991, %vm1021
        %vm1031 = vmand %vm992, %vm1019
        %vm1032 = vmand %vm993, %vm1020
        %vm1033 = vmand %vm994, %vm1021
        %vm1034 = vmand %vm995, %vm1019
        %vm1035 = vmand %vm996, %vm1020
        %vm1036 = vmand %vm997, %vm1021
        %vm1037 = vmand %vm998, %vm1019
        %vm1038 = vmand %vm999, %vm1020
        %vm1039 = vmand %vm1000, %vm1021
        %vm1040 = vmand %vm1001, %vm1019
        %vm1041 = vmand %vm1002, %vm1020
        %vm1042 = vmand %vm1003, %vm1021
        %vm1043 = vmand %vm1004, %vm1019
        %vm1044 = vmand %vm1005, %vm1020
        %vm1045 = vmand %vm1006, %vm1021
        %vm1046 = vmand %vm1007, %vm1019
        %vm1047 = vmand %vm1008, %vm1020
        %vm1048 = vmand %vm1009, %vm1021
        %vm1049 = vmand %vm1010, %vm1019
        %vm1050 = vmand %vm1011, %vm1020
        %vm1051 = vmand %vm1012, %vm1021
        %v1052 = vsel %vm1022, 1, 0
        %v1053 = vsel %vm1023, 1, 0
        %v1054 = vsel %vm1024, 1, 0
        %v1055 = vsel %vm1025, 1, 0
        %v1056 = vsel %vm1026, 1, 0
        %v1057 = vsel %vm1027, 1, 0
        %v1058 = vsel %vm1028, 1, 0
        %v1059 = vsel %vm1029, 1, 0
        %v1060 = vsel %vm1030, 1, 0
        %v1061 = vsel %vm1031, 1, 0
        %v1062 = vsel %vm1032, 1, 0
        %v1063 = vsel %vm1033, 1, 0
        %v1064 = vsel %vm1034, 1, 0
        %v1065 = vsel %vm1035, 1, 0
        %v1066 = vsel %vm1036, 1, 0
        %v1067 = vsel %vm1037, 1, 0
        %v1068 = vsel %vm1038, 1, 0
        %v1069 = vsel %vm1039, 1, 0
        %v1070 = vsel %vm1040, 1, 0
        %v1071 = vsel %vm1041, 1, 0
        %v1072 = vsel %vm1042, 1, 0
        %v1073 = vsel %vm1043, 1, 0
        %v1074 = vsel %vm1044, 1, 0
        %v1075 = vsel %vm1045, 1, 0
        %v1076 = vsel %vm1046, 1, 0
        %v1077 = vsel %vm1047, 1, 0
        %v1078 = vsel %vm1048, 1, 0
        %v1079 = vsel %vm1049, 1, 0
        %v1080 = vsel %vm1050, 1, 0
        %v1081 = vsel %vm1051, 1, 0
        %v1082 = vcvt.s32.f32 %v1052
        %v1083 = vcvt.s32.f32 %v1053
        %v1084 = vcvt.s32.f32 %v1054
        %v1085 = vcvt.s32.f32 %v1055
        %v1086 = vcvt.s32.f32 %v1056
        %v1087 = vcvt.s32.f32 %v1057
        %v1088 = vcvt.s32.f32 %v1058
        %v1089 = vcvt.s32.f32 %v1059
        %v1090 = vcvt.s32.f32 %v1060
        %v1091 = vcvt.s32.f32 %v1061
        %v1092 = vcvt.s32.f32 %v1062
        %v1093 = vcvt.s32.f32 %v1063
        %v1094 = vcvt.s32.f32 %v1064
        %v1095 = vcvt.s32.f32 %v1065
        %v1096 = vcvt.s32.f32 %v1066
        %v1097 = vcvt.s32.f32 %v1067
        %v1098 = vcvt.s32.f32 %v1068
        %v1099 = vcvt.s32.f32 %v1069
        %v1100 = vcvt.s32.f32 %v1070
        %v1101 = vcvt.s32.f32 %v1071
        %v1102 = vcvt.s32.f32 %v1072
        %v1103 = vcvt.s32.f32 %v1073
        %v1104 = vcvt.s32.f32 %v1074
        %v1105 = vcvt.s32.f32 %v1075
        %v1106 = vcvt.s32.f32 %v1076
        %v1107 = vcvt.s32.f32 %v1077
        %v1108 = vcvt.s32.f32 %v1078
        %v1109 = vcvt.s32.f32 %v1079
        %v1110 = vcvt.s32.f32 %v1080
        %v1111 = vcvt.s32.f32 %v1081
        %v1143 = vunpack.c.l.s4 269488144
        %v1144 = vunpack.c.0.s8 %v1143
        %v1145 = vperm.slane %v1082, %v1144
        %v1147 = vunpack.c.l.s4 842150450
        %v1148 = vunpack.c.0.s8 %v1147
        %v1149 = vperm.slane %v1082, %v1148
        %v1151 = vunpack.c.l.s4 1414812756
        %v1152 = vunpack.c.0.s8 %v1151
        %v1153 = vperm.slane %v1082, %v1152
        %v1155 = vunpack.c.l.s4 1987475062
        %v1156 = vunpack.c.0.s8 %v1155
        %v1157 = vperm.slane %v1082, %v1156
        %v1159 = vunpack.c.l.s4 269488144
        %v1160 = vunpack.c.0.s8 %v1159
        %v1161 = vperm.slane %v1083, %v1160
        %v1163 = vunpack.c.l.s4 842150450
        %v1164 = vunpack.c.0.s8 %v1163
        %v1165 = vperm.slane %v1083, %v1164
        %v1167 = vunpack.c.l.s4 1414812756
        %v1168 = vunpack.c.0.s8 %v1167
        %v1169 = vperm.slane %v1083, %v1168
        %v1171 = vunpack.c.l.s4 1987475062
        %v1172 = vunpack.c.0.s8 %v1171
        %v1173 = vperm.slane %v1083, %v1172
        %v1175 = vunpack.c.l.s4 269488144
        %v1176 = vunpack.c.0.s8 %v1175
        %v1177 = vperm.slane %v1084, %v1176
        %v1179 = vunpack.c.l.s4 269488144
        %v1180 = vunpack.c.0.s8 %v1179
        %v1181 = vperm.slane %v1085, %v1180
        %v1183 = vunpack.c.l.s4 842150450
        %v1184 = vunpack.c.0.s8 %v1183
        %v1185 = vperm.slane %v1085, %v1184
        %v1187 = vunpack.c.l.s4 1414812756
        %v1188 = vunpack.c.0.s8 %v1187
        %v1189 = vperm.slane %v1085, %v1188
        %v1191 = vunpack.c.l.s4 1987475062
        %v1192 = vunpack.c.0.s8 %v1191
        %v1193 = vperm.slane %v1085, %v1192
        %v1195 = vunpack.c.l.s4 269488144
        %v1196 = vunpack.c.0.s8 %v1195
        %v1197 = vperm.slane %v1086, %v1196
        %v1199 = vunpack.c.l.s4 842150450
        %v1200 = vunpack.c.0.s8 %v1199
        %v1201 = vperm.slane %v1086, %v1200
        %v1203 = vunpack.c.l.s4 1414812756
        %v1204 = vunpack.c.0.s8 %v1203
        %v1205 = vperm.slane %v1086, %v1204
        %v1207 = vunpack.c.l.s4 1987475062
        %v1208 = vunpack.c.0.s8 %v1207
        %v1209 = vperm.slane %v1086, %v1208
        %v1211 = vunpack.c.l.s4 269488144
        %v1212 = vunpack.c.0.s8 %v1211
        %v1213 = vperm.slane %v1087, %v1212
        %v1215 = vunpack.c.l.s4 269488144
        %v1216 = vunpack.c.0.s8 %v1215
        %v1217 = vperm.slane %v1088, %v1216
        %v1219 = vunpack.c.l.s4 842150450
        %v1220 = vunpack.c.0.s8 %v1219
        %v1221 = vperm.slane %v1088, %v1220
        %v1223 = vunpack.c.l.s4 1414812756
        %v1224 = vunpack.c.0.s8 %v1223
        %v1225 = vperm.slane %v1088, %v1224
        %v1227 = vunpack.c.l.s4 1987475062
        %v1228 = vunpack.c.0.s8 %v1227
        %v1229 = vperm.slane %v1088, %v1228
        %v1231 = vunpack.c.l.s4 269488144
        %v1232 = vunpack.c.0.s8 %v1231
        %v1233 = vperm.slane %v1089, %v1232
        %v1235 = vunpack.c.l.s4 842150450
        %v1236 = vunpack.c.0.s8 %v1235
        %v1237 = vperm.slane %v1089, %v1236
        %v1239 = vunpack.c.l.s4 1414812756
        %v1240 = vunpack.c.0.s8 %v1239
        %v1241 = vperm.slane %v1089, %v1240
        %v1243 = vunpack.c.l.s4 1987475062
        %v1244 = vunpack.c.0.s8 %v1243
        %v1245 = vperm.slane %v1089, %v1244
        %v1247 = vunpack.c.l.s4 269488144
        %v1248 = vunpack.c.0.s8 %v1247
        %v1249 = vperm.slane %v1090, %v1248
        %v1251 = vunpack.c.l.s4 269488144
        %v1252 = vunpack.c.0.s8 %v1251
        %v1253 = vperm.slane %v1091, %v1252
        %v1255 = vunpack.c.l.s4 842150450
        %v1256 = vunpack.c.0.s8 %v1255
        %v1257 = vperm.slane %v1091, %v1256
        %v1259 = vunpack.c.l.s4 1414812756
        %v1260 = vunpack.c.0.s8 %v1259
        %v1261 = vperm.slane %v1091, %v1260
        %v1263 = vunpack.c.l.s4 1987475062
        %v1264 = vunpack.c.0.s8 %v1263
        %v1265 = vperm.slane %v1091, %v1264
        %v1267 = vunpack.c.l.s4 269488144
        %v1268 = vunpack.c.0.s8 %v1267
        %v1269 = vperm.slane %v1092, %v1268
        %v1271 = vunpack.c.l.s4 842150450
        %v1272 = vunpack.c.0.s8 %v1271
        %v1273 = vperm.slane %v1092, %v1272
        %v1275 = vunpack.c.l.s4 1414812756
        %v1276 = vunpack.c.0.s8 %v1275
        %v1277 = vperm.slane %v1092, %v1276
        %v1279 = vunpack.c.l.s4 1987475062
        %v1280 = vunpack.c.0.s8 %v1279
        %v1281 = vperm.slane %v1092, %v1280
        %v1283 = vunpack.c.l.s4 269488144
        %v1284 = vunpack.c.0.s8 %v1283
        %v1285 = vperm.slane %v1093, %v1284
        %v1287 = vunpack.c.l.s4 269488144
        %v1288 = vunpack.c.0.s8 %v1287
        %v1289 = vperm.slane %v1094, %v1288
        %v1291 = vunpack.c.l.s4 842150450
        %v1292 = vunpack.c.0.s8 %v1291
        %v1293 = vperm.slane %v1094, %v1292
        %v1295 = vunpack.c.l.s4 1414812756
        %v1296 = vunpack.c.0.s8 %v1295
        %v1297 = vperm.slane %v1094, %v1296
        %v1299 = vunpack.c.l.s4 1987475062
        %v1300 = vunpack.c.0.s8 %v1299
        %v1301 = vperm.slane %v1094, %v1300
        %v1303 = vunpack.c.l.s4 269488144
        %v1304 = vunpack.c.0.s8 %v1303
        %v1305 = vperm.slane %v1095, %v1304
        %v1307 = vunpack.c.l.s4 842150450
        %v1308 = vunpack.c.0.s8 %v1307
        %v1309 = vperm.slane %v1095, %v1308
        %v1311 = vunpack.c.l.s4 1414812756
        %v1312 = vunpack.c.0.s8 %v1311
        %v1313 = vperm.slane %v1095, %v1312
        %v1315 = vunpack.c.l.s4 1987475062
        %v1316 = vunpack.c.0.s8 %v1315
        %v1317 = vperm.slane %v1095, %v1316
        %v1319 = vunpack.c.l.s4 269488144
        %v1320 = vunpack.c.0.s8 %v1319
        %v1321 = vperm.slane %v1096, %v1320
        %v1323 = vunpack.c.l.s4 269488144
        %v1324 = vunpack.c.0.s8 %v1323
        %v1325 = vperm.slane %v1097, %v1324
        %v1327 = vunpack.c.l.s4 842150450
        %v1328 = vunpack.c.0.s8 %v1327
        %v1329 = vperm.slane %v1097, %v1328
        %v1331 = vunpack.c.l.s4 1414812756
        %v1332 = vunpack.c.0.s8 %v1331
        %v1333 = vperm.slane %v1097, %v1332
        %v1335 = vunpack.c.l.s4 1987475062
        %v1336 = vunpack.c.0.s8 %v1335
        %v1337 = vperm.slane %v1097, %v1336
        %v1339 = vunpack.c.l.s4 269488144
        %v1340 = vunpack.c.0.s8 %v1339
        %v1341 = vperm.slane %v1098, %v1340
        %v1343 = vunpack.c.l.s4 842150450
        %v1344 = vunpack.c.0.s8 %v1343
        %v1345 = vperm.slane %v1098, %v1344
        %v1347 = vunpack.c.l.s4 1414812756
        %v1348 = vunpack.c.0.s8 %v1347
        %v1349 = vperm.slane %v1098, %v1348
        %v1351 = vunpack.c.l.s4 1987475062
        %v1352 = vunpack.c.0.s8 %v1351
        %v1353 = vperm.slane %v1098, %v1352
        %v1355 = vunpack.c.l.s4 269488144
        %v1356 = vunpack.c.0.s8 %v1355
        %v1357 = vperm.slane %v1099, %v1356
        %v1359 = vunpack.c.l.s4 269488144
        %v1360 = vunpack.c.0.s8 %v1359
        %v1361 = vperm.slane %v1100, %v1360
        %v1363 = vunpack.c.l.s4 842150450
        %v1364 = vunpack.c.0.s8 %v1363
        %v1365 = vperm.slane %v1100, %v1364
        %v1367 = vunpack.c.l.s4 1414812756
        %v1368 = vunpack.c.0.s8 %v1367
        %v1369 = vperm.slane %v1100, %v1368
        %v1371 = vunpack.c.l.s4 1987475062
        %v1372 = vunpack.c.0.s8 %v1371
        %v1373 = vperm.slane %v1100, %v1372
        %v1375 = vunpack.c.l.s4 269488144
        %v1376 = vunpack.c.0.s8 %v1375
        %v1377 = vperm.slane %v1101, %v1376
        %v1379 = vunpack.c.l.s4 842150450
        %v1380 = vunpack.c.0.s8 %v1379
        %v1381 = vperm.slane %v1101, %v1380
        %v1383 = vunpack.c.l.s4 1414812756
        %v1384 = vunpack.c.0.s8 %v1383
        %v1385 = vperm.slane %v1101, %v1384
        %v1387 = vunpack.c.l.s4 1987475062
        %v1388 = vunpack.c.0.s8 %v1387
        %v1389 = vperm.slane %v1101, %v1388
        %v1391 = vunpack.c.l.s4 269488144
        %v1392 = vunpack.c.0.s8 %v1391
        %v1393 = vperm.slane %v1102, %v1392
        %v1395 = vunpack.c.l.s4 269488144
        %v1396 = vunpack.c.0.s8 %v1395
        %v1397 = vperm.slane %v1103, %v1396
        %v1399 = vunpack.c.l.s4 842150450
        %v1400 = vunpack.c.0.s8 %v1399
        %v1401 = vperm.slane %v1103, %v1400
        %v1403 = vunpack.c.l.s4 1414812756
        %v1404 = vunpack.c.0.s8 %v1403
        %v1405 = vperm.slane %v1103, %v1404
        %v1407 = vunpack.c.l.s4 1987475062
        %v1408 = vunpack.c.0.s8 %v1407
        %v1409 = vperm.slane %v1103, %v1408
        %v1411 = vunpack.c.l.s4 269488144
        %v1412 = vunpack.c.0.s8 %v1411
        %v1413 = vperm.slane %v1104, %v1412
        %v1415 = vunpack.c.l.s4 842150450
        %v1416 = vunpack.c.0.s8 %v1415
        %v1417 = vperm.slane %v1104, %v1416
        %v1419 = vunpack.c.l.s4 1414812756
        %v1420 = vunpack.c.0.s8 %v1419
        %v1421 = vperm.slane %v1104, %v1420
        %v1423 = vunpack.c.l.s4 1987475062
        %v1424 = vunpack.c.0.s8 %v1423
        %v1425 = vperm.slane %v1104, %v1424
        %v1427 = vunpack.c.l.s4 269488144
        %v1428 = vunpack.c.0.s8 %v1427
        %v1429 = vperm.slane %v1105, %v1428
        %v1431 = vunpack.c.l.s4 269488144
        %v1432 = vunpack.c.0.s8 %v1431
        %v1433 = vperm.slane %v1106, %v1432
        %v1435 = vunpack.c.l.s4 842150450
        %v1436 = vunpack.c.0.s8 %v1435
        %v1437 = vperm.slane %v1106, %v1436
        %v1439 = vunpack.c.l.s4 1414812756
        %v1440 = vunpack.c.0.s8 %v1439
        %v1441 = vperm.slane %v1106, %v1440
        %v1443 = vunpack.c.l.s4 1987475062
        %v1444 = vunpack.c.0.s8 %v1443
        %v1445 = vperm.slane %v1106, %v1444
        %v1447 = vunpack.c.l.s4 269488144
        %v1448 = vunpack.c.0.s8 %v1447
        %v1449 = vperm.slane %v1107, %v1448
        %v1451 = vunpack.c.l.s4 842150450
        %v1452 = vunpack.c.0.s8 %v1451
        %v1453 = vperm.slane %v1107, %v1452
        %v1455 = vunpack.c.l.s4 1414812756
        %v1456 = vunpack.c.0.s8 %v1455
        %v1457 = vperm.slane %v1107, %v1456
        %v1459 = vunpack.c.l.s4 1987475062
        %v1460 = vunpack.c.0.s8 %v1459
        %v1461 = vperm.slane %v1107, %v1460
        %v1463 = vunpack.c.l.s4 269488144
        %v1464 = vunpack.c.0.s8 %v1463
        %v1465 = vperm.slane %v1108, %v1464
        %v1467 = vunpack.c.l.s4 269488144
        %v1468 = vunpack.c.0.s8 %v1467
        %v1469 = vperm.slane %v1109, %v1468
        %v1471 = vunpack.c.l.s4 842150450
        %v1472 = vunpack.c.0.s8 %v1471
        %v1473 = vperm.slane %v1109, %v1472
        %v1475 = vunpack.c.l.s4 1414812756
        %v1476 = vunpack.c.0.s8 %v1475
        %v1477 = vperm.slane %v1109, %v1476
        %v1479 = vunpack.c.l.s4 1987475062
        %v1480 = vunpack.c.0.s8 %v1479
        %v1481 = vperm.slane %v1109, %v1480
        %v1483 = vunpack.c.l.s4 269488144
        %v1484 = vunpack.c.0.s8 %v1483
        %v1485 = vperm.slane %v1110, %v1484
        %v1487 = vunpack.c.l.s4 842150450
        %v1488 = vunpack.c.0.s8 %v1487
        %v1489 = vperm.slane %v1110, %v1488
        %v1491 = vunpack.c.l.s4 1414812756
        %v1492 = vunpack.c.0.s8 %v1491
        %v1493 = vperm.slane %v1110, %v1492
        %v1495 = vunpack.c.l.s4 1987475062
        %v1496 = vunpack.c.0.s8 %v1495
        %v1497 = vperm.slane %v1110, %v1496
        %v1499 = vunpack.c.l.s4 269488144
        %v1500 = vunpack.c.0.s8 %v1499
        %v1501 = vperm.slane %v1111, %v1500
        %v1592 = vmul.f32 %v726, %v1145
        %v1593 = vmul.f32 %v772, %v1149
        %v1594 = vmul.f32 %v773, %v1153
        %v1595 = vmul.f32 %v774, %v1157
        %v1596 = vmul.f32 %v727, %v1161
        %v1597 = vmul.f32 %v775, %v1165
        %v1598 = vmul.f32 %v776, %v1169
        %v1599 = vmul.f32 %v777, %v1173
        %v1600 = vmul.f32 %v728, %v1177
        %v1601 = vmul.f32 %v778, %v1181
        %v1602 = vmul.f32 %v779, %v1185
        %v1603 = vmul.f32 %v780, %v1189
        %v1604 = vmul.f32 %v729, %v1193
        %v1605 = vmul.f32 %v781, %v1197
        %v1606 = vmul.f32 %v782, %v1201
        %v1607 = vmul.f32 %v783, %v1205
        %v1608 = vmul.f32 %v730, %v1209
        %v1609 = vmul.f32 %v784, %v1213
        %v1610 = vmul.f32 %v785, %v1217
        %v1611 = vmul.f32 %v786, %v1221
        %v1612 = vmul.f32 %v731, %v1225
        %v1613 = vmul.f32 %v787, %v1229
        %v1614 = vmul.f32 %v788, %v1233
        %v1615 = vmul.f32 %v789, %v1237
        %v1616 = vmul.f32 %v732, %v1241
        %v1617 = vmul.f32 %v790, %v1245
        %v1618 = vmul.f32 %v791, %v1249
        %v1619 = vmul.f32 %v792, %v1253
        %v1620 = vmul.f32 %v733, %v1257
        %v1621 = vmul.f32 %v793, %v1261
        %v1622 = vmul.f32 %v794, %v1265
        %v1623 = vmul.f32 %v795, %v1269
        %v1624 = vmul.f32 %v734, %v1273
        %v1625 = vmul.f32 %v796, %v1277
        %v1626 = vmul.f32 %v797, %v1281
        %v1627 = vmul.f32 %v798, %v1285
        %v1628 = vmul.f32 %v735, %v1289
        %v1629 = vmul.f32 %v799, %v1293
        %v1630 = vmul.f32 %v800, %v1297
        %v1631 = vmul.f32 %v801, %v1301
        %v1632 = vmul.f32 %v736, %v1305
        %v1633 = vmul.f32 %v802, %v1309
        %v1634 = vmul.f32 %v803, %v1313
        %v1635 = vmul.f32 %v804, %v1317
        %v1636 = vmul.f32 %v737, %v1321
        %v1637 = vmul.f32 %v805, %v1325
        %v1638 = vmul.f32 %v806, %v1329
        %v1639 = vmul.f32 %v807, %v1333
        %v1640 = vmul.f32 %v738, %v1337
        %v1641 = vmul.f32 %v808, %v1341
        %v1642 = vmul.f32 %v809, %v1345
        %v1643 = vmul.f32 %v810, %v1349
        %v1644 = vmul.f32 %v739, %v1353
        %v1645 = vmul.f32 %v811, %v1357
        %v1646 = vmul.f32 %v812, %v1361
        %v1647 = vmul.f32 %v813, %v1365
        %v1648 = vmul.f32 %v740, %v1369
        %v1649 = vmul.f32 %v814, %v1373
        %v1650 = vmul.f32 %v815, %v1377
        %v1651 = vmul.f32 %v816, %v1381
        %v1652 = vmul.f32 %v741, %v1385
        %v1653 = vmul.f32 %v817, %v1389
        %v1654 = vmul.f32 %v818, %v1393
        %v1655 = vmul.f32 %v819, %v1397
        %v1656 = vmul.f32 %v742, %v1401
        %v1657 = vmul.f32 %v820, %v1405
        %v1658 = vmul.f32 %v821, %v1409
        %v1659 = vmul.f32 %v822, %v1413
        %v1660 = vmul.f32 %v743, %v1417
        %v1661 = vmul.f32 %v823, %v1421
        %v1662 = vmul.f32 %v824, %v1425
        %v1663 = vmul.f32 %v825, %v1429
        %v1664 = vmul.f32 %v744, %v1433
        %v1665 = vmul.f32 %v826, %v1437
        %v1666 = vmul.f32 %v827, %v1441
        %v1667 = vmul.f32 %v828, %v1445
        %v1668 = vmul.f32 %v745, %v1449
        %v1669 = vmul.f32 %v829, %v1453
        %v1670 = vmul.f32 %v830, %v1457
        %v1671 = vmul.f32 %v831, %v1461
        %v1672 = vmul.f32 %v746, %v1465
        %v1673 = vmul.f32 %v832, %v1469
        %v1674 = vmul.f32 %v833, %v1473
        %v1675 = vmul.f32 %v834, %v1477
        %v1676 = vmul.f32 %v747, %v1481
        %v1677 = vmul.f32 %v835, %v1485
        %v1678 = vmul.f32 %v836, %v1489
        %v1679 = vmul.f32 %v837, %v1493
        %v1680 = vmul.f32 %v748, %v1497
        %v1681 = vmul.f32 %v838, %v1501
        %v1682 = vld [vmem:[%s3] sm:$0x1]
        %v1683 = vperm.slane %v1682, 0
        %v1685 = vrot.slane %v1683, 2
        %v1686 = vrot.slane %v1683, 4
        %v1687 = vrot.slane %v1683, 6
        %v1691 = vmul.f32 %v1592, %v1683
        %v1692 = vmul.f32 %v1593, %v1685
        %v1693 = vmul.f32 %v1594, %v1686
        %v1694 = vmul.f32 %v1595, %v1687
        %v1695 = vmul.f32 %v1596, %v1683
        %v1696 = vmul.f32 %v1597, %v1685
        %v1697 = vmul.f32 %v1598, %v1686
        %v1698 = vmul.f32 %v1599, %v1687
        %v1699 = vmul.f32 %v1601, %v1683
        %v1700 = vmul.f32 %v1602, %v1685
        %v1701 = vmul.f32 %v1603, %v1686
        %v1702 = vmul.f32 %v1604, %v1687
        %v1703 = vmul.f32 %v1605, %v1683
        %v1704 = vmul.f32 %v1606, %v1685
        %v1705 = vmul.f32 %v1607, %v1686
        %v1706 = vmul.f32 %v1608, %v1687
        %v1707 = vmul.f32 %v1610, %v1683
        %v1708 = vmul.f32 %v1611, %v1685
        %v1709 = vmul.f32 %v1612, %v1686
        %v1710 = vmul.f32 %v1613, %v1687
        %v1711 = vmul.f32 %v1614, %v1683
        %v1712 = vmul.f32 %v1615, %v1685
        %v1713 = vmul.f32 %v1616, %v1686
        %v1714 = vmul.f32 %v1617, %v1687
        %v1715 = vmul.f32 %v1619, %v1683
        %v1716 = vmul.f32 %v1620, %v1685
        %v1717 = vmul.f32 %v1621, %v1686
        %v1718 = vmul.f32 %v1622, %v1687
        %v1719 = vmul.f32 %v1623, %v1683
        %v1720 = vmul.f32 %v1624, %v1685
        %v1721 = vmul.f32 %v1625, %v1686
        %v1722 = vmul.f32 %v1626, %v1687
        %v1723 = vmul.f32 %v1628, %v1683
        %v1724 = vmul.f32 %v1629, %v1685
        %v1725 = vmul.f32 %v1630, %v1686
        %v1726 = vmul.f32 %v1631, %v1687
        %v1727 = vmul.f32 %v1632, %v1683
        %v1728 = vmul.f32 %v1633, %v1685
        %v1729 = vmul.f32 %v1634, %v1686
        %v1730 = vmul.f32 %v1635, %v1687
        %v1731 = vmul.f32 %v1637, %v1683
        %v1732 = vmul.f32 %v1638, %v1685
        %v1733 = vmul.f32 %v1639, %v1686
        %v1734 = vmul.f32 %v1640, %v1687
        %v1735 = vmul.f32 %v1641, %v1683
        %v1736 = vmul.f32 %v1642, %v1685
        %v1737 = vmul.f32 %v1643, %v1686
        %v1738 = vmul.f32 %v1644, %v1687
        %v1739 = vmul.f32 %v1646, %v1683
        %v1740 = vmul.f32 %v1647, %v1685
        %v1741 = vmul.f32 %v1648, %v1686
        %v1742 = vmul.f32 %v1649, %v1687
        %v1743 = vmul.f32 %v1650, %v1683
        %v1744 = vmul.f32 %v1651, %v1685
        %v1745 = vmul.f32 %v1652, %v1686
        %v1746 = vmul.f32 %v1653, %v1687
        %v1747 = vmul.f32 %v1655, %v1683
        %v1748 = vmul.f32 %v1656, %v1685
        %v1749 = vmul.f32 %v1657, %v1686
        %v1750 = vmul.f32 %v1658, %v1687
        %v1751 = vmul.f32 %v1659, %v1683
        %v1752 = vmul.f32 %v1660, %v1685
        %v1753 = vmul.f32 %v1661, %v1686
        %v1754 = vmul.f32 %v1662, %v1687
        %v1755 = vadd.f32 %v1691, 0.0
        %v1756 = vadd.f32 %v1692, 0.0
        %v1757 = vadd.f32 %v1693, 0.0
        %v1758 = vadd.f32 %v1694, 0.0
        %v1759 = vadd.f32 %v1695, 0.0
        %v1760 = vadd.f32 %v1696, 0.0
        %v1761 = vadd.f32 %v1697, 0.0
        %v1762 = vadd.f32 %v1698, 0.0
        %v1763 = vadd.f32 %v1699, 0.0
        %v1764 = vadd.f32 %v1700, 0.0
        %v1765 = vadd.f32 %v1701, 0.0
        %v1766 = vadd.f32 %v1702, 0.0
        %v1767 = vadd.f32 %v1703, 0.0
        %v1768 = vadd.f32 %v1704, 0.0
        %v1769 = vadd.f32 %v1705, 0.0
        %v1770 = vadd.f32 %v1706, 0.0
        %v1771 = vadd.f32 %v1707, 0.0
        %v1772 = vadd.f32 %v1708, 0.0
        %v1773 = vadd.f32 %v1709, 0.0
        %v1774 = vadd.f32 %v1710, 0.0
        %v1775 = vadd.f32 %v1711, 0.0
        %v1776 = vadd.f32 %v1712, 0.0
        %v1777 = vadd.f32 %v1713, 0.0
        %v1778 = vadd.f32 %v1714, 0.0
        %v1779 = vadd.f32 %v1715, 0.0
        %v1780 = vadd.f32 %v1716, 0.0
        %v1781 = vadd.f32 %v1717, 0.0
        %v1782 = vadd.f32 %v1718, 0.0
        %v1783 = vadd.f32 %v1719, 0.0
        %v1784 = vadd.f32 %v1720, 0.0
        %v1785 = vadd.f32 %v1721, 0.0
        %v1786 = vadd.f32 %v1722, 0.0
        %v1787 = vadd.f32 %v1723, 0.0
        %v1788 = vadd.f32 %v1724, 0.0
        %v1789 = vadd.f32 %v1725, 0.0
        %v1790 = vadd.f32 %v1726, 0.0
        %v1791 = vadd.f32 %v1727, 0.0
        %v1792 = vadd.f32 %v1728, 0.0
        %v1793 = vadd.f32 %v1729, 0.0
        %v1794 = vadd.f32 %v1730, 0.0
        %v1795 = vadd.f32 %v1731, 0.0
        %v1796 = vadd.f32 %v1732, 0.0
        %v1797 = vadd.f32 %v1733, 0.0
        %v1798 = vadd.f32 %v1734, 0.0
        %v1799 = vadd.f32 %v1735, 0.0
        %v1800 = vadd.f32 %v1736, 0.0
        %v1801 = vadd.f32 %v1737, 0.0
        %v1802 = vadd.f32 %v1738, 0.0
        %v1803 = vadd.f32 %v1739, 0.0
        %v1804 = vadd.f32 %v1740, 0.0
        %v1805 = vadd.f32 %v1741, 0.0
        %v1806 = vadd.f32 %v1742, 0.0
        %v1807 = vadd.f32 %v1743, 0.0
        %v1808 = vadd.f32 %v1744, 0.0
        %v1809 = vadd.f32 %v1745, 0.0
        %v1810 = vadd.f32 %v1746, 0.0
        %v1811 = vadd.f32 %v1747, 0.0
        %v1812 = vadd.f32 %v1748, 0.0
        %v1813 = vadd.f32 %v1749, 0.0
        %v1814 = vadd.f32 %v1750, 0.0
        %v1815 = vadd.f32 %v1751, 0.0
        %v1816 = vadd.f32 %v1752, 0.0
        %v1817 = vadd.f32 %v1753, 0.0
        %v1818 = vadd.f32 %v1754, 0.0
        %v1819 = vld [vmem:[%s3 + $0x1] sm:$0x1]
        %v1820 = vperm.slane %v1819, 0
        %v1822 = vrot.slane %v1820, 2
        %v1823 = vrot.slane %v1820, 4
        %v1824 = vrot.slane %v1820, 6
        %vm1825 = vcmask 1040384
        %vm1826 = vcmask 1042434
        %vm1827 = vmor %vm1825, %vm1826
        %vm1828 = vcmask 1044484
        %vm1829 = vmor %vm1827, %vm1828
        %vm1830 = vcmask 1046534
        %vm1831 = vmor %vm1829, %vm1830
        %v1832 = vrot.slane %v1820, 7
        %v1833 = vrot.slane %v1832, 2
        %v1834 = vrot.slane %v1822, 7
        %v1835 = vsel %vm1831, %v1833, %v1834
        %v1836 = vrot.slane %v1834, 2
        %v1837 = vrot.slane %v1823, 7
        %v1838 = vsel %vm1831, %v1836, %v1837
        %v1839 = vrot.slane %v1837, 2
        %v1840 = vrot.slane %v1824, 7
        %v1841 = vsel %vm1831, %v1839, %v1840
        %v1842 = vrot.slane %v1840, 2
        %v1843 = vsel %vm1831, %v1842, %v1832
        %v1850 = vmul.f32 %v1592, %v1832
        %v1851 = vmul.f32 %v1593, %v1835
        %v1852 = vmul.f32 %v1594, %v1838
        %v1853 = vmul.f32 %v1595, %v1841
        %v1854 = vmul.f32 %v1596, %v1843
        %v1855 = vmul.f32 %v1597, %v1835
        %v1856 = vmul.f32 %v1598, %v1838
        %v1857 = vmul.f32 %v1599, %v1841
        %v1858 = vmul.f32 %v1600, %v1842
        %v1859 = vmul.f32 %v1601, %v1832
        %v1860 = vmul.f32 %v1602, %v1835
        %v1861 = vmul.f32 %v1603, %v1838
        %v1862 = vmul.f32 %v1604, %v1841
        %v1863 = vmul.f32 %v1605, %v1843
        %v1864 = vmul.f32 %v1606, %v1835
        %v1865 = vmul.f32 %v1607, %v1838
        %v1866 = vmul.f32 %v1608, %v1841
        %v1867 = vmul.f32 %v1609, %v1842
        %v1868 = vmul.f32 %v1610, %v1832
        %v1869 = vmul.f32 %v1611, %v1835
        %v1870 = vmul.f32 %v1612, %v1838
        %v1871 = vmul.f32 %v1613, %v1841
        %v1872 = vmul.f32 %v1614, %v1843
        %v1873 = vmul.f32 %v1615, %v1835
        %v1874 = vmul.f32 %v1616, %v1838
        %v1875 = vmul.f32 %v1617, %v1841
        %v1876 = vmul.f32 %v1618, %v1842
        %v1877 = vmul.f32 %v1619, %v1832
        %v1878 = vmul.f32 %v1620, %v1835
        %v1879 = vmul.f32 %v1621, %v1838
        %v1880 = vmul.f32 %v1622, %v1841
        %v1881 = vmul.f32 %v1623, %v1843
        %v1882 = vmul.f32 %v1624, %v1835
        %v1883 = vmul.f32 %v1625, %v1838
        %v1884 = vmul.f32 %v1626, %v1841
        %v1885 = vmul.f32 %v1627, %v1842
        %v1886 = vmul.f32 %v1628, %v1832
        %v1887 = vmul.f32 %v1629, %v1835
        %v1888 = vmul.f32 %v1630, %v1838
        %v1889 = vmul.f32 %v1631, %v1841
        %v1890 = vmul.f32 %v1632, %v1843
        %v1891 = vmul.f32 %v1633, %v1835
        %v1892 = vmul.f32 %v1634, %v1838
        %v1893 = vmul.f32 %v1635, %v1841
        %v1894 = vmul.f32 %v1636, %v1842
        %v1895 = vmul.f32 %v1637, %v1832
        %v1896 = vmul.f32 %v1638, %v1835
        %v1897 = vmul.f32 %v1639, %v1838
        %v1898 = vmul.f32 %v1640, %v1841
        %v1899 = vmul.f32 %v1641, %v1843
        %v1900 = vmul.f32 %v1642, %v1835
        %v1901 = vmul.f32 %v1643, %v1838
        %v1902 = vmul.f32 %v1644, %v1841
        %v1903 = vmul.f32 %v1645, %v1842
        %v1904 = vmul.f32 %v1646, %v1832
        %v1905 = vmul.f32 %v1647, %v1835
        %v1906 = vmul.f32 %v1648, %v1838
        %v1907 = vmul.f32 %v1649, %v1841
        %v1908 = vmul.f32 %v1650, %v1843
        %v1909 = vmul.f32 %v1651, %v1835
        %v1910 = vmul.f32 %v1652, %v1838
        %v1911 = vmul.f32 %v1653, %v1841
        %v1912 = vmul.f32 %v1654, %v1842
        %v1913 = vmul.f32 %v1655, %v1832
        %v1914 = vmul.f32 %v1656, %v1835
        %v1915 = vmul.f32 %v1657, %v1838
        %v1916 = vmul.f32 %v1658, %v1841
        %v1917 = vmul.f32 %v1659, %v1843
        %v1918 = vmul.f32 %v1660, %v1835
        %v1919 = vmul.f32 %v1661, %v1838
        %v1920 = vmul.f32 %v1662, %v1841
        %v1921 = vmul.f32 %v1663, %v1842
        %v1994 = vrot.slane %v1850, 7
        %v1995 = vrot.slane %v1994, 2
        %v1996 = vrot.slane %v1851, 7
        %v1997 = vsel %vm1831, %v1995, %v1996
        %v1998 = vrot.slane %v1996, 2
        %v1999 = vrot.slane %v1852, 7
        %v2000 = vsel %vm1831, %v1998, %v1999
        %v2001 = vrot.slane %v1999, 2
        %v2002 = vrot.slane %v1853, 7
        %v2003 = vsel %vm1831, %v2001, %v2002
        %v2004 = vrot.slane %v2002, 2
        %v2005 = vrot.slane %v1854, 7
        %v2006 = vsel %vm1831, %v2004, %v2005
        %v2007 = vrot.slane %v2005, 2
        %v2008 = vrot.slane %v1855, 7
        %v2009 = vsel %vm1831, %v2007, %v2008
        %v2010 = vrot.slane %v2008, 2
        %v2011 = vrot.slane %v1856, 7
        %v2012 = vsel %vm1831, %v2010, %v2011
        %v2013 = vrot.slane %v2011, 2
        %v2014 = vrot.slane %v1857, 7
        %v2015 = vsel %vm1831, %v2013, %v2014
        %v2016 = vrot.slane %v2014, 2
        %v2017 = vrot.slane %v1858, 7
        %v2018 = vsel %vm1831, %v2016, %v2017
        %v2019 = vrot.slane %v1859, 7
        %v2020 = vrot.slane %v2019, 2
        %v2021 = vrot.slane %v1860, 7
        %v2022 = vsel %vm1831, %v2020, %v2021
        %v2023 = vrot.slane %v2021, 2
        %v2024 = vrot.slane %v1861, 7
        %v2025 = vsel %vm1831, %v2023, %v2024
        %v2026 = vrot.slane %v2024, 2
        %v2027 = vrot.slane %v1862, 7
        %v2028 = vsel %vm1831, %v2026, %v2027
        %v2029 = vrot.slane %v2027, 2
        %v2030 = vrot.slane %v1863, 7
        %v2031 = vsel %vm1831, %v2029, %v2030
        %v2032 = vrot.slane %v2030, 2
        %v2033 = vrot.slane %v1864, 7
        %v2034 = vsel %vm1831, %v2032, %v2033
        %v2035 = vrot.slane %v2033, 2
        %v2036 = vrot.slane %v1865, 7
        %v2037 = vsel %vm1831, %v2035, %v2036
        %v2038 = vrot.slane %v2036, 2
        %v2039 = vrot.slane %v1866, 7
        %v2040 = vsel %vm1831, %v2038, %v2039
        %v2041 = vrot.slane %v2039, 2
        %v2042 = vrot.slane %v1867, 7
        %v2043 = vsel %vm1831, %v2041, %v2042
        %v2044 = vrot.slane %v1868, 7
        %v2045 = vrot.slane %v2044, 2
        %v2046 = vrot.slane %v1869, 7
        %v2047 = vsel %vm1831, %v2045, %v2046
        %v2048 = vrot.slane %v2046, 2
        %v2049 = vrot.slane %v1870, 7
        %v2050 = vsel %vm1831, %v2048, %v2049
        %v2051 = vrot.slane %v2049, 2
        %v2052 = vrot.slane %v1871, 7
        %v2053 = vsel %vm1831, %v2051, %v2052
        %v2054 = vrot.slane %v2052, 2
        %v2055 = vrot.slane %v1872, 7
        %v2056 = vsel %vm1831, %v2054, %v2055
        %v2057 = vrot.slane %v2055, 2
        %v2058 = vrot.slane %v1873, 7
        %v2059 = vsel %vm1831, %v2057, %v2058
        %v2060 = vrot.slane %v2058, 2
        %v2061 = vrot.slane %v1874, 7
        %v2062 = vsel %vm1831, %v2060, %v2061
        %v2063 = vrot.slane %v2061, 2
        %v2064 = vrot.slane %v1875, 7
        %v2065 = vsel %vm1831, %v2063, %v2064
        %v2066 = vrot.slane %v2064, 2
        %v2067 = vrot.slane %v1876, 7
        %v2068 = vsel %vm1831, %v2066, %v2067
        %v2069 = vrot.slane %v1877, 7
        %v2070 = vrot.slane %v2069, 2
        %v2071 = vrot.slane %v1878, 7
        %v2072 = vsel %vm1831, %v2070, %v2071
        %v2073 = vrot.slane %v2071, 2
        %v2074 = vrot.slane %v1879, 7
        %v2075 = vsel %vm1831, %v2073, %v2074
        %v2076 = vrot.slane %v2074, 2
        %v2077 = vrot.slane %v1880, 7
        %v2078 = vsel %vm1831, %v2076, %v2077
        %v2079 = vrot.slane %v2077, 2
        %v2080 = vrot.slane %v1881, 7
        %v2081 = vsel %vm1831, %v2079, %v2080
        %v2082 = vrot.slane %v2080, 2
        %v2083 = vrot.slane %v1882, 7
        %v2084 = vsel %vm1831, %v2082, %v2083
        %v2085 = vrot.slane %v2083, 2
        %v2086 = vrot.slane %v1883, 7
        %v2087 = vsel %vm1831, %v2085, %v2086
        %v2088 = vrot.slane %v2086, 2
        %v2089 = vrot.slane %v1884, 7
        %v2090 = vsel %vm1831, %v2088, %v2089
        %v2091 = vrot.slane %v2089, 2
        %v2092 = vrot.slane %v1885, 7
        %v2093 = vsel %vm1831, %v2091, %v2092
        %v2094 = vrot.slane %v1886, 7
        %v2095 = vrot.slane %v2094, 2
        %v2096 = vrot.slane %v1887, 7
        %v2097 = vsel %vm1831, %v2095, %v2096
        %v2098 = vrot.slane %v2096, 2
        %v2099 = vrot.slane %v1888, 7
        %v2100 = vsel %vm1831, %v2098, %v2099
        %v2101 = vrot.slane %v2099, 2
        %v2102 = vrot.slane %v1889, 7
        %v2103 = vsel %vm1831, %v2101, %v2102
        %v2104 = vrot.slane %v2102, 2
        %v2105 = vrot.slane %v1890, 7
        %v2106 = vsel %vm1831, %v2104, %v2105
        %v2107 = vrot.slane %v2105, 2
        %v2108 = vrot.slane %v1891, 7
        %v2109 = vsel %vm1831, %v2107, %v2108
        %v2110 = vrot.slane %v2108, 2
        %v2111 = vrot.slane %v1892, 7
        %v2112 = vsel %vm1831, %v2110, %v2111
        %v2113 = vrot.slane %v2111, 2
        %v2114 = vrot.slane %v1893, 7
        %v2115 = vsel %vm1831, %v2113, %v2114
        %v2116 = vrot.slane %v2114, 2
        %v2117 = vrot.slane %v1894, 7
        %v2118 = vsel %vm1831, %v2116, %v2117
        %v2119 = vrot.slane %v1895, 7
        %v2120 = vrot.slane %v2119, 2
        %v2121 = vrot.slane %v1896, 7
        %v2122 = vsel %vm1831, %v2120, %v2121
        %v2123 = vrot.slane %v2121, 2
        %v2124 = vrot.slane %v1897, 7
        %v2125 = vsel %vm1831, %v2123, %v2124
        %v2126 = vrot.slane %v2124, 2
        %v2127 = vrot.slane %v1898, 7
        %v2128 = vsel %vm1831, %v2126, %v2127
        %v2129 = vrot.slane %v2127, 2
        %v2130 = vrot.slane %v1899, 7
        %v2131 = vsel %vm1831, %v2129, %v2130
        %v2132 = vrot.slane %v2130, 2
        %v2133 = vrot.slane %v1900, 7
        %v2134 = vsel %vm1831, %v2132, %v2133
        %v2135 = vrot.slane %v2133, 2
        %v2136 = vrot.slane %v1901, 7
        %v2137 = vsel %vm1831, %v2135, %v2136
        %v2138 = vrot.slane %v2136, 2
        %v2139 = vrot.slane %v1902, 7
        %v2140 = vsel %vm1831, %v2138, %v2139
        %v2141 = vrot.slane %v2139, 2
        %v2142 = vrot.slane %v1903, 7
        %v2143 = vsel %vm1831, %v2141, %v2142
        %v2144 = vrot.slane %v1904, 7
        %v2145 = vrot.slane %v2144, 2
        %v2146 = vrot.slane %v1905, 7
        %v2147 = vsel %vm1831, %v2145, %v2146
        %v2148 = vrot.slane %v2146, 2
        %v2149 = vrot.slane %v1906, 7
        %v2150 = vsel %vm1831, %v2148, %v2149
        %v2151 = vrot.slane %v2149, 2
        %v2152 = vrot.slane %v1907, 7
        %v2153 = vsel %vm1831, %v2151, %v2152
        %v2154 = vrot.slane %v2152, 2
        %v2155 = vrot.slane %v1908, 7
        %v2156 = vsel %vm1831, %v2154, %v2155
        %v2157 = vrot.slane %v2155, 2
        %v2158 = vrot.slane %v1909, 7
        %v2159 = vsel %vm1831, %v2157, %v2158
        %v2160 = vrot.slane %v2158, 2
        %v2161 = vrot.slane %v1910, 7
        %v2162 = vsel %vm1831, %v2160, %v2161
        %v2163 = vrot.slane %v2161, 2
        %v2164 = vrot.slane %v1911, 7
        %v2165 = vsel %vm1831, %v2163, %v2164
        %v2166 = vrot.slane %v2164, 2
        %v2167 = vrot.slane %v1912, 7
        %v2168 = vsel %vm1831, %v2166, %v2167
        %v2169 = vrot.slane %v1913, 7
        %v2170 = vrot.slane %v2169, 2
        %v2171 = vrot.slane %v1914, 7
        %v2172 = vsel %vm1831, %v2170, %v2171
        %v2173 = vrot.slane %v2171, 2
        %v2174 = vrot.slane %v1915, 7
        %v2175 = vsel %vm1831, %v2173, %v2174
        %v2176 = vrot.slane %v2174, 2
        %v2177 = vrot.slane %v1916, 7
        %v2178 = vsel %vm1831, %v2176, %v2177
        %v2179 = vrot.slane %v2177, 2
        %v2180 = vrot.slane %v1917, 7
        %v2181 = vsel %vm1831, %v2179, %v2180
        %v2182 = vrot.slane %v2180, 2
        %v2183 = vrot.slane %v1918, 7
        %v2184 = vsel %vm1831, %v2182, %v2183
        %v2185 = vrot.slane %v2183, 2
        %v2186 = vrot.slane %v1919, 7
        %v2187 = vsel %vm1831, %v2185, %v2186
        %v2188 = vrot.slane %v2186, 2
        %v2189 = vrot.slane %v1920, 7
        %v2190 = vsel %vm1831, %v2188, %v2189
        %v2191 = vrot.slane %v2189, 2
        %v2192 = vrot.slane %v1921, 7
        %v2193 = vsel %vm1831, %v2191, %v2192
        %v2258 = vadd.f32 %v1755, %v1997
        %v2259 = vadd.f32 %v1756, %v2000
        %v2260 = vadd.f32 %v1757, %v2003
        %v2261 = vadd.f32 %v1758, %v2006
        %v2262 = vadd.f32 %v1759, %v2009
        %v2263 = vadd.f32 %v1760, %v2012
        %v2264 = vadd.f32 %v1761, %v2015
        %v2265 = vadd.f32 %v1762, %v2018
        %v2266 = vadd.f32 %v1763, %v2022
        %v2267 = vadd.f32 %v1764, %v2025
        %v2268 = vadd.f32 %v1765, %v2028
        %v2269 = vadd.f32 %v1766, %v2031
        %v2270 = vadd.f32 %v1767, %v2034
        %v2271 = vadd.f32 %v1768, %v2037
        %v2272 = vadd.f32 %v1769, %v2040
        %v2273 = vadd.f32 %v1770, %v2043
        %v2274 = vadd.f32 %v1771, %v2047
        %v2275 = vadd.f32 %v1772, %v2050
        %v2276 = vadd.f32 %v1773, %v2053
        %v2277 = vadd.f32 %v1774, %v2056
        %v2278 = vadd.f32 %v1775, %v2059
        %v2279 = vadd.f32 %v1776, %v2062
        %v2280 = vadd.f32 %v1777, %v2065
        %v2281 = vadd.f32 %v1778, %v2068
        %v2282 = vadd.f32 %v1779, %v2072
        %v2283 = vadd.f32 %v1780, %v2075
        %v2284 = vadd.f32 %v1781, %v2078
        %v2285 = vadd.f32 %v1782, %v2081
        %v2286 = vadd.f32 %v1783, %v2084
        %v2287 = vadd.f32 %v1784, %v2087
        %v2288 = vadd.f32 %v1785, %v2090
        %v2289 = vadd.f32 %v1786, %v2093
        %v2290 = vadd.f32 %v1787, %v2097
        %v2291 = vadd.f32 %v1788, %v2100
        %v2292 = vadd.f32 %v1789, %v2103
        %v2293 = vadd.f32 %v1790, %v2106
        %v2294 = vadd.f32 %v1791, %v2109
        %v2295 = vadd.f32 %v1792, %v2112
        %v2296 = vadd.f32 %v1793, %v2115
        %v2297 = vadd.f32 %v1794, %v2118
        %v2298 = vadd.f32 %v1795, %v2122
        %v2299 = vadd.f32 %v1796, %v2125
        %v2300 = vadd.f32 %v1797, %v2128
        %v2301 = vadd.f32 %v1798, %v2131
        %v2302 = vadd.f32 %v1799, %v2134
        %v2303 = vadd.f32 %v1800, %v2137
        %v2304 = vadd.f32 %v1801, %v2140
        %v2305 = vadd.f32 %v1802, %v2143
        %v2306 = vadd.f32 %v1803, %v2147
        %v2307 = vadd.f32 %v1804, %v2150
        %v2308 = vadd.f32 %v1805, %v2153
        %v2309 = vadd.f32 %v1806, %v2156
        %v2310 = vadd.f32 %v1807, %v2159
        %v2311 = vadd.f32 %v1808, %v2162
        %v2312 = vadd.f32 %v1809, %v2165
        %v2313 = vadd.f32 %v1810, %v2168
        %v2314 = vadd.f32 %v1811, %v2172
        %v2315 = vadd.f32 %v1812, %v2175
        %v2316 = vadd.f32 %v1813, %v2178
        %v2317 = vadd.f32 %v1814, %v2181
        %v2318 = vadd.f32 %v1815, %v2184
        %v2319 = vadd.f32 %v1816, %v2187
        %v2320 = vadd.f32 %v1817, %v2190
        %v2321 = vadd.f32 %v1818, %v2193
        %v2322 = vld [vmem:[%s3 + $0x2] sm:$0x1]
        %v2323 = vperm.slane %v2322, 0
        %v2325 = vrot.slane %v2323, 2
        %v2326 = vrot.slane %v2323, 4
        %v2327 = vrot.slane %v2323, 6
        %v2331 = vmul.f32 %v1593, %v2323
        %v2332 = vmul.f32 %v1594, %v2325
        %v2333 = vmul.f32 %v1595, %v2326
        %v2334 = vmul.f32 %v1596, %v2327
        %v2335 = vmul.f32 %v1597, %v2323
        %v2336 = vmul.f32 %v1598, %v2325
        %v2337 = vmul.f32 %v1599, %v2326
        %v2338 = vmul.f32 %v1600, %v2327
        %v2339 = vmul.f32 %v1602, %v2323
        %v2340 = vmul.f32 %v1603, %v2325
        %v2341 = vmul.f32 %v1604, %v2326
        %v2342 = vmul.f32 %v1605, %v2327
        %v2343 = vmul.f32 %v1606, %v2323
        %v2344 = vmul.f32 %v1607, %v2325
        %v2345 = vmul.f32 %v1608, %v2326
        %v2346 = vmul.f32 %v1609, %v2327
        %v2347 = vmul.f32 %v1611, %v2323
        %v2348 = vmul.f32 %v1612, %v2325
        %v2349 = vmul.f32 %v1613, %v2326
        %v2350 = vmul.f32 %v1614, %v2327
        %v2351 = vmul.f32 %v1615, %v2323
        %v2352 = vmul.f32 %v1616, %v2325
        %v2353 = vmul.f32 %v1617, %v2326
        %v2354 = vmul.f32 %v1618, %v2327
        %v2355 = vmul.f32 %v1620, %v2323
        %v2356 = vmul.f32 %v1621, %v2325
        %v2357 = vmul.f32 %v1622, %v2326
        %v2358 = vmul.f32 %v1623, %v2327
        %v2359 = vmul.f32 %v1624, %v2323
        %v2360 = vmul.f32 %v1625, %v2325
        %v2361 = vmul.f32 %v1626, %v2326
        %v2362 = vmul.f32 %v1627, %v2327
        %v2363 = vmul.f32 %v1629, %v2323
        %v2364 = vmul.f32 %v1630, %v2325
        %v2365 = vmul.f32 %v1631, %v2326
        %v2366 = vmul.f32 %v1632, %v2327
        %v2367 = vmul.f32 %v1633, %v2323
        %v2368 = vmul.f32 %v1634, %v2325
        %v2369 = vmul.f32 %v1635, %v2326
        %v2370 = vmul.f32 %v1636, %v2327
        %v2371 = vmul.f32 %v1638, %v2323
        %v2372 = vmul.f32 %v1639, %v2325
        %v2373 = vmul.f32 %v1640, %v2326
        %v2374 = vmul.f32 %v1641, %v2327
        %v2375 = vmul.f32 %v1642, %v2323
        %v2376 = vmul.f32 %v1643, %v2325
        %v2377 = vmul.f32 %v1644, %v2326
        %v2378 = vmul.f32 %v1645, %v2327
        %v2379 = vmul.f32 %v1647, %v2323
        %v2380 = vmul.f32 %v1648, %v2325
        %v2381 = vmul.f32 %v1649, %v2326
        %v2382 = vmul.f32 %v1650, %v2327
        %v2383 = vmul.f32 %v1651, %v2323
        %v2384 = vmul.f32 %v1652, %v2325
        %v2385 = vmul.f32 %v1653, %v2326
        %v2386 = vmul.f32 %v1654, %v2327
        %v2387 = vmul.f32 %v1656, %v2323
        %v2388 = vmul.f32 %v1657, %v2325
        %v2389 = vmul.f32 %v1658, %v2326
        %v2390 = vmul.f32 %v1659, %v2327
        %v2391 = vmul.f32 %v1660, %v2323
        %v2392 = vmul.f32 %v1661, %v2325
        %v2393 = vmul.f32 %v1662, %v2326
        %v2394 = vmul.f32 %v1663, %v2327
        %v2395 = vadd.f32 %v2258, %v2331
        %v2396 = vadd.f32 %v2259, %v2332
        %v2397 = vadd.f32 %v2260, %v2333
        %v2398 = vadd.f32 %v2261, %v2334
        %v2399 = vadd.f32 %v2262, %v2335
        %v2400 = vadd.f32 %v2263, %v2336
        %v2401 = vadd.f32 %v2264, %v2337
        %v2402 = vadd.f32 %v2265, %v2338
        %v2403 = vadd.f32 %v2266, %v2339
        %v2404 = vadd.f32 %v2267, %v2340
        %v2405 = vadd.f32 %v2268, %v2341
        %v2406 = vadd.f32 %v2269, %v2342
        %v2407 = vadd.f32 %v2270, %v2343
        %v2408 = vadd.f32 %v2271, %v2344
        %v2409 = vadd.f32 %v2272, %v2345
        %v2410 = vadd.f32 %v2273, %v2346
        %v2411 = vadd.f32 %v2274, %v2347
        %v2412 = vadd.f32 %v2275, %v2348
        %v2413 = vadd.f32 %v2276, %v2349
        %v2414 = vadd.f32 %v2277, %v2350
        %v2415 = vadd.f32 %v2278, %v2351
        %v2416 = vadd.f32 %v2279, %v2352
        %v2417 = vadd.f32 %v2280, %v2353
        %v2418 = vadd.f32 %v2281, %v2354
        %v2419 = vadd.f32 %v2282, %v2355
        %v2420 = vadd.f32 %v2283, %v2356
        %v2421 = vadd.f32 %v2284, %v2357
        %v2422 = vadd.f32 %v2285, %v2358
        %v2423 = vadd.f32 %v2286, %v2359
        %v2424 = vadd.f32 %v2287, %v2360
        %v2425 = vadd.f32 %v2288, %v2361
        %v2426 = vadd.f32 %v2289, %v2362
        %v2427 = vadd.f32 %v2290, %v2363
        %v2428 = vadd.f32 %v2291, %v2364
        %v2429 = vadd.f32 %v2292, %v2365
        %v2430 = vadd.f32 %v2293, %v2366
        %v2431 = vadd.f32 %v2294, %v2367
        %v2432 = vadd.f32 %v2295, %v2368
        %v2433 = vadd.f32 %v2296, %v2369
        %v2434 = vadd.f32 %v2297, %v2370
        %v2435 = vadd.f32 %v2298, %v2371
        %v2436 = vadd.f32 %v2299, %v2372
        %v2437 = vadd.f32 %v2300, %v2373
        %v2438 = vadd.f32 %v2301, %v2374
        %v2439 = vadd.f32 %v2302, %v2375
        %v2440 = vadd.f32 %v2303, %v2376
        %v2441 = vadd.f32 %v2304, %v2377
        %v2442 = vadd.f32 %v2305, %v2378
        %v2443 = vadd.f32 %v2306, %v2379
        %v2444 = vadd.f32 %v2307, %v2380
        %v2445 = vadd.f32 %v2308, %v2381
        %v2446 = vadd.f32 %v2309, %v2382
        %v2447 = vadd.f32 %v2310, %v2383
        %v2448 = vadd.f32 %v2311, %v2384
        %v2449 = vadd.f32 %v2312, %v2385
        %v2450 = vadd.f32 %v2313, %v2386
        %v2451 = vadd.f32 %v2314, %v2387
        %v2452 = vadd.f32 %v2315, %v2388
        %v2453 = vadd.f32 %v2316, %v2389
        %v2454 = vadd.f32 %v2317, %v2390
        %v2455 = vadd.f32 %v2318, %v2391
        %v2456 = vadd.f32 %v2319, %v2392
        %v2457 = vadd.f32 %v2320, %v2393
        %v2458 = vadd.f32 %v2321, %v2394
        %s2459 = scalar_lea.vmem %s3, 4
        %v2460 = vld [vmem:[%s2459] sm:$0x1]
        %v2461 = vperm.slane %v2460, 0
        %v2463 = vrot.slane %v2461, 2
        %v2464 = vrot.slane %v2461, 4
        %v2465 = vrot.slane %v2461, 6
        %v2469 = vmul.f32 %v1601, %v2461
        %v2470 = vmul.f32 %v1602, %v2463
        %v2471 = vmul.f32 %v1603, %v2464
        %v2472 = vmul.f32 %v1604, %v2465
        %v2473 = vmul.f32 %v1605, %v2461
        %v2474 = vmul.f32 %v1606, %v2463
        %v2475 = vmul.f32 %v1607, %v2464
        %v2476 = vmul.f32 %v1608, %v2465
        %v2477 = vmul.f32 %v1610, %v2461
        %v2478 = vmul.f32 %v1611, %v2463
        %v2479 = vmul.f32 %v1612, %v2464
        %v2480 = vmul.f32 %v1613, %v2465
        %v2481 = vmul.f32 %v1614, %v2461
        %v2482 = vmul.f32 %v1615, %v2463
        %v2483 = vmul.f32 %v1616, %v2464
        %v2484 = vmul.f32 %v1617, %v2465
        %v2485 = vmul.f32 %v1619, %v2461
        %v2486 = vmul.f32 %v1620, %v2463
        %v2487 = vmul.f32 %v1621, %v2464
        %v2488 = vmul.f32 %v1622, %v2465
        %v2489 = vmul.f32 %v1623, %v2461
        %v2490 = vmul.f32 %v1624, %v2463
        %v2491 = vmul.f32 %v1625, %v2464
        %v2492 = vmul.f32 %v1626, %v2465
        %v2493 = vmul.f32 %v1628, %v2461
        %v2494 = vmul.f32 %v1629, %v2463
        %v2495 = vmul.f32 %v1630, %v2464
        %v2496 = vmul.f32 %v1631, %v2465
        %v2497 = vmul.f32 %v1632, %v2461
        %v2498 = vmul.f32 %v1633, %v2463
        %v2499 = vmul.f32 %v1634, %v2464
        %v2500 = vmul.f32 %v1635, %v2465
        %v2501 = vmul.f32 %v1637, %v2461
        %v2502 = vmul.f32 %v1638, %v2463
        %v2503 = vmul.f32 %v1639, %v2464
        %v2504 = vmul.f32 %v1640, %v2465
        %v2505 = vmul.f32 %v1641, %v2461
        %v2506 = vmul.f32 %v1642, %v2463
        %v2507 = vmul.f32 %v1643, %v2464
        %v2508 = vmul.f32 %v1644, %v2465
        %v2509 = vmul.f32 %v1646, %v2461
        %v2510 = vmul.f32 %v1647, %v2463
        %v2511 = vmul.f32 %v1648, %v2464
        %v2512 = vmul.f32 %v1649, %v2465
        %v2513 = vmul.f32 %v1650, %v2461
        %v2514 = vmul.f32 %v1651, %v2463
        %v2515 = vmul.f32 %v1652, %v2464
        %v2516 = vmul.f32 %v1653, %v2465
        %v2517 = vmul.f32 %v1655, %v2461
        %v2518 = vmul.f32 %v1656, %v2463
        %v2519 = vmul.f32 %v1657, %v2464
        %v2520 = vmul.f32 %v1658, %v2465
        %v2521 = vmul.f32 %v1659, %v2461
        %v2522 = vmul.f32 %v1660, %v2463
        %v2523 = vmul.f32 %v1661, %v2464
        %v2524 = vmul.f32 %v1662, %v2465
        %v2525 = vmul.f32 %v1664, %v2461
        %v2526 = vmul.f32 %v1665, %v2463
        %v2527 = vmul.f32 %v1666, %v2464
        %v2528 = vmul.f32 %v1667, %v2465
        %v2529 = vmul.f32 %v1668, %v2461
        %v2530 = vmul.f32 %v1669, %v2463
        %v2531 = vmul.f32 %v1670, %v2464
        %v2532 = vmul.f32 %v1671, %v2465
        %v2533 = vadd.f32 %v2395, %v2469
        %v2534 = vadd.f32 %v2396, %v2470
        %v2535 = vadd.f32 %v2397, %v2471
        %v2536 = vadd.f32 %v2398, %v2472
        %v2537 = vadd.f32 %v2399, %v2473
        %v2538 = vadd.f32 %v2400, %v2474
        %v2539 = vadd.f32 %v2401, %v2475
        %v2540 = vadd.f32 %v2402, %v2476
        %v2541 = vadd.f32 %v2403, %v2477
        %v2542 = vadd.f32 %v2404, %v2478
        %v2543 = vadd.f32 %v2405, %v2479
        %v2544 = vadd.f32 %v2406, %v2480
        %v2545 = vadd.f32 %v2407, %v2481
        %v2546 = vadd.f32 %v2408, %v2482
        %v2547 = vadd.f32 %v2409, %v2483
        %v2548 = vadd.f32 %v2410, %v2484
        %v2549 = vadd.f32 %v2411, %v2485
        %v2550 = vadd.f32 %v2412, %v2486
        %v2551 = vadd.f32 %v2413, %v2487
        %v2552 = vadd.f32 %v2414, %v2488
        %v2553 = vadd.f32 %v2415, %v2489
        %v2554 = vadd.f32 %v2416, %v2490
        %v2555 = vadd.f32 %v2417, %v2491
        %v2556 = vadd.f32 %v2418, %v2492
        %v2557 = vadd.f32 %v2419, %v2493
        %v2558 = vadd.f32 %v2420, %v2494
        %v2559 = vadd.f32 %v2421, %v2495
        %v2560 = vadd.f32 %v2422, %v2496
        %v2561 = vadd.f32 %v2423, %v2497
        %v2562 = vadd.f32 %v2424, %v2498
        %v2563 = vadd.f32 %v2425, %v2499
        %v2564 = vadd.f32 %v2426, %v2500
        %v2565 = vadd.f32 %v2427, %v2501
        %v2566 = vadd.f32 %v2428, %v2502
        %v2567 = vadd.f32 %v2429, %v2503
        %v2568 = vadd.f32 %v2430, %v2504
        %v2569 = vadd.f32 %v2431, %v2505
        %v2570 = vadd.f32 %v2432, %v2506
        %v2571 = vadd.f32 %v2433, %v2507
        %v2572 = vadd.f32 %v2434, %v2508
        %v2573 = vadd.f32 %v2435, %v2509
        %v2574 = vadd.f32 %v2436, %v2510
        %v2575 = vadd.f32 %v2437, %v2511
        %v2576 = vadd.f32 %v2438, %v2512
        %v2577 = vadd.f32 %v2439, %v2513
        %v2578 = vadd.f32 %v2440, %v2514
        %v2579 = vadd.f32 %v2441, %v2515
        %v2580 = vadd.f32 %v2442, %v2516
        %v2581 = vadd.f32 %v2443, %v2517
        %v2582 = vadd.f32 %v2444, %v2518
        %v2583 = vadd.f32 %v2445, %v2519
        %v2584 = vadd.f32 %v2446, %v2520
        %v2585 = vadd.f32 %v2447, %v2521
        %v2586 = vadd.f32 %v2448, %v2522
        %v2587 = vadd.f32 %v2449, %v2523
        %v2588 = vadd.f32 %v2450, %v2524
        %v2589 = vadd.f32 %v2451, %v2525
        %v2590 = vadd.f32 %v2452, %v2526
        %v2591 = vadd.f32 %v2453, %v2527
        %v2592 = vadd.f32 %v2454, %v2528
        %v2593 = vadd.f32 %v2455, %v2529
        %v2594 = vadd.f32 %v2456, %v2530
        %v2595 = vadd.f32 %v2457, %v2531
        %v2596 = vadd.f32 %v2458, %v2532
        %v2597 = vld [vmem:[%s2459 + $0x1] sm:$0x1]
        %v2598 = vperm.slane %v2597, 0
        %v2600 = vrot.slane %v2598, 2
        %v2601 = vrot.slane %v2598, 4
        %v2602 = vrot.slane %v2598, 6
        %v2603 = vrot.slane %v2598, 7
        %v2604 = vrot.slane %v2603, 2
        %v2605 = vrot.slane %v2600, 7
        %v2606 = vsel %vm1831, %v2604, %v2605
        %v2607 = vrot.slane %v2605, 2
        %v2608 = vrot.slane %v2601, 7
        %v2609 = vsel %vm1831, %v2607, %v2608
        %v2610 = vrot.slane %v2608, 2
        %v2611 = vrot.slane %v2602, 7
        %v2612 = vsel %vm1831, %v2610, %v2611
        %v2613 = vrot.slane %v2611, 2
        %v2614 = vsel %vm1831, %v2613, %v2603
        %v2621 = vmul.f32 %v1601, %v2603
        %v2622 = vmul.f32 %v1602, %v2606
        %v2623 = vmul.f32 %v1603, %v2609
        %v2624 = vmul.f32 %v1604, %v2612
        %v2625 = vmul.f32 %v1605, %v2614
        %v2626 = vmul.f32 %v1606, %v2606
        %v2627 = vmul.f32 %v1607, %v2609
        %v2628 = vmul.f32 %v1608, %v2612
        %v2629 = vmul.f32 %v1609, %v2613
        %v2630 = vmul.f32 %v1610, %v2603
        %v2631 = vmul.f32 %v1611, %v2606
        %v2632 = vmul.f32 %v1612, %v2609
        %v2633 = vmul.f32 %v1613, %v2612
        %v2634 = vmul.f32 %v1614, %v2614
        %v2635 = vmul.f32 %v1615, %v2606
        %v2636 = vmul.f32 %v1616, %v2609
        %v2637 = vmul.f32 %v1617, %v2612
        %v2638 = vmul.f32 %v1618, %v2613
        %v2639 = vmul.f32 %v1619, %v2603
        %v2640 = vmul.f32 %v1620, %v2606
        %v2641 = vmul.f32 %v1621, %v2609
        %v2642 = vmul.f32 %v1622, %v2612
        %v2643 = vmul.f32 %v1623, %v2614
        %v2644 = vmul.f32 %v1624, %v2606
        %v2645 = vmul.f32 %v1625, %v2609
        %v2646 = vmul.f32 %v1626, %v2612
        %v2647 = vmul.f32 %v1627, %v2613
        %v2648 = vmul.f32 %v1628, %v2603
        %v2649 = vmul.f32 %v1629, %v2606
        %v2650 = vmul.f32 %v1630, %v2609
        %v2651 = vmul.f32 %v1631, %v2612
        %v2652 = vmul.f32 %v1632, %v2614
        %v2653 = vmul.f32 %v1633, %v2606
        %v2654 = vmul.f32 %v1634, %v2609
        %v2655 = vmul.f32 %v1635, %v2612
        %v2656 = vmul.f32 %v1636, %v2613
        %v2657 = vmul.f32 %v1637, %v2603
        %v2658 = vmul.f32 %v1638, %v2606
        %v2659 = vmul.f32 %v1639, %v2609
        %v2660 = vmul.f32 %v1640, %v2612
        %v2661 = vmul.f32 %v1641, %v2614
        %v2662 = vmul.f32 %v1642, %v2606
        %v2663 = vmul.f32 %v1643, %v2609
        %v2664 = vmul.f32 %v1644, %v2612
        %v2665 = vmul.f32 %v1645, %v2613
        %v2666 = vmul.f32 %v1646, %v2603
        %v2667 = vmul.f32 %v1647, %v2606
        %v2668 = vmul.f32 %v1648, %v2609
        %v2669 = vmul.f32 %v1649, %v2612
        %v2670 = vmul.f32 %v1650, %v2614
        %v2671 = vmul.f32 %v1651, %v2606
        %v2672 = vmul.f32 %v1652, %v2609
        %v2673 = vmul.f32 %v1653, %v2612
        %v2674 = vmul.f32 %v1654, %v2613
        %v2675 = vmul.f32 %v1655, %v2603
        %v2676 = vmul.f32 %v1656, %v2606
        %v2677 = vmul.f32 %v1657, %v2609
        %v2678 = vmul.f32 %v1658, %v2612
        %v2679 = vmul.f32 %v1659, %v2614
        %v2680 = vmul.f32 %v1660, %v2606
        %v2681 = vmul.f32 %v1661, %v2609
        %v2682 = vmul.f32 %v1662, %v2612
        %v2683 = vmul.f32 %v1663, %v2613
        %v2684 = vmul.f32 %v1664, %v2603
        %v2685 = vmul.f32 %v1665, %v2606
        %v2686 = vmul.f32 %v1666, %v2609
        %v2687 = vmul.f32 %v1667, %v2612
        %v2688 = vmul.f32 %v1668, %v2614
        %v2689 = vmul.f32 %v1669, %v2606
        %v2690 = vmul.f32 %v1670, %v2609
        %v2691 = vmul.f32 %v1671, %v2612
        %v2692 = vmul.f32 %v1672, %v2613
        %v2765 = vrot.slane %v2621, 7
        %v2766 = vrot.slane %v2765, 2
        %v2767 = vrot.slane %v2622, 7
        %v2768 = vsel %vm1831, %v2766, %v2767
        %v2769 = vrot.slane %v2767, 2
        %v2770 = vrot.slane %v2623, 7
        %v2771 = vsel %vm1831, %v2769, %v2770
        %v2772 = vrot.slane %v2770, 2
        %v2773 = vrot.slane %v2624, 7
        %v2774 = vsel %vm1831, %v2772, %v2773
        %v2775 = vrot.slane %v2773, 2
        %v2776 = vrot.slane %v2625, 7
        %v2777 = vsel %vm1831, %v2775, %v2776
        %v2778 = vrot.slane %v2776, 2
        %v2779 = vrot.slane %v2626, 7
        %v2780 = vsel %vm1831, %v2778, %v2779
        %v2781 = vrot.slane %v2779, 2
        %v2782 = vrot.slane %v2627, 7
        %v2783 = vsel %vm1831, %v2781, %v2782
        %v2784 = vrot.slane %v2782, 2
        %v2785 = vrot.slane %v2628, 7
        %v2786 = vsel %vm1831, %v2784, %v2785
        %v2787 = vrot.slane %v2785, 2
        %v2788 = vrot.slane %v2629, 7
        %v2789 = vsel %vm1831, %v2787, %v2788
        %v2790 = vrot.slane %v2630, 7
        %v2791 = vrot.slane %v2790, 2
        %v2792 = vrot.slane %v2631, 7
        %v2793 = vsel %vm1831, %v2791, %v2792
        %v2794 = vrot.slane %v2792, 2
        %v2795 = vrot.slane %v2632, 7
        %v2796 = vsel %vm1831, %v2794, %v2795
        %v2797 = vrot.slane %v2795, 2
        %v2798 = vrot.slane %v2633, 7
        %v2799 = vsel %vm1831, %v2797, %v2798
        %v2800 = vrot.slane %v2798, 2
        %v2801 = vrot.slane %v2634, 7
        %v2802 = vsel %vm1831, %v2800, %v2801
        %v2803 = vrot.slane %v2801, 2
        %v2804 = vrot.slane %v2635, 7
        %v2805 = vsel %vm1831, %v2803, %v2804
        %v2806 = vrot.slane %v2804, 2
        %v2807 = vrot.slane %v2636, 7
        %v2808 = vsel %vm1831, %v2806, %v2807
        %v2809 = vrot.slane %v2807, 2
        %v2810 = vrot.slane %v2637, 7
        %v2811 = vsel %vm1831, %v2809, %v2810
        %v2812 = vrot.slane %v2810, 2
        %v2813 = vrot.slane %v2638, 7
        %v2814 = vsel %vm1831, %v2812, %v2813
        %v2815 = vrot.slane %v2639, 7
        %v2816 = vrot.slane %v2815, 2
        %v2817 = vrot.slane %v2640, 7
        %v2818 = vsel %vm1831, %v2816, %v2817
        %v2819 = vrot.slane %v2817, 2
        %v2820 = vrot.slane %v2641, 7
        %v2821 = vsel %vm1831, %v2819, %v2820
        %v2822 = vrot.slane %v2820, 2
        %v2823 = vrot.slane %v2642, 7
        %v2824 = vsel %vm1831, %v2822, %v2823
        %v2825 = vrot.slane %v2823, 2
        %v2826 = vrot.slane %v2643, 7
        %v2827 = vsel %vm1831, %v2825, %v2826
        %v2828 = vrot.slane %v2826, 2
        %v2829 = vrot.slane %v2644, 7
        %v2830 = vsel %vm1831, %v2828, %v2829
        %v2831 = vrot.slane %v2829, 2
        %v2832 = vrot.slane %v2645, 7
        %v2833 = vsel %vm1831, %v2831, %v2832
        %v2834 = vrot.slane %v2832, 2
        %v2835 = vrot.slane %v2646, 7
        %v2836 = vsel %vm1831, %v2834, %v2835
        %v2837 = vrot.slane %v2835, 2
        %v2838 = vrot.slane %v2647, 7
        %v2839 = vsel %vm1831, %v2837, %v2838
        %v2840 = vrot.slane %v2648, 7
        %v2841 = vrot.slane %v2840, 2
        %v2842 = vrot.slane %v2649, 7
        %v2843 = vsel %vm1831, %v2841, %v2842
        %v2844 = vrot.slane %v2842, 2
        %v2845 = vrot.slane %v2650, 7
        %v2846 = vsel %vm1831, %v2844, %v2845
        %v2847 = vrot.slane %v2845, 2
        %v2848 = vrot.slane %v2651, 7
        %v2849 = vsel %vm1831, %v2847, %v2848
        %v2850 = vrot.slane %v2848, 2
        %v2851 = vrot.slane %v2652, 7
        %v2852 = vsel %vm1831, %v2850, %v2851
        %v2853 = vrot.slane %v2851, 2
        %v2854 = vrot.slane %v2653, 7
        %v2855 = vsel %vm1831, %v2853, %v2854
        %v2856 = vrot.slane %v2854, 2
        %v2857 = vrot.slane %v2654, 7
        %v2858 = vsel %vm1831, %v2856, %v2857
        %v2859 = vrot.slane %v2857, 2
        %v2860 = vrot.slane %v2655, 7
        %v2861 = vsel %vm1831, %v2859, %v2860
        %v2862 = vrot.slane %v2860, 2
        %v2863 = vrot.slane %v2656, 7
        %v2864 = vsel %vm1831, %v2862, %v2863
        %v2865 = vrot.slane %v2657, 7
        %v2866 = vrot.slane %v2865, 2
        %v2867 = vrot.slane %v2658, 7
        %v2868 = vsel %vm1831, %v2866, %v2867
        %v2869 = vrot.slane %v2867, 2
        %v2870 = vrot.slane %v2659, 7
        %v2871 = vsel %vm1831, %v2869, %v2870
        %v2872 = vrot.slane %v2870, 2
        %v2873 = vrot.slane %v2660, 7
        %v2874 = vsel %vm1831, %v2872, %v2873
        %v2875 = vrot.slane %v2873, 2
        %v2876 = vrot.slane %v2661, 7
        %v2877 = vsel %vm1831, %v2875, %v2876
        %v2878 = vrot.slane %v2876, 2
        %v2879 = vrot.slane %v2662, 7
        %v2880 = vsel %vm1831, %v2878, %v2879
        %v2881 = vrot.slane %v2879, 2
        %v2882 = vrot.slane %v2663, 7
        %v2883 = vsel %vm1831, %v2881, %v2882
        %v2884 = vrot.slane %v2882, 2
        %v2885 = vrot.slane %v2664, 7
        %v2886 = vsel %vm1831, %v2884, %v2885
        %v2887 = vrot.slane %v2885, 2
        %v2888 = vrot.slane %v2665, 7
        %v2889 = vsel %vm1831, %v2887, %v2888
        %v2890 = vrot.slane %v2666, 7
        %v2891 = vrot.slane %v2890, 2
        %v2892 = vrot.slane %v2667, 7
        %v2893 = vsel %vm1831, %v2891, %v2892
        %v2894 = vrot.slane %v2892, 2
        %v2895 = vrot.slane %v2668, 7
        %v2896 = vsel %vm1831, %v2894, %v2895
        %v2897 = vrot.slane %v2895, 2
        %v2898 = vrot.slane %v2669, 7
        %v2899 = vsel %vm1831, %v2897, %v2898
        %v2900 = vrot.slane %v2898, 2
        %v2901 = vrot.slane %v2670, 7
        %v2902 = vsel %vm1831, %v2900, %v2901
        %v2903 = vrot.slane %v2901, 2
        %v2904 = vrot.slane %v2671, 7
        %v2905 = vsel %vm1831, %v2903, %v2904
        %v2906 = vrot.slane %v2904, 2
        %v2907 = vrot.slane %v2672, 7
        %v2908 = vsel %vm1831, %v2906, %v2907
        %v2909 = vrot.slane %v2907, 2
        %v2910 = vrot.slane %v2673, 7
        %v2911 = vsel %vm1831, %v2909, %v2910
        %v2912 = vrot.slane %v2910, 2
        %v2913 = vrot.slane %v2674, 7
        %v2914 = vsel %vm1831, %v2912, %v2913
        %v2915 = vrot.slane %v2675, 7
        %v2916 = vrot.slane %v2915, 2
        %v2917 = vrot.slane %v2676, 7
        %v2918 = vsel %vm1831, %v2916, %v2917
        %v2919 = vrot.slane %v2917, 2
        %v2920 = vrot.slane %v2677, 7
        %v2921 = vsel %vm1831, %v2919, %v2920
        %v2922 = vrot.slane %v2920, 2
        %v2923 = vrot.slane %v2678, 7
        %v2924 = vsel %vm1831, %v2922, %v2923
        %v2925 = vrot.slane %v2923, 2
        %v2926 = vrot.slane %v2679, 7
        %v2927 = vsel %vm1831, %v2925, %v2926
        %v2928 = vrot.slane %v2926, 2
        %v2929 = vrot.slane %v2680, 7
        %v2930 = vsel %vm1831, %v2928, %v2929
        %v2931 = vrot.slane %v2929, 2
        %v2932 = vrot.slane %v2681, 7
        %v2933 = vsel %vm1831, %v2931, %v2932
        %v2934 = vrot.slane %v2932, 2
        %v2935 = vrot.slane %v2682, 7
        %v2936 = vsel %vm1831, %v2934, %v2935
        %v2937 = vrot.slane %v2935, 2
        %v2938 = vrot.slane %v2683, 7
        %v2939 = vsel %vm1831, %v2937, %v2938
        %v2940 = vrot.slane %v2684, 7
        %v2941 = vrot.slane %v2940, 2
        %v2942 = vrot.slane %v2685, 7
        %v2943 = vsel %vm1831, %v2941, %v2942
        %v2944 = vrot.slane %v2942, 2
        %v2945 = vrot.slane %v2686, 7
        %v2946 = vsel %vm1831, %v2944, %v2945
        %v2947 = vrot.slane %v2945, 2
        %v2948 = vrot.slane %v2687, 7
        %v2949 = vsel %vm1831, %v2947, %v2948
        %v2950 = vrot.slane %v2948, 2
        %v2951 = vrot.slane %v2688, 7
        %v2952 = vsel %vm1831, %v2950, %v2951
        %v2953 = vrot.slane %v2951, 2
        %v2954 = vrot.slane %v2689, 7
        %v2955 = vsel %vm1831, %v2953, %v2954
        %v2956 = vrot.slane %v2954, 2
        %v2957 = vrot.slane %v2690, 7
        %v2958 = vsel %vm1831, %v2956, %v2957
        %v2959 = vrot.slane %v2957, 2
        %v2960 = vrot.slane %v2691, 7
        %v2961 = vsel %vm1831, %v2959, %v2960
        %v2962 = vrot.slane %v2960, 2
        %v2963 = vrot.slane %v2692, 7
        %v2964 = vsel %vm1831, %v2962, %v2963
        %v3029 = vadd.f32 %v2533, %v2768
        %v3030 = vadd.f32 %v2534, %v2771
        %v3031 = vadd.f32 %v2535, %v2774
        %v3032 = vadd.f32 %v2536, %v2777
        %v3033 = vadd.f32 %v2537, %v2780
        %v3034 = vadd.f32 %v2538, %v2783
        %v3035 = vadd.f32 %v2539, %v2786
        %v3036 = vadd.f32 %v2540, %v2789
        %v3037 = vadd.f32 %v2541, %v2793
        %v3038 = vadd.f32 %v2542, %v2796
        %v3039 = vadd.f32 %v2543, %v2799
        %v3040 = vadd.f32 %v2544, %v2802
        %v3041 = vadd.f32 %v2545, %v2805
        %v3042 = vadd.f32 %v2546, %v2808
        %v3043 = vadd.f32 %v2547, %v2811
        %v3044 = vadd.f32 %v2548, %v2814
        %v3045 = vadd.f32 %v2549, %v2818
        %v3046 = vadd.f32 %v2550, %v2821
        %v3047 = vadd.f32 %v2551, %v2824
        %v3048 = vadd.f32 %v2552, %v2827
        %v3049 = vadd.f32 %v2553, %v2830
        %v3050 = vadd.f32 %v2554, %v2833
        %v3051 = vadd.f32 %v2555, %v2836
        %v3052 = vadd.f32 %v2556, %v2839
        %v3053 = vadd.f32 %v2557, %v2843
        %v3054 = vadd.f32 %v2558, %v2846
        %v3055 = vadd.f32 %v2559, %v2849
        %v3056 = vadd.f32 %v2560, %v2852
        %v3057 = vadd.f32 %v2561, %v2855
        %v3058 = vadd.f32 %v2562, %v2858
        %v3059 = vadd.f32 %v2563, %v2861
        %v3060 = vadd.f32 %v2564, %v2864
        %v3061 = vadd.f32 %v2565, %v2868
        %v3062 = vadd.f32 %v2566, %v2871
        %v3063 = vadd.f32 %v2567, %v2874
        %v3064 = vadd.f32 %v2568, %v2877
        %v3065 = vadd.f32 %v2569, %v2880
        %v3066 = vadd.f32 %v2570, %v2883
        %v3067 = vadd.f32 %v2571, %v2886
        %v3068 = vadd.f32 %v2572, %v2889
        %v3069 = vadd.f32 %v2573, %v2893
        %v3070 = vadd.f32 %v2574, %v2896
        %v3071 = vadd.f32 %v2575, %v2899
        %v3072 = vadd.f32 %v2576, %v2902
        %v3073 = vadd.f32 %v2577, %v2905
        %v3074 = vadd.f32 %v2578, %v2908
        %v3075 = vadd.f32 %v2579, %v2911
        %v3076 = vadd.f32 %v2580, %v2914
        %v3077 = vadd.f32 %v2581, %v2918
        %v3078 = vadd.f32 %v2582, %v2921
        %v3079 = vadd.f32 %v2583, %v2924
        %v3080 = vadd.f32 %v2584, %v2927
        %v3081 = vadd.f32 %v2585, %v2930
        %v3082 = vadd.f32 %v2586, %v2933
        %v3083 = vadd.f32 %v2587, %v2936
        %v3084 = vadd.f32 %v2588, %v2939
        %v3085 = vadd.f32 %v2589, %v2943
        %v3086 = vadd.f32 %v2590, %v2946
        %v3087 = vadd.f32 %v2591, %v2949
        %v3088 = vadd.f32 %v2592, %v2952
        %v3089 = vadd.f32 %v2593, %v2955
        %v3090 = vadd.f32 %v2594, %v2958
        %v3091 = vadd.f32 %v2595, %v2961
        %v3092 = vadd.f32 %v2596, %v2964
        %v3093 = vld [vmem:[%s2459 + $0x2] sm:$0x1]
        %v3094 = vperm.slane %v3093, 0
        %v3096 = vrot.slane %v3094, 2
        %v3097 = vrot.slane %v3094, 4
        %v3098 = vrot.slane %v3094, 6
        %v3102 = vmul.f32 %v1602, %v3094
        %v3103 = vmul.f32 %v1603, %v3096
        %v3104 = vmul.f32 %v1604, %v3097
        %v3105 = vmul.f32 %v1605, %v3098
        %v3106 = vmul.f32 %v1606, %v3094
        %v3107 = vmul.f32 %v1607, %v3096
        %v3108 = vmul.f32 %v1608, %v3097
        %v3109 = vmul.f32 %v1609, %v3098
        %v3110 = vmul.f32 %v1611, %v3094
        %v3111 = vmul.f32 %v1612, %v3096
        %v3112 = vmul.f32 %v1613, %v3097
        %v3113 = vmul.f32 %v1614, %v3098
        %v3114 = vmul.f32 %v1615, %v3094
        %v3115 = vmul.f32 %v1616, %v3096
        %v3116 = vmul.f32 %v1617, %v3097
        %v3117 = vmul.f32 %v1618, %v3098
        %v3118 = vmul.f32 %v1620, %v3094
        %v3119 = vmul.f32 %v1621, %v3096
        %v3120 = vmul.f32 %v1622, %v3097
        %v3121 = vmul.f32 %v1623, %v3098
        %v3122 = vmul.f32 %v1624, %v3094
        %v3123 = vmul.f32 %v1625, %v3096
        %v3124 = vmul.f32 %v1626, %v3097
        %v3125 = vmul.f32 %v1627, %v3098
        %v3126 = vmul.f32 %v1629, %v3094
        %v3127 = vmul.f32 %v1630, %v3096
        %v3128 = vmul.f32 %v1631, %v3097
        %v3129 = vmul.f32 %v1632, %v3098
        %v3130 = vmul.f32 %v1633, %v3094
        %v3131 = vmul.f32 %v1634, %v3096
        %v3132 = vmul.f32 %v1635, %v3097
        %v3133 = vmul.f32 %v1636, %v3098
        %v3134 = vmul.f32 %v1638, %v3094
        %v3135 = vmul.f32 %v1639, %v3096
        %v3136 = vmul.f32 %v1640, %v3097
        %v3137 = vmul.f32 %v1641, %v3098
        %v3138 = vmul.f32 %v1642, %v3094
        %v3139 = vmul.f32 %v1643, %v3096
        %v3140 = vmul.f32 %v1644, %v3097
        %v3141 = vmul.f32 %v1645, %v3098
        %v3142 = vmul.f32 %v1647, %v3094
        %v3143 = vmul.f32 %v1648, %v3096
        %v3144 = vmul.f32 %v1649, %v3097
        %v3145 = vmul.f32 %v1650, %v3098
        %v3146 = vmul.f32 %v1651, %v3094
        %v3147 = vmul.f32 %v1652, %v3096
        %v3148 = vmul.f32 %v1653, %v3097
        %v3149 = vmul.f32 %v1654, %v3098
        %v3150 = vmul.f32 %v1656, %v3094
        %v3151 = vmul.f32 %v1657, %v3096
        %v3152 = vmul.f32 %v1658, %v3097
        %v3153 = vmul.f32 %v1659, %v3098
        %v3154 = vmul.f32 %v1660, %v3094
        %v3155 = vmul.f32 %v1661, %v3096
        %v3156 = vmul.f32 %v1662, %v3097
        %v3157 = vmul.f32 %v1663, %v3098
        %v3158 = vmul.f32 %v1665, %v3094
        %v3159 = vmul.f32 %v1666, %v3096
        %v3160 = vmul.f32 %v1667, %v3097
        %v3161 = vmul.f32 %v1668, %v3098
        %v3162 = vmul.f32 %v1669, %v3094
        %v3163 = vmul.f32 %v1670, %v3096
        %v3164 = vmul.f32 %v1671, %v3097
        %v3165 = vmul.f32 %v1672, %v3098
        %v3166 = vadd.f32 %v3029, %v3102
        %v3167 = vadd.f32 %v3030, %v3103
        %v3168 = vadd.f32 %v3031, %v3104
        %v3169 = vadd.f32 %v3032, %v3105
        %v3170 = vadd.f32 %v3033, %v3106
        %v3171 = vadd.f32 %v3034, %v3107
        %v3172 = vadd.f32 %v3035, %v3108
        %v3173 = vadd.f32 %v3036, %v3109
        %v3174 = vadd.f32 %v3037, %v3110
        %v3175 = vadd.f32 %v3038, %v3111
        %v3176 = vadd.f32 %v3039, %v3112
        %v3177 = vadd.f32 %v3040, %v3113
        %v3178 = vadd.f32 %v3041, %v3114
        %v3179 = vadd.f32 %v3042, %v3115
        %v3180 = vadd.f32 %v3043, %v3116
        %v3181 = vadd.f32 %v3044, %v3117
        %v3182 = vadd.f32 %v3045, %v3118
        %v3183 = vadd.f32 %v3046, %v3119
        %v3184 = vadd.f32 %v3047, %v3120
        %v3185 = vadd.f32 %v3048, %v3121
        %v3186 = vadd.f32 %v3049, %v3122
        %v3187 = vadd.f32 %v3050, %v3123
        %v3188 = vadd.f32 %v3051, %v3124
        %v3189 = vadd.f32 %v3052, %v3125
        %v3190 = vadd.f32 %v3053, %v3126
        %v3191 = vadd.f32 %v3054, %v3127
        %v3192 = vadd.f32 %v3055, %v3128
        %v3193 = vadd.f32 %v3056, %v3129
        %v3194 = vadd.f32 %v3057, %v3130
        %v3195 = vadd.f32 %v3058, %v3131
        %v3196 = vadd.f32 %v3059, %v3132
        %v3197 = vadd.f32 %v3060, %v3133
        %v3198 = vadd.f32 %v3061, %v3134
        %v3199 = vadd.f32 %v3062, %v3135
        %v3200 = vadd.f32 %v3063, %v3136
        %v3201 = vadd.f32 %v3064, %v3137
        %v3202 = vadd.f32 %v3065, %v3138
        %v3203 = vadd.f32 %v3066, %v3139
        %v3204 = vadd.f32 %v3067, %v3140
        %v3205 = vadd.f32 %v3068, %v3141
        %v3206 = vadd.f32 %v3069, %v3142
        %v3207 = vadd.f32 %v3070, %v3143
        %v3208 = vadd.f32 %v3071, %v3144
        %v3209 = vadd.f32 %v3072, %v3145
        %v3210 = vadd.f32 %v3073, %v3146
        %v3211 = vadd.f32 %v3074, %v3147
        %v3212 = vadd.f32 %v3075, %v3148
        %v3213 = vadd.f32 %v3076, %v3149
        %v3214 = vadd.f32 %v3077, %v3150
        %v3215 = vadd.f32 %v3078, %v3151
        %v3216 = vadd.f32 %v3079, %v3152
        %v3217 = vadd.f32 %v3080, %v3153
        %v3218 = vadd.f32 %v3081, %v3154
        %v3219 = vadd.f32 %v3082, %v3155
        %v3220 = vadd.f32 %v3083, %v3156
        %v3221 = vadd.f32 %v3084, %v3157
        %v3222 = vadd.f32 %v3085, %v3158
        %v3223 = vadd.f32 %v3086, %v3159
        %v3224 = vadd.f32 %v3087, %v3160
        %v3225 = vadd.f32 %v3088, %v3161
        %v3226 = vadd.f32 %v3089, %v3162
        %v3227 = vadd.f32 %v3090, %v3163
        %v3228 = vadd.f32 %v3091, %v3164
        %v3229 = vadd.f32 %v3092, %v3165
        %s3230 = scalar_lea.vmem %s3, 8
        %v3231 = vld [vmem:[%s3230] sm:$0x1]
        %v3232 = vperm.slane %v3231, 0
        %v3234 = vrot.slane %v3232, 2
        %v3235 = vrot.slane %v3232, 4
        %v3236 = vrot.slane %v3232, 6
        %v3240 = vmul.f32 %v1610, %v3232
        %v3241 = vmul.f32 %v1611, %v3234
        %v3242 = vmul.f32 %v1612, %v3235
        %v3243 = vmul.f32 %v1613, %v3236
        %v3244 = vmul.f32 %v1614, %v3232
        %v3245 = vmul.f32 %v1615, %v3234
        %v3246 = vmul.f32 %v1616, %v3235
        %v3247 = vmul.f32 %v1617, %v3236
        %v3248 = vmul.f32 %v1619, %v3232
        %v3249 = vmul.f32 %v1620, %v3234
        %v3250 = vmul.f32 %v1621, %v3235
        %v3251 = vmul.f32 %v1622, %v3236
        %v3252 = vmul.f32 %v1623, %v3232
        %v3253 = vmul.f32 %v1624, %v3234
        %v3254 = vmul.f32 %v1625, %v3235
        %v3255 = vmul.f32 %v1626, %v3236
        %v3256 = vmul.f32 %v1628, %v3232
        %v3257 = vmul.f32 %v1629, %v3234
        %v3258 = vmul.f32 %v1630, %v3235
        %v3259 = vmul.f32 %v1631, %v3236
        %v3260 = vmul.f32 %v1632, %v3232
        %v3261 = vmul.f32 %v1633, %v3234
        %v3262 = vmul.f32 %v1634, %v3235
        %v3263 = vmul.f32 %v1635, %v3236
        %v3264 = vmul.f32 %v1637, %v3232
        %v3265 = vmul.f32 %v1638, %v3234
        %v3266 = vmul.f32 %v1639, %v3235
        %v3267 = vmul.f32 %v1640, %v3236
        %v3268 = vmul.f32 %v1641, %v3232
        %v3269 = vmul.f32 %v1642, %v3234
        %v3270 = vmul.f32 %v1643, %v3235
        %v3271 = vmul.f32 %v1644, %v3236
        %v3272 = vmul.f32 %v1646, %v3232
        %v3273 = vmul.f32 %v1647, %v3234
        %v3274 = vmul.f32 %v1648, %v3235
        %v3275 = vmul.f32 %v1649, %v3236
        %v3276 = vmul.f32 %v1650, %v3232
        %v3277 = vmul.f32 %v1651, %v3234
        %v3278 = vmul.f32 %v1652, %v3235
        %v3279 = vmul.f32 %v1653, %v3236
        %v3280 = vmul.f32 %v1655, %v3232
        %v3281 = vmul.f32 %v1656, %v3234
        %v3282 = vmul.f32 %v1657, %v3235
        %v3283 = vmul.f32 %v1658, %v3236
        %v3284 = vmul.f32 %v1659, %v3232
        %v3285 = vmul.f32 %v1660, %v3234
        %v3286 = vmul.f32 %v1661, %v3235
        %v3287 = vmul.f32 %v1662, %v3236
        %v3288 = vmul.f32 %v1664, %v3232
        %v3289 = vmul.f32 %v1665, %v3234
        %v3290 = vmul.f32 %v1666, %v3235
        %v3291 = vmul.f32 %v1667, %v3236
        %v3292 = vmul.f32 %v1668, %v3232
        %v3293 = vmul.f32 %v1669, %v3234
        %v3294 = vmul.f32 %v1670, %v3235
        %v3295 = vmul.f32 %v1671, %v3236
        %v3296 = vmul.f32 %v1673, %v3232
        %v3297 = vmul.f32 %v1674, %v3234
        %v3298 = vmul.f32 %v1675, %v3235
        %v3299 = vmul.f32 %v1676, %v3236
        %v3300 = vmul.f32 %v1677, %v3232
        %v3301 = vmul.f32 %v1678, %v3234
        %v3302 = vmul.f32 %v1679, %v3235
        %v3303 = vmul.f32 %v1680, %v3236
        %v3304 = vadd.f32 %v3166, %v3240
        %v3305 = vadd.f32 %v3167, %v3241
        %v3306 = vadd.f32 %v3168, %v3242
        %v3307 = vadd.f32 %v3169, %v3243
        %v3308 = vadd.f32 %v3170, %v3244
        %v3309 = vadd.f32 %v3171, %v3245
        %v3310 = vadd.f32 %v3172, %v3246
        %v3311 = vadd.f32 %v3173, %v3247
        %v3312 = vadd.f32 %v3174, %v3248
        %v3313 = vadd.f32 %v3175, %v3249
        %v3314 = vadd.f32 %v3176, %v3250
        %v3315 = vadd.f32 %v3177, %v3251
        %v3316 = vadd.f32 %v3178, %v3252
        %v3317 = vadd.f32 %v3179, %v3253
        %v3318 = vadd.f32 %v3180, %v3254
        %v3319 = vadd.f32 %v3181, %v3255
        %v3320 = vadd.f32 %v3182, %v3256
        %v3321 = vadd.f32 %v3183, %v3257
        %v3322 = vadd.f32 %v3184, %v3258
        %v3323 = vadd.f32 %v3185, %v3259
        %v3324 = vadd.f32 %v3186, %v3260
        %v3325 = vadd.f32 %v3187, %v3261
        %v3326 = vadd.f32 %v3188, %v3262
        %v3327 = vadd.f32 %v3189, %v3263
        %v3328 = vadd.f32 %v3190, %v3264
        %v3329 = vadd.f32 %v3191, %v3265
        %v3330 = vadd.f32 %v3192, %v3266
        %v3331 = vadd.f32 %v3193, %v3267
        %v3332 = vadd.f32 %v3194, %v3268
        %v3333 = vadd.f32 %v3195, %v3269
        %v3334 = vadd.f32 %v3196, %v3270
        %v3335 = vadd.f32 %v3197, %v3271
        %v3336 = vadd.f32 %v3198, %v3272
        %v3337 = vadd.f32 %v3199, %v3273
        %v3338 = vadd.f32 %v3200, %v3274
        %v3339 = vadd.f32 %v3201, %v3275
        %v3340 = vadd.f32 %v3202, %v3276
        %v3341 = vadd.f32 %v3203, %v3277
        %v3342 = vadd.f32 %v3204, %v3278
        %v3343 = vadd.f32 %v3205, %v3279
        %v3344 = vadd.f32 %v3206, %v3280
        %v3345 = vadd.f32 %v3207, %v3281
        %v3346 = vadd.f32 %v3208, %v3282
        %v3347 = vadd.f32 %v3209, %v3283
        %v3348 = vadd.f32 %v3210, %v3284
        %v3349 = vadd.f32 %v3211, %v3285
        %v3350 = vadd.f32 %v3212, %v3286
        %v3351 = vadd.f32 %v3213, %v3287
        %v3352 = vadd.f32 %v3214, %v3288
        %v3353 = vadd.f32 %v3215, %v3289
        %v3354 = vadd.f32 %v3216, %v3290
        %v3355 = vadd.f32 %v3217, %v3291
        %v3356 = vadd.f32 %v3218, %v3292
        %v3357 = vadd.f32 %v3219, %v3293
        %v3358 = vadd.f32 %v3220, %v3294
        %v3359 = vadd.f32 %v3221, %v3295
        %v3360 = vadd.f32 %v3222, %v3296
        %v3361 = vadd.f32 %v3223, %v3297
        %v3362 = vadd.f32 %v3224, %v3298
        %v3363 = vadd.f32 %v3225, %v3299
        %v3364 = vadd.f32 %v3226, %v3300
        %v3365 = vadd.f32 %v3227, %v3301
        %v3366 = vadd.f32 %v3228, %v3302
        %v3367 = vadd.f32 %v3229, %v3303
        %v3368 = vld [vmem:[%s3230 + $0x1] sm:$0x1]
        %v3369 = vperm.slane %v3368, 0
        %v3371 = vrot.slane %v3369, 2
        %v3372 = vrot.slane %v3369, 4
        %v3373 = vrot.slane %v3369, 6
        %v3374 = vrot.slane %v3369, 7
        %v3375 = vrot.slane %v3374, 2
        %v3376 = vrot.slane %v3371, 7
        %v3377 = vsel %vm1831, %v3375, %v3376
        %v3378 = vrot.slane %v3376, 2
        %v3379 = vrot.slane %v3372, 7
        %v3380 = vsel %vm1831, %v3378, %v3379
        %v3381 = vrot.slane %v3379, 2
        %v3382 = vrot.slane %v3373, 7
        %v3383 = vsel %vm1831, %v3381, %v3382
        %v3384 = vrot.slane %v3382, 2
        %v3385 = vsel %vm1831, %v3384, %v3374
        %v3392 = vmul.f32 %v1610, %v3374
        %v3393 = vmul.f32 %v1611, %v3377
        %v3394 = vmul.f32 %v1612, %v3380
        %v3395 = vmul.f32 %v1613, %v3383
        %v3396 = vmul.f32 %v1614, %v3385
        %v3397 = vmul.f32 %v1615, %v3377
        %v3398 = vmul.f32 %v1616, %v3380
        %v3399 = vmul.f32 %v1617, %v3383
        %v3400 = vmul.f32 %v1618, %v3384
        %v3401 = vmul.f32 %v1619, %v3374
        %v3402 = vmul.f32 %v1620, %v3377
        %v3403 = vmul.f32 %v1621, %v3380
        %v3404 = vmul.f32 %v1622, %v3383
        %v3405 = vmul.f32 %v1623, %v3385
        %v3406 = vmul.f32 %v1624, %v3377
        %v3407 = vmul.f32 %v1625, %v3380
        %v3408 = vmul.f32 %v1626, %v3383
        %v3409 = vmul.f32 %v1627, %v3384
        %v3410 = vmul.f32 %v1628, %v3374
        %v3411 = vmul.f32 %v1629, %v3377
        %v3412 = vmul.f32 %v1630, %v3380
        %v3413 = vmul.f32 %v1631, %v3383
        %v3414 = vmul.f32 %v1632, %v3385
        %v3415 = vmul.f32 %v1633, %v3377
        %v3416 = vmul.f32 %v1634, %v3380
        %v3417 = vmul.f32 %v1635, %v3383
        %v3418 = vmul.f32 %v1636, %v3384
        %v3419 = vmul.f32 %v1637, %v3374
        %v3420 = vmul.f32 %v1638, %v3377
        %v3421 = vmul.f32 %v1639, %v3380
        %v3422 = vmul.f32 %v1640, %v3383
        %v3423 = vmul.f32 %v1641, %v3385
        %v3424 = vmul.f32 %v1642, %v3377
        %v3425 = vmul.f32 %v1643, %v3380
        %v3426 = vmul.f32 %v1644, %v3383
        %v3427 = vmul.f32 %v1645, %v3384
        %v3428 = vmul.f32 %v1646, %v3374
        %v3429 = vmul.f32 %v1647, %v3377
        %v3430 = vmul.f32 %v1648, %v3380
        %v3431 = vmul.f32 %v1649, %v3383
        %v3432 = vmul.f32 %v1650, %v3385
        %v3433 = vmul.f32 %v1651, %v3377
        %v3434 = vmul.f32 %v1652, %v3380
        %v3435 = vmul.f32 %v1653, %v3383
        %v3436 = vmul.f32 %v1654, %v3384
        %v3437 = vmul.f32 %v1655, %v3374
        %v3438 = vmul.f32 %v1656, %v3377
        %v3439 = vmul.f32 %v1657, %v3380
        %v3440 = vmul.f32 %v1658, %v3383
        %v3441 = vmul.f32 %v1659, %v3385
        %v3442 = vmul.f32 %v1660, %v3377
        %v3443 = vmul.f32 %v1661, %v3380
        %v3444 = vmul.f32 %v1662, %v3383
        %v3445 = vmul.f32 %v1663, %v3384
        %v3446 = vmul.f32 %v1664, %v3374
        %v3447 = vmul.f32 %v1665, %v3377
        %v3448 = vmul.f32 %v1666, %v3380
        %v3449 = vmul.f32 %v1667, %v3383
        %v3450 = vmul.f32 %v1668, %v3385
        %v3451 = vmul.f32 %v1669, %v3377
        %v3452 = vmul.f32 %v1670, %v3380
        %v3453 = vmul.f32 %v1671, %v3383
        %v3454 = vmul.f32 %v1672, %v3384
        %v3455 = vmul.f32 %v1673, %v3374
        %v3456 = vmul.f32 %v1674, %v3377
        %v3457 = vmul.f32 %v1675, %v3380
        %v3458 = vmul.f32 %v1676, %v3383
        %v3459 = vmul.f32 %v1677, %v3385
        %v3460 = vmul.f32 %v1678, %v3377
        %v3461 = vmul.f32 %v1679, %v3380
        %v3462 = vmul.f32 %v1680, %v3383
        %v3463 = vmul.f32 %v1681, %v3384
        %v3536 = vrot.slane %v3392, 7
        %v3537 = vrot.slane %v3536, 2
        %v3538 = vrot.slane %v3393, 7
        %v3539 = vsel %vm1831, %v3537, %v3538
        %v3540 = vrot.slane %v3538, 2
        %v3541 = vrot.slane %v3394, 7
        %v3542 = vsel %vm1831, %v3540, %v3541
        %v3543 = vrot.slane %v3541, 2
        %v3544 = vrot.slane %v3395, 7
        %v3545 = vsel %vm1831, %v3543, %v3544
        %v3546 = vrot.slane %v3544, 2
        %v3547 = vrot.slane %v3396, 7
        %v3548 = vsel %vm1831, %v3546, %v3547
        %v3549 = vrot.slane %v3547, 2
        %v3550 = vrot.slane %v3397, 7
        %v3551 = vsel %vm1831, %v3549, %v3550
        %v3552 = vrot.slane %v3550, 2
        %v3553 = vrot.slane %v3398, 7
        %v3554 = vsel %vm1831, %v3552, %v3553
        %v3555 = vrot.slane %v3553, 2
        %v3556 = vrot.slane %v3399, 7
        %v3557 = vsel %vm1831, %v3555, %v3556
        %v3558 = vrot.slane %v3556, 2
        %v3559 = vrot.slane %v3400, 7
        %v3560 = vsel %vm1831, %v3558, %v3559
        %v3561 = vrot.slane %v3401, 7
        %v3562 = vrot.slane %v3561, 2
        %v3563 = vrot.slane %v3402, 7
        %v3564 = vsel %vm1831, %v3562, %v3563
        %v3565 = vrot.slane %v3563, 2
        %v3566 = vrot.slane %v3403, 7
        %v3567 = vsel %vm1831, %v3565, %v3566
        %v3568 = vrot.slane %v3566, 2
        %v3569 = vrot.slane %v3404, 7
        %v3570 = vsel %vm1831, %v3568, %v3569
        %v3571 = vrot.slane %v3569, 2
        %v3572 = vrot.slane %v3405, 7
        %v3573 = vsel %vm1831, %v3571, %v3572
        %v3574 = vrot.slane %v3572, 2
        %v3575 = vrot.slane %v3406, 7
        %v3576 = vsel %vm1831, %v3574, %v3575
        %v3577 = vrot.slane %v3575, 2
        %v3578 = vrot.slane %v3407, 7
        %v3579 = vsel %vm1831, %v3577, %v3578
        %v3580 = vrot.slane %v3578, 2
        %v3581 = vrot.slane %v3408, 7
        %v3582 = vsel %vm1831, %v3580, %v3581
        %v3583 = vrot.slane %v3581, 2
        %v3584 = vrot.slane %v3409, 7
        %v3585 = vsel %vm1831, %v3583, %v3584
        %v3586 = vrot.slane %v3410, 7
        %v3587 = vrot.slane %v3586, 2
        %v3588 = vrot.slane %v3411, 7
        %v3589 = vsel %vm1831, %v3587, %v3588
        %v3590 = vrot.slane %v3588, 2
        %v3591 = vrot.slane %v3412, 7
        %v3592 = vsel %vm1831, %v3590, %v3591
        %v3593 = vrot.slane %v3591, 2
        %v3594 = vrot.slane %v3413, 7
        %v3595 = vsel %vm1831, %v3593, %v3594
        %v3596 = vrot.slane %v3594, 2
        %v3597 = vrot.slane %v3414, 7
        %v3598 = vsel %vm1831, %v3596, %v3597
        %v3599 = vrot.slane %v3597, 2
        %v3600 = vrot.slane %v3415, 7
        %v3601 = vsel %vm1831, %v3599, %v3600
        %v3602 = vrot.slane %v3600, 2
        %v3603 = vrot.slane %v3416, 7
        %v3604 = vsel %vm1831, %v3602, %v3603
        %v3605 = vrot.slane %v3603, 2
        %v3606 = vrot.slane %v3417, 7
        %v3607 = vsel %vm1831, %v3605, %v3606
        %v3608 = vrot.slane %v3606, 2
        %v3609 = vrot.slane %v3418, 7
        %v3610 = vsel %vm1831, %v3608, %v3609
        %v3611 = vrot.slane %v3419, 7
        %v3612 = vrot.slane %v3611, 2
        %v3613 = vrot.slane %v3420, 7
        %v3614 = vsel %vm1831, %v3612, %v3613
        %v3615 = vrot.slane %v3613, 2
        %v3616 = vrot.slane %v3421, 7
        %v3617 = vsel %vm1831, %v3615, %v3616
        %v3618 = vrot.slane %v3616, 2
        %v3619 = vrot.slane %v3422, 7
        %v3620 = vsel %vm1831, %v3618, %v3619
        %v3621 = vrot.slane %v3619, 2
        %v3622 = vrot.slane %v3423, 7
        %v3623 = vsel %vm1831, %v3621, %v3622
        %v3624 = vrot.slane %v3622, 2
        %v3625 = vrot.slane %v3424, 7
        %v3626 = vsel %vm1831, %v3624, %v3625
        %v3627 = vrot.slane %v3625, 2
        %v3628 = vrot.slane %v3425, 7
        %v3629 = vsel %vm1831, %v3627, %v3628
        %v3630 = vrot.slane %v3628, 2
        %v3631 = vrot.slane %v3426, 7
        %v3632 = vsel %vm1831, %v3630, %v3631
        %v3633 = vrot.slane %v3631, 2
        %v3634 = vrot.slane %v3427, 7
        %v3635 = vsel %vm1831, %v3633, %v3634
        %v3636 = vrot.slane %v3428, 7
        %v3637 = vrot.slane %v3636, 2
        %v3638 = vrot.slane %v3429, 7
        %v3639 = vsel %vm1831, %v3637, %v3638
        %v3640 = vrot.slane %v3638, 2
        %v3641 = vrot.slane %v3430, 7
        %v3642 = vsel %vm1831, %v3640, %v3641
        %v3643 = vrot.slane %v3641, 2
        %v3644 = vrot.slane %v3431, 7
        %v3645 = vsel %vm1831, %v3643, %v3644
        %v3646 = vrot.slane %v3644, 2
        %v3647 = vrot.slane %v3432, 7
        %v3648 = vsel %vm1831, %v3646, %v3647
        %v3649 = vrot.slane %v3647, 2
        %v3650 = vrot.slane %v3433, 7
        %v3651 = vsel %vm1831, %v3649, %v3650
        %v3652 = vrot.slane %v3650, 2
        %v3653 = vrot.slane %v3434, 7
        %v3654 = vsel %vm1831, %v3652, %v3653
        %v3655 = vrot.slane %v3653, 2
        %v3656 = vrot.slane %v3435, 7
        %v3657 = vsel %vm1831, %v3655, %v3656
        %v3658 = vrot.slane %v3656, 2
        %v3659 = vrot.slane %v3436, 7
        %v3660 = vsel %vm1831, %v3658, %v3659
        %v3661 = vrot.slane %v3437, 7
        %v3662 = vrot.slane %v3661, 2
        %v3663 = vrot.slane %v3438, 7
        %v3664 = vsel %vm1831, %v3662, %v3663
        %v3665 = vrot.slane %v3663, 2
        %v3666 = vrot.slane %v3439, 7
        %v3667 = vsel %vm1831, %v3665, %v3666
        %v3668 = vrot.slane %v3666, 2
        %v3669 = vrot.slane %v3440, 7
        %v3670 = vsel %vm1831, %v3668, %v3669
        %v3671 = vrot.slane %v3669, 2
        %v3672 = vrot.slane %v3441, 7
        %v3673 = vsel %vm1831, %v3671, %v3672
        %v3674 = vrot.slane %v3672, 2
        %v3675 = vrot.slane %v3442, 7
        %v3676 = vsel %vm1831, %v3674, %v3675
        %v3677 = vrot.slane %v3675, 2
        %v3678 = vrot.slane %v3443, 7
        %v3679 = vsel %vm1831, %v3677, %v3678
        %v3680 = vrot.slane %v3678, 2
        %v3681 = vrot.slane %v3444, 7
        %v3682 = vsel %vm1831, %v3680, %v3681
        %v3683 = vrot.slane %v3681, 2
        %v3684 = vrot.slane %v3445, 7
        %v3685 = vsel %vm1831, %v3683, %v3684
        %v3686 = vrot.slane %v3446, 7
        %v3687 = vrot.slane %v3686, 2
        %v3688 = vrot.slane %v3447, 7
        %v3689 = vsel %vm1831, %v3687, %v3688
        %v3690 = vrot.slane %v3688, 2
        %v3691 = vrot.slane %v3448, 7
        %v3692 = vsel %vm1831, %v3690, %v3691
        %v3693 = vrot.slane %v3691, 2
        %v3694 = vrot.slane %v3449, 7
        %v3695 = vsel %vm1831, %v3693, %v3694
        %v3696 = vrot.slane %v3694, 2
        %v3697 = vrot.slane %v3450, 7
        %v3698 = vsel %vm1831, %v3696, %v3697
        %v3699 = vrot.slane %v3697, 2
        %v3700 = vrot.slane %v3451, 7
        %v3701 = vsel %vm1831, %v3699, %v3700
        %v3702 = vrot.slane %v3700, 2
        %v3703 = vrot.slane %v3452, 7
        %v3704 = vsel %vm1831, %v3702, %v3703
        %v3705 = vrot.slane %v3703, 2
        %v3706 = vrot.slane %v3453, 7
        %v3707 = vsel %vm1831, %v3705, %v3706
        %v3708 = vrot.slane %v3706, 2
        %v3709 = vrot.slane %v3454, 7
        %v3710 = vsel %vm1831, %v3708, %v3709
        %v3711 = vrot.slane %v3455, 7
        %v3712 = vrot.slane %v3711, 2
        %v3713 = vrot.slane %v3456, 7
        %v3714 = vsel %vm1831, %v3712, %v3713
        %v3715 = vrot.slane %v3713, 2
        %v3716 = vrot.slane %v3457, 7
        %v3717 = vsel %vm1831, %v3715, %v3716
        %v3718 = vrot.slane %v3716, 2
        %v3719 = vrot.slane %v3458, 7
        %v3720 = vsel %vm1831, %v3718, %v3719
        %v3721 = vrot.slane %v3719, 2
        %v3722 = vrot.slane %v3459, 7
        %v3723 = vsel %vm1831, %v3721, %v3722
        %v3724 = vrot.slane %v3722, 2
        %v3725 = vrot.slane %v3460, 7
        %v3726 = vsel %vm1831, %v3724, %v3725
        %v3727 = vrot.slane %v3725, 2
        %v3728 = vrot.slane %v3461, 7
        %v3729 = vsel %vm1831, %v3727, %v3728
        %v3730 = vrot.slane %v3728, 2
        %v3731 = vrot.slane %v3462, 7
        %v3732 = vsel %vm1831, %v3730, %v3731
        %v3733 = vrot.slane %v3731, 2
        %v3734 = vrot.slane %v3463, 7
        %v3735 = vsel %vm1831, %v3733, %v3734
        %v3800 = vadd.f32 %v3304, %v3539
        %v3801 = vadd.f32 %v3305, %v3542
        %v3802 = vadd.f32 %v3306, %v3545
        %v3803 = vadd.f32 %v3307, %v3548
        %v3804 = vadd.f32 %v3308, %v3551
        %v3805 = vadd.f32 %v3309, %v3554
        %v3806 = vadd.f32 %v3310, %v3557
        %v3807 = vadd.f32 %v3311, %v3560
        %v3808 = vadd.f32 %v3312, %v3564
        %v3809 = vadd.f32 %v3313, %v3567
        %v3810 = vadd.f32 %v3314, %v3570
        %v3811 = vadd.f32 %v3315, %v3573
        %v3812 = vadd.f32 %v3316, %v3576
        %v3813 = vadd.f32 %v3317, %v3579
        %v3814 = vadd.f32 %v3318, %v3582
        %v3815 = vadd.f32 %v3319, %v3585
        %v3816 = vadd.f32 %v3320, %v3589
        %v3817 = vadd.f32 %v3321, %v3592
        %v3818 = vadd.f32 %v3322, %v3595
        %v3819 = vadd.f32 %v3323, %v3598
        %v3820 = vadd.f32 %v3324, %v3601
        %v3821 = vadd.f32 %v3325, %v3604
        %v3822 = vadd.f32 %v3326, %v3607
        %v3823 = vadd.f32 %v3327, %v3610
        %v3824 = vadd.f32 %v3328, %v3614
        %v3825 = vadd.f32 %v3329, %v3617
        %v3826 = vadd.f32 %v3330, %v3620
        %v3827 = vadd.f32 %v3331, %v3623
        %v3828 = vadd.f32 %v3332, %v3626
        %v3829 = vadd.f32 %v3333, %v3629
        %v3830 = vadd.f32 %v3334, %v3632
        %v3831 = vadd.f32 %v3335, %v3635
        %v3832 = vadd.f32 %v3336, %v3639
        %v3833 = vadd.f32 %v3337, %v3642
        %v3834 = vadd.f32 %v3338, %v3645
        %v3835 = vadd.f32 %v3339, %v3648
        %v3836 = vadd.f32 %v3340, %v3651
        %v3837 = vadd.f32 %v3341, %v3654
        %v3838 = vadd.f32 %v3342, %v3657
        %v3839 = vadd.f32 %v3343, %v3660
        %v3840 = vadd.f32 %v3344, %v3664
        %v3841 = vadd.f32 %v3345, %v3667
        %v3842 = vadd.f32 %v3346, %v3670
        %v3843 = vadd.f32 %v3347, %v3673
        %v3844 = vadd.f32 %v3348, %v3676
        %v3845 = vadd.f32 %v3349, %v3679
        %v3846 = vadd.f32 %v3350, %v3682
        %v3847 = vadd.f32 %v3351, %v3685
        %v3848 = vadd.f32 %v3352, %v3689
        %v3849 = vadd.f32 %v3353, %v3692
        %v3850 = vadd.f32 %v3354, %v3695
        %v3851 = vadd.f32 %v3355, %v3698
        %v3852 = vadd.f32 %v3356, %v3701
        %v3853 = vadd.f32 %v3357, %v3704
        %v3854 = vadd.f32 %v3358, %v3707
        %v3855 = vadd.f32 %v3359, %v3710
        %v3856 = vadd.f32 %v3360, %v3714
        %v3857 = vadd.f32 %v3361, %v3717
        %v3858 = vadd.f32 %v3362, %v3720
        %v3859 = vadd.f32 %v3363, %v3723
        %v3860 = vadd.f32 %v3364, %v3726
        %v3861 = vadd.f32 %v3365, %v3729
        %v3862 = vadd.f32 %v3366, %v3732
        %v3863 = vadd.f32 %v3367, %v3735
        %v3864 = vld [vmem:[%s3230 + $0x2] sm:$0x1]
        %v3865 = vperm.slane %v3864, 0
        %v3867 = vrot.slane %v3865, 2
        %v3868 = vrot.slane %v3865, 4
        %v3869 = vrot.slane %v3865, 6
        %v3873 = vmul.f32 %v1611, %v3865
        %v3874 = vmul.f32 %v1612, %v3867
        %v3875 = vmul.f32 %v1613, %v3868
        %v3876 = vmul.f32 %v1614, %v3869
        %v3877 = vmul.f32 %v1615, %v3865
        %v3878 = vmul.f32 %v1616, %v3867
        %v3879 = vmul.f32 %v1617, %v3868
        %v3880 = vmul.f32 %v1618, %v3869
        %v3881 = vmul.f32 %v1620, %v3865
        %v3882 = vmul.f32 %v1621, %v3867
        %v3883 = vmul.f32 %v1622, %v3868
        %v3884 = vmul.f32 %v1623, %v3869
        %v3885 = vmul.f32 %v1624, %v3865
        %v3886 = vmul.f32 %v1625, %v3867
        %v3887 = vmul.f32 %v1626, %v3868
        %v3888 = vmul.f32 %v1627, %v3869
        %v3889 = vmul.f32 %v1629, %v3865
        %v3890 = vmul.f32 %v1630, %v3867
        %v3891 = vmul.f32 %v1631, %v3868
        %v3892 = vmul.f32 %v1632, %v3869
        %v3893 = vmul.f32 %v1633, %v3865
        %v3894 = vmul.f32 %v1634, %v3867
        %v3895 = vmul.f32 %v1635, %v3868
        %v3896 = vmul.f32 %v1636, %v3869
        %v3897 = vmul.f32 %v1638, %v3865
        %v3898 = vmul.f32 %v1639, %v3867
        %v3899 = vmul.f32 %v1640, %v3868
        %v3900 = vmul.f32 %v1641, %v3869
        %v3901 = vmul.f32 %v1642, %v3865
        %v3902 = vmul.f32 %v1643, %v3867
        %v3903 = vmul.f32 %v1644, %v3868
        %v3904 = vmul.f32 %v1645, %v3869
        %v3905 = vmul.f32 %v1647, %v3865
        %v3906 = vmul.f32 %v1648, %v3867
        %v3907 = vmul.f32 %v1649, %v3868
        %v3908 = vmul.f32 %v1650, %v3869
        %v3909 = vmul.f32 %v1651, %v3865
        %v3910 = vmul.f32 %v1652, %v3867
        %v3911 = vmul.f32 %v1653, %v3868
        %v3912 = vmul.f32 %v1654, %v3869
        %v3913 = vmul.f32 %v1656, %v3865
        %v3914 = vmul.f32 %v1657, %v3867
        %v3915 = vmul.f32 %v1658, %v3868
        %v3916 = vmul.f32 %v1659, %v3869
        %v3917 = vmul.f32 %v1660, %v3865
        %v3918 = vmul.f32 %v1661, %v3867
        %v3919 = vmul.f32 %v1662, %v3868
        %v3920 = vmul.f32 %v1663, %v3869
        %v3921 = vmul.f32 %v1665, %v3865
        %v3922 = vmul.f32 %v1666, %v3867
        %v3923 = vmul.f32 %v1667, %v3868
        %v3924 = vmul.f32 %v1668, %v3869
        %v3925 = vmul.f32 %v1669, %v3865
        %v3926 = vmul.f32 %v1670, %v3867
        %v3927 = vmul.f32 %v1671, %v3868
        %v3928 = vmul.f32 %v1672, %v3869
        %v3929 = vmul.f32 %v1674, %v3865
        %v3930 = vmul.f32 %v1675, %v3867
        %v3931 = vmul.f32 %v1676, %v3868
        %v3932 = vmul.f32 %v1677, %v3869
        %v3933 = vmul.f32 %v1678, %v3865
        %v3934 = vmul.f32 %v1679, %v3867
        %v3935 = vmul.f32 %v1680, %v3868
        %v3936 = vmul.f32 %v1681, %v3869
        %v3937 = vadd.f32 %v3800, %v3873
        %v3938 = vadd.f32 %v3801, %v3874
        %v3939 = vadd.f32 %v3802, %v3875
        %v3940 = vadd.f32 %v3803, %v3876
        %v3941 = vadd.f32 %v3804, %v3877
        %v3942 = vadd.f32 %v3805, %v3878
        %v3943 = vadd.f32 %v3806, %v3879
        %v3944 = vadd.f32 %v3807, %v3880
        %v3945 = vadd.f32 %v3808, %v3881
        %v3946 = vadd.f32 %v3809, %v3882
        %v3947 = vadd.f32 %v3810, %v3883
        %v3948 = vadd.f32 %v3811, %v3884
        %v3949 = vadd.f32 %v3812, %v3885
        %v3950 = vadd.f32 %v3813, %v3886
        %v3951 = vadd.f32 %v3814, %v3887
        %v3952 = vadd.f32 %v3815, %v3888
        %v3953 = vadd.f32 %v3816, %v3889
        %v3954 = vadd.f32 %v3817, %v3890
        %v3955 = vadd.f32 %v3818, %v3891
        %v3956 = vadd.f32 %v3819, %v3892
        %v3957 = vadd.f32 %v3820, %v3893
        %v3958 = vadd.f32 %v3821, %v3894
        %v3959 = vadd.f32 %v3822, %v3895
        %v3960 = vadd.f32 %v3823, %v3896
        %v3961 = vadd.f32 %v3824, %v3897
        %v3962 = vadd.f32 %v3825, %v3898
        %v3963 = vadd.f32 %v3826, %v3899
        %v3964 = vadd.f32 %v3827, %v3900
        %v3965 = vadd.f32 %v3828, %v3901
        %v3966 = vadd.f32 %v3829, %v3902
        %v3967 = vadd.f32 %v3830, %v3903
        %v3968 = vadd.f32 %v3831, %v3904
        %v3969 = vadd.f32 %v3832, %v3905
        %v3970 = vadd.f32 %v3833, %v3906
        %v3971 = vadd.f32 %v3834, %v3907
        %v3972 = vadd.f32 %v3835, %v3908
        %v3973 = vadd.f32 %v3836, %v3909
        %v3974 = vadd.f32 %v3837, %v3910
        %v3975 = vadd.f32 %v3838, %v3911
        %v3976 = vadd.f32 %v3839, %v3912
        %v3977 = vadd.f32 %v3840, %v3913
        %v3978 = vadd.f32 %v3841, %v3914
        %v3979 = vadd.f32 %v3842, %v3915
        %v3980 = vadd.f32 %v3843, %v3916
        %v3981 = vadd.f32 %v3844, %v3917
        %v3982 = vadd.f32 %v3845, %v3918
        %v3983 = vadd.f32 %v3846, %v3919
        %v3984 = vadd.f32 %v3847, %v3920
        %v3985 = vadd.f32 %v3848, %v3921
        %v3986 = vadd.f32 %v3849, %v3922
        %v3987 = vadd.f32 %v3850, %v3923
        %v3988 = vadd.f32 %v3851, %v3924
        %v3989 = vadd.f32 %v3852, %v3925
        %v3990 = vadd.f32 %v3853, %v3926
        %v3991 = vadd.f32 %v3854, %v3927
        %v3992 = vadd.f32 %v3855, %v3928
        %v3993 = vadd.f32 %v3856, %v3929
        %v3994 = vadd.f32 %v3857, %v3930
        %v3995 = vadd.f32 %v3858, %v3931
        %v3996 = vadd.f32 %v3859, %v3932
        %v3997 = vadd.f32 %v3860, %v3933
        %v3998 = vadd.f32 %v3861, %v3934
        %v3999 = vadd.f32 %v3862, %v3935
        %v4000 = vadd.f32 %v3863, %v3936
        %v4001 = vld [vmem:[%s4] sm:$0x1]
        %v4003 = vperm.slane %v4001, 0
        %v4005 = vrot.slane %v4003, 2
        %v4006 = vrot.slane %v4003, 4
        %v4007 = vrot.slane %v4003, 6
        %v4011 = vadd.f32 %v3937, %v4003
        %v4012 = vadd.f32 %v3938, %v4005
        %v4013 = vadd.f32 %v3939, %v4006
        %v4014 = vadd.f32 %v3940, %v4007
        %v4015 = vadd.f32 %v3941, %v4003
        %v4016 = vadd.f32 %v3942, %v4005
        %v4017 = vadd.f32 %v3943, %v4006
        %v4018 = vadd.f32 %v3944, %v4007
        %v4019 = vadd.f32 %v3945, %v4003
        %v4020 = vadd.f32 %v3946, %v4005
        %v4021 = vadd.f32 %v3947, %v4006
        %v4022 = vadd.f32 %v3948, %v4007
        %v4023 = vadd.f32 %v3949, %v4003
        %v4024 = vadd.f32 %v3950, %v4005
        %v4025 = vadd.f32 %v3951, %v4006
        %v4026 = vadd.f32 %v3952, %v4007
        %v4027 = vadd.f32 %v3953, %v4003
        %v4028 = vadd.f32 %v3954, %v4005
        %v4029 = vadd.f32 %v3955, %v4006
        %v4030 = vadd.f32 %v3956, %v4007
        %v4031 = vadd.f32 %v3957, %v4003
        %v4032 = vadd.f32 %v3958, %v4005
        %v4033 = vadd.f32 %v3959, %v4006
        %v4034 = vadd.f32 %v3960, %v4007
        %v4035 = vadd.f32 %v3961, %v4003
        %v4036 = vadd.f32 %v3962, %v4005
        %v4037 = vadd.f32 %v3963, %v4006
        %v4038 = vadd.f32 %v3964, %v4007
        %v4039 = vadd.f32 %v3965, %v4003
        %v4040 = vadd.f32 %v3966, %v4005
        %v4041 = vadd.f32 %v3967, %v4006
        %v4042 = vadd.f32 %v3968, %v4007
        %v4043 = vadd.f32 %v3969, %v4003
        %v4044 = vadd.f32 %v3970, %v4005
        %v4045 = vadd.f32 %v3971, %v4006
        %v4046 = vadd.f32 %v3972, %v4007
        %v4047 = vadd.f32 %v3973, %v4003
        %v4048 = vadd.f32 %v3974, %v4005
        %v4049 = vadd.f32 %v3975, %v4006
        %v4050 = vadd.f32 %v3976, %v4007
        %v4051 = vadd.f32 %v3977, %v4003
        %v4052 = vadd.f32 %v3978, %v4005
        %v4053 = vadd.f32 %v3979, %v4006
        %v4054 = vadd.f32 %v3980, %v4007
        %v4055 = vadd.f32 %v3981, %v4003
        %v4056 = vadd.f32 %v3982, %v4005
        %v4057 = vadd.f32 %v3983, %v4006
        %v4058 = vadd.f32 %v3984, %v4007
        %v4059 = vadd.f32 %v3985, %v4003
        %v4060 = vadd.f32 %v3986, %v4005
        %v4061 = vadd.f32 %v3987, %v4006
        %v4062 = vadd.f32 %v3988, %v4007
        %v4063 = vadd.f32 %v3989, %v4003
        %v4064 = vadd.f32 %v3990, %v4005
        %v4065 = vadd.f32 %v3991, %v4006
        %v4066 = vadd.f32 %v3992, %v4007
        %v4067 = vadd.f32 %v3993, %v4003
        %v4068 = vadd.f32 %v3994, %v4005
        %v4069 = vadd.f32 %v3995, %v4006
        %v4070 = vadd.f32 %v3996, %v4007
        %v4071 = vadd.f32 %v3997, %v4003
        %v4072 = vadd.f32 %v3998, %v4005
        %v4073 = vadd.f32 %v3999, %v4006
        %v4074 = vadd.f32 %v4000, %v4007
        %v4075 = vmax.f32 %v4011, 0.0
        %v4076 = vmax.f32 %v4012, 0.0
        %v4077 = vmax.f32 %v4013, 0.0
        %v4078 = vmax.f32 %v4014, 0.0
        %v4079 = vmax.f32 %v4015, 0.0
        %v4080 = vmax.f32 %v4016, 0.0
        %v4081 = vmax.f32 %v4017, 0.0
        %v4082 = vmax.f32 %v4018, 0.0
        %v4083 = vmax.f32 %v4019, 0.0
        %v4084 = vmax.f32 %v4020, 0.0
        %v4085 = vmax.f32 %v4021, 0.0
        %v4086 = vmax.f32 %v4022, 0.0
        %v4087 = vmax.f32 %v4023, 0.0
        %v4088 = vmax.f32 %v4024, 0.0
        %v4089 = vmax.f32 %v4025, 0.0
        %v4090 = vmax.f32 %v4026, 0.0
        %v4091 = vmax.f32 %v4027, 0.0
        %v4092 = vmax.f32 %v4028, 0.0
        %v4093 = vmax.f32 %v4029, 0.0
        %v4094 = vmax.f32 %v4030, 0.0
        %v4095 = vmax.f32 %v4031, 0.0
        %v4096 = vmax.f32 %v4032, 0.0
        %v4097 = vmax.f32 %v4033, 0.0
        %v4098 = vmax.f32 %v4034, 0.0
        %v4099 = vmax.f32 %v4035, 0.0
        %v4100 = vmax.f32 %v4036, 0.0
        %v4101 = vmax.f32 %v4037, 0.0
        %v4102 = vmax.f32 %v4038, 0.0
        %v4103 = vmax.f32 %v4039, 0.0
        %v4104 = vmax.f32 %v4040, 0.0
        %v4105 = vmax.f32 %v4041, 0.0
        %v4106 = vmax.f32 %v4042, 0.0
        %v4107 = vmax.f32 %v4043, 0.0
        %v4108 = vmax.f32 %v4044, 0.0
        %v4109 = vmax.f32 %v4045, 0.0
        %v4110 = vmax.f32 %v4046, 0.0
        %v4111 = vmax.f32 %v4047, 0.0
        %v4112 = vmax.f32 %v4048, 0.0
        %v4113 = vmax.f32 %v4049, 0.0
        %v4114 = vmax.f32 %v4050, 0.0
        %v4115 = vmax.f32 %v4051, 0.0
        %v4116 = vmax.f32 %v4052, 0.0
        %v4117 = vmax.f32 %v4053, 0.0
        %v4118 = vmax.f32 %v4054, 0.0
        %v4119 = vmax.f32 %v4055, 0.0
        %v4120 = vmax.f32 %v4056, 0.0
        %v4121 = vmax.f32 %v4057, 0.0
        %v4122 = vmax.f32 %v4058, 0.0
        %v4123 = vmax.f32 %v4059, 0.0
        %v4124 = vmax.f32 %v4060, 0.0
        %v4125 = vmax.f32 %v4061, 0.0
        %v4126 = vmax.f32 %v4062, 0.0
        %v4127 = vmax.f32 %v4063, 0.0
        %v4128 = vmax.f32 %v4064, 0.0
        %v4129 = vmax.f32 %v4065, 0.0
        %v4130 = vmax.f32 %v4066, 0.0
        %v4131 = vmax.f32 %v4067, 0.0
        %v4132 = vmax.f32 %v4068, 0.0
        %v4133 = vmax.f32 %v4069, 0.0
        %v4134 = vmax.f32 %v4070, 0.0
        %v4135 = vmax.f32 %v4071, 0.0
        %v4136 = vmax.f32 %v4072, 0.0
        %v4137 = vmax.f32 %v4073, 0.0
        %v4138 = vmax.f32 %v4074, 0.0
        %v4139 = vld [vmem:[%s5] sm:$0xff]
        %v4140 = vld [vmem:[%s5 + $0x8] sm:$0xff]
        %v4141 = vld [vmem:[%s5 + $0x10] sm:$0xff]
        %v4142 = vld [vmem:[%s5 + $0x18] sm:$0xff]
        %v4143 = vld [vmem:[%s6] sm:$0x1]
        %v4145 = vperm.slane %v4143, 0
        %4211 = vst [vmem:[#allocation1] ss:$4 sm:$0xff] %v4075
        %s4212 = scalar_lea.vmem [#allocation1], 1
        %4213 = vst [vmem:[%s4212] ss:$4 sm:$0xff] %v4076
        %s4214 = scalar_lea.vmem [#allocation1], 2
        %4215 = vst [vmem:[%s4214] ss:$4 sm:$0xff] %v4077
        %s4216 = scalar_lea.vmem [#allocation1], 3
        %4217 = vst [vmem:[%s4216] ss:$4 sm:$0xff] %v4078
        %s4218 = scalar_lea.vmem [#allocation1], 32
        %4219 = vst [vmem:[%s4218] ss:$4 sm:$0xff] %v4079
        %s4220 = scalar_lea.vmem [#allocation1], 33
        %4221 = vst [vmem:[%s4220] ss:$4 sm:$0xff] %v4080
        %s4222 = scalar_lea.vmem [#allocation1], 34
        %4223 = vst [vmem:[%s4222] ss:$4 sm:$0xff] %v4081
        %s4224 = scalar_lea.vmem [#allocation1], 35
        %4225 = vst [vmem:[%s4224] ss:$4 sm:$0xff] %v4082
        %v4226 = vld.sshfl [vmem:[#allocation1] sm:$0xff pattern:$0x73625140]
        %v4227 = vld.sshfl [vmem:[#allocation1 + $0x20] sm:$0xff pattern:$0x73625140]
        %4228 = vst [vmem:[#allocation1] ss:$4 sm:$0xff] %v4083
        %4229 = vst [vmem:[%s4212] ss:$4 sm:$0xff] %v4084
        %4230 = vst [vmem:[%s4214] ss:$4 sm:$0xff] %v4085
        %4231 = vst [vmem:[%s4216] ss:$4 sm:$0xff] %v4086
        %4232 = vst [vmem:[%s4218] ss:$4 sm:$0xff] %v4087
        %4233 = vst [vmem:[%s4220] ss:$4 sm:$0xff] %v4088
        %4234 = vst [vmem:[%s4222] ss:$4 sm:$0xff] %v4089
        %4235 = vst [vmem:[%s4224] ss:$4 sm:$0xff] %v4090
        %v4236 = vld.sshfl [vmem:[#allocation1] sm:$0xff pattern:$0x73625140]
        %v4237 = vld.sshfl [vmem:[#allocation1 + $0x20] sm:$0xff pattern:$0x73625140]
        %4238 = vst [vmem:[#allocation1] ss:$4 sm:$0xff] %v4091
        %4239 = vst [vmem:[%s4212] ss:$4 sm:$0xff] %v4092
        %4240 = vst [vmem:[%s4214] ss:$4 sm:$0xff] %v4093
        %4241 = vst [vmem:[%s4216] ss:$4 sm:$0xff] %v4094
        %4242 = vst [vmem:[%s4218] ss:$4 sm:$0xff] %v4095
        %4243 = vst [vmem:[%s4220] ss:$4 sm:$0xff] %v4096
        %4244 = vst [vmem:[%s4222] ss:$4 sm:$0xff] %v4097
        %4245 = vst [vmem:[%s4224] ss:$4 sm:$0xff] %v4098
        %v4246 = vld.sshfl [vmem:[#allocation1] sm:$0xff pattern:$0x73625140]
        %v4247 = vld.sshfl [vmem:[#allocation1 + $0x20] sm:$0xff pattern:$0x73625140]
        %4248 = vst [vmem:[#allocation1] ss:$4 sm:$0xff] %v4099
        %4249 = vst [vmem:[%s4212] ss:$4 sm:$0xff] %v4100
        %4250 = vst [vmem:[%s4214] ss:$4 sm:$0xff] %v4101
        %4251 = vst [vmem:[%s4216] ss:$4 sm:$0xff] %v4102
        %4252 = vst [vmem:[%s4218] ss:$4 sm:$0xff] %v4103
        %4253 = vst [vmem:[%s4220] ss:$4 sm:$0xff] %v4104
        %4254 = vst [vmem:[%s4222] ss:$4 sm:$0xff] %v4105
        %4255 = vst [vmem:[%s4224] ss:$4 sm:$0xff] %v4106
        %v4256 = vld.sshfl [vmem:[#allocation1] sm:$0xff pattern:$0x73625140]
        %v4257 = vld.sshfl [vmem:[#allocation1 + $0x20] sm:$0xff pattern:$0x73625140]
        %4258 = vst [vmem:[#allocation1] ss:$4 sm:$0xff] %v4107
        %4259 = vst [vmem:[%s4212] ss:$4 sm:$0xff] %v4108
        %4260 = vst [vmem:[%s4214] ss:$4 sm:$0xff] %v4109
        %4261 = vst [vmem:[%s4216] ss:$4 sm:$0xff] %v4110
        %4262 = vst [vmem:[%s4218] ss:$4 sm:$0xff] %v4111
        %4263 = vst [vmem:[%s4220] ss:$4 sm:$0xff] %v4112
        %4264 = vst [vmem:[%s4222] ss:$4 sm:$0xff] %v4113
        %4265 = vst [vmem:[%s4224] ss:$4 sm:$0xff] %v4114
        %v4266 = vld.sshfl [vmem:[#allocation1] sm:$0xff pattern:$0x73625140]
        %v4267 = vld.sshfl [vmem:[#allocation1 + $0x20] sm:$0xff pattern:$0x73625140]
        %4268 = vst [vmem:[#allocation1] ss:$4 sm:$0xff] %v4115
        %4269 = vst [vmem:[%s4212] ss:$4 sm:$0xff] %v4116
        %4270 = vst [vmem:[%s4214] ss:$4 sm:$0xff] %v4117
        %4271 = vst [vmem:[%s4216] ss:$4 sm:$0xff] %v4118
        %4272 = vst [vmem:[%s4218] ss:$4 sm:$0xff] %v4119
        %4273 = vst [vmem:[%s4220] ss:$4 sm:$0xff] %v4120
        %4274 = vst [vmem:[%s4222] ss:$4 sm:$0xff] %v4121
        %4275 = vst [vmem:[%s4224] ss:$4 sm:$0xff] %v4122
        %v4276 = vld.sshfl [vmem:[#allocation1] sm:$0xff pattern:$0x73625140]
        %v4277 = vld.sshfl [vmem:[#allocation1 + $0x20] sm:$0xff pattern:$0x73625140]
        %4278 = vst [vmem:[#allocation1] ss:$4 sm:$0xff] %v4123
        %4279 = vst [vmem:[%s4212] ss:$4 sm:$0xff] %v4124
        %4280 = vst [vmem:[%s4214] ss:$4 sm:$0xff] %v4125
        %4281 = vst [vmem:[%s4216] ss:$4 sm:$0xff] %v4126
        %4282 = vst [vmem:[%s4218] ss:$4 sm:$0xff] %v4127
        %4283 = vst [vmem:[%s4220] ss:$4 sm:$0xff] %v4128
        %4284 = vst [vmem:[%s4222] ss:$4 sm:$0xff] %v4129
        %4285 = vst [vmem:[%s4224] ss:$4 sm:$0xff] %v4130
        %v4286 = vld.sshfl [vmem:[#allocation1] sm:$0xff pattern:$0x73625140]
        %v4287 = vld.sshfl [vmem:[#allocation1 + $0x20] sm:$0xff pattern:$0x73625140]
        %4288 = vst [vmem:[#allocation1] ss:$4 sm:$0xff] %v4131
        %4289 = vst [vmem:[%s4212] ss:$4 sm:$0xff] %v4132
        %4290 = vst [vmem:[%s4214] ss:$4 sm:$0xff] %v4133
        %4291 = vst [vmem:[%s4216] ss:$4 sm:$0xff] %v4134
        %4292 = vst [vmem:[%s4218] ss:$4 sm:$0xff] %v4135
        %4293 = vst [vmem:[%s4220] ss:$4 sm:$0xff] %v4136
        %4294 = vst [vmem:[%s4222] ss:$4 sm:$0xff] %v4137
        %4295 = vst [vmem:[%s4224] ss:$4 sm:$0xff] %v4138
        %v4296 = vld.sshfl [vmem:[#allocation1] sm:$0xff pattern:$0x73625140]
        %v4297 = vld.sshfl [vmem:[#allocation1 + $0x20] sm:$0xff pattern:$0x73625140]
        %vm4298 = vcmask 261120
        %v4299 = vsel %vm4298, %v4226, 0
        %v4301 = vsel %vm4298, %v4227, 0
        %v4303 = vsel %vm4298, %v4236, 0
        %v4305 = vsel %vm4298, %v4237, 0
        %v4307 = vsel %vm4298, %v4246, 0
        %v4309 = vsel %vm4298, %v4247, 0
        %v4311 = vsel %vm4298, %v4256, 0
        %v4313 = vsel %vm4298, %v4257, 0
        %v4315 = vsel %vm4298, %v4266, 0
        %v4317 = vsel %vm4298, %v4267, 0
        %v4319 = vsel %vm4298, %v4276, 0
        %v4321 = vsel %vm4298, %v4277, 0
        %v4323 = vsel %vm4298, %v4286, 0
        %v4325 = vsel %vm4298, %v4287, 0
        %v4327 = vsel %vm4298, %v4296, 0
        %v4329 = vsel %vm4298, %v4297, 0
        %4331 = vmatpush.msra.mxu0 0.0
        %4332 = vmatpush.msra.mxu0 0.0
        %4333 = vmatpush.msra.mxu0 0.0
        %4334 = vmatpush.msra.mxu0 0.0
        %4335 = vmatpush.msra.mxu0 0.0
        %4336 = vmatpush.msra.mxu0 0.0
        %4337 = vmatpush.msra.mxu0 0.0
        %4338 = vmatpush.msra.mxu0 0.0
        %4339 = vmatpush.msra.mxu0 0.0
        %4340 = vmatpush.msra.mxu0 0.0
        %4341 = vmatpush.msra.mxu0 0.0
        %4342 = vmatpush.msra.mxu0 0.0
        %4343 = vmatpush.msra.mxu0 %v4142
        %4344 = vmatpush.msra.mxu0 %v4141
        %4345 = vmatpush.msra.mxu0 %v4140
        %4346 = vmatpush.msra.mxu0 %v4139
        %4347 = vmatmul.f32.gmra.mxu0 %v4299
        %v4348 = vpop.f32.mrf.mxu0
        %v4349 = vadd.f32 %v4145, %v4348
        %4350 = vmatmul.f32.gmra.mxu0 %v4301
        %v4351 = vpop.f32.mrf.mxu0
        %v4352 = vadd.f32 %v4145, %v4351
        %4353 = vmatmul.f32.gmra.mxu0 %v4303
        %v4354 = vpop.f32.mrf.mxu0
        %v4355 = vadd.f32 %v4145, %v4354
        %4356 = vmatmul.f32.gmra.mxu0 %v4305
        %v4357 = vpop.f32.mrf.mxu0
        %v4358 = vadd.f32 %v4145, %v4357
        %4359 = vmatmul.f32.gmra.mxu0 %v4307
        %v4360 = vpop.f32.mrf.mxu0
        %v4361 = vadd.f32 %v4145, %v4360
        %4362 = vmatmul.f32.gmra.mxu0 %v4309
        %v4363 = vpop.f32.mrf.mxu0
        %v4364 = vadd.f32 %v4145, %v4363
        %4365 = vmatmul.f32.gmra.mxu0 %v4311
        %v4366 = vpop.f32.mrf.mxu0
        %v4367 = vadd.f32 %v4145, %v4366
        %4368 = vmatmul.f32.gmra.mxu0 %v4313
        %v4369 = vpop.f32.mrf.mxu0
        %v4370 = vadd.f32 %v4145, %v4369
        %4371 = vmatmul.f32.gmra.mxu0 %v4315
        %v4372 = vpop.f32.mrf.mxu0
        %v4373 = vadd.f32 %v4145, %v4372
        %4374 = vmatmul.f32.gmra.mxu0 %v4317
        %v4375 = vpop.f32.mrf.mxu0
        %v4376 = vadd.f32 %v4145, %v4375
        %4377 = vmatmul.f32.gmra.mxu0 %v4319
        %v4378 = vpop.f32.mrf.mxu0
        %v4379 = vadd.f32 %v4145, %v4378
        %4380 = vmatmul.f32.gmra.mxu0 %v4321
        %v4381 = vpop.f32.mrf.mxu0
        %v4382 = vadd.f32 %v4145, %v4381
        %4383 = vmatmul.f32.gmra.mxu0 %v4323
        %v4384 = vpop.f32.mrf.mxu0
        %v4385 = vadd.f32 %v4145, %v4384
        %4386 = vmatmul.f32.gmra.mxu0 %v4325
        %v4387 = vpop.f32.mrf.mxu0
        %v4388 = vadd.f32 %v4145, %v4387
        %4389 = vmatmul.f32.gmra.mxu0 %v4327
        %v4390 = vpop.f32.mrf.mxu0
        %v4391 = vadd.f32 %v4145, %v4390
        %4392 = vmatmul.f32.gmra.mxu0 %v4329
        %v4393 = vpop.f32.mrf.mxu0
        %v4394 = vadd.f32 %v4145, %v4393
        %4395 = vdwg.mxu0
        %vm4396 = vcmask 1046528
        %v4397 = vrot.slane %v351, 1
        %v4398 = vrot.slane %v352, 1
        %v4399 = vsel %vm4396, %v4397, %v4398
        %v4400 = vrot.slane %v353, 1
        %v4401 = vsel %vm4396, %v4398, %v4400
        %v4402 = vrot.slane %v354, 1
        %v4403 = vrot.slane %v355, 1
        %v4404 = vsel %vm4396, %v4402, %v4403
        %v4405 = vrot.slane %v356, 1
        %v4406 = vsel %vm4396, %v4403, %v4405
        %v4407 = vrot.slane %v357, 1
        %v4408 = vrot.slane %v358, 1
        %v4409 = vsel %vm4396, %v4407, %v4408
        %v4410 = vrot.slane %v359, 1
        %v4411 = vsel %vm4396, %v4408, %v4410
        %v4412 = vrot.slane %v360, 1
        %v4413 = vrot.slane %v361, 1
        %v4414 = vsel %vm4396, %v4412, %v4413
        %v4415 = vrot.slane %v362, 1
        %v4416 = vsel %vm4396, %v4413, %v4415
        %v4417 = vrot.slane %v363, 1
        %v4418 = vrot.slane %v364, 1
        %v4419 = vsel %vm4396, %v4417, %v4418
        %v4420 = vrot.slane %v365, 1
        %v4421 = vsel %vm4396, %v4418, %v4420
        %v4422 = vrot.slane %v366, 1
        %v4423 = vrot.slane %v367, 1
        %v4424 = vsel %vm4396, %v4422, %v4423
        %v4425 = vrot.slane %v368, 1
        %v4426 = vsel %vm4396, %v4423, %v4425
        %v4427 = vrot.slane %v369, 1
        %v4428 = vrot.slane %v370, 1
        %v4429 = vsel %vm4396, %v4427, %v4428
        %v4430 = vrot.slane %v371, 1
        %v4431 = vsel %vm4396, %v4428, %v4430
        %v4432 = vrot.slane %v372, 1
        %v4433 = vrot.slane %v373, 1
        %v4434 = vsel %vm4396, %v4432, %v4433
        %v4435 = vrot.slane %v374, 1
        %v4436 = vsel %vm4396, %v4433, %v4435
        %v4437 = vld [vmem:[%s7] sm:$0xff]
        %v4438 = vsel %vm593, %v4399, 0
        %v4440 = vsel %vm593, %v4401, 0
        %v4442 = vsel %vm593, %v4404, 0
        %v4444 = vsel %vm593, %v4406, 0
        %v4446 = vsel %vm593, %v4409, 0
        %v4448 = vsel %vm593, %v4411, 0
        %v4450 = vsel %vm593, %v4414, 0
        %v4452 = vsel %vm593, %v4416, 0
        %v4454 = vsel %vm593, %v4419, 0
        %v4456 = vsel %vm593, %v4421, 0
        %v4458 = vsel %vm593, %v4424, 0
        %v4460 = vsel %vm593, %v4426, 0
        %v4462 = vsel %vm593, %v4429, 0
        %v4464 = vsel %vm593, %v4431, 0
        %v4466 = vsel %vm593, %v4434, 0
        %v4468 = vsel %vm593, %v4436, 0
        %4470 = vmatpush.msra.mxu0 0.0
        %4471 = vmatpush.msra.mxu0 0.0
        %4472 = vmatpush.msra.mxu0 0.0
        %4473 = vmatpush.msra.mxu0 0.0
        %4474 = vmatpush.msra.mxu0 0.0
        %4475 = vmatpush.msra.mxu0 0.0
        %4476 = vmatpush.msra.mxu0 0.0
        %4477 = vmatpush.msra.mxu0 0.0
        %4478 = vmatpush.msra.mxu0 0.0
        %4479 = vmatpush.msra.mxu0 0.0
        %4480 = vmatpush.msra.mxu0 0.0
        %4481 = vmatpush.msra.mxu0 0.0
        %4482 = vmatpush.msra.mxu0 0.0
        %4483 = vmatpush.msra.mxu0 0.0
        %4484 = vmatpush.msra.mxu0 0.0
        %4485 = vmatpush.msra.mxu0 %v4437
        %4486 = vmatmul.f32.gmra.mxu0 %v4438
        %v4487 = vpop.f32.mrf.mxu0
        %v4488 = vadd.f32 0.0, %v4487
        %4489 = vmatmul.f32.gmra.mxu0 %v4440
        %v4490 = vpop.f32.mrf.mxu0
        %v4491 = vadd.f32 0.0, %v4490
        %4492 = vmatmul.f32.gmra.mxu0 %v4442
        %v4493 = vpop.f32.mrf.mxu0
        %v4494 = vadd.f32 0.0, %v4493
        %4495 = vmatmul.f32.gmra.mxu0 %v4444
        %v4496 = vpop.f32.mrf.mxu0
        %v4497 = vadd.f32 0.0, %v4496
        %4498 = vmatmul.f32.gmra.mxu0 %v4446
        %v4499 = vpop.f32.mrf.mxu0
        %v4500 = vadd.f32 0.0, %v4499
        %4501 = vmatmul.f32.gmra.mxu0 %v4448
        %v4502 = vpop.f32.mrf.mxu0
        %v4503 = vadd.f32 0.0, %v4502
        %4504 = vmatmul.f32.gmra.mxu0 %v4450
        %v4505 = vpop.f32.mrf.mxu0
        %v4506 = vadd.f32 0.0, %v4505
        %4507 = vmatmul.f32.gmra.mxu0 %v4452
        %v4508 = vpop.f32.mrf.mxu0
        %v4509 = vadd.f32 0.0, %v4508
        %4510 = vmatmul.f32.gmra.mxu0 %v4454
        %v4511 = vpop.f32.mrf.mxu0
        %v4512 = vadd.f32 0.0, %v4511
        %4513 = vmatmul.f32.gmra.mxu0 %v4456
        %v4514 = vpop.f32.mrf.mxu0
        %v4515 = vadd.f32 0.0, %v4514
        %4516 = vmatmul.f32.gmra.mxu0 %v4458
        %v4517 = vpop.f32.mrf.mxu0
        %v4518 = vadd.f32 0.0, %v4517
        %4519 = vmatmul.f32.gmra.mxu0 %v4460
        %v4520 = vpop.f32.mrf.mxu0
        %v4521 = vadd.f32 0.0, %v4520
        %4522 = vmatmul.f32.gmra.mxu0 %v4462
        %v4523 = vpop.f32.mrf.mxu0
        %v4524 = vadd.f32 0.0, %v4523
        %4525 = vmatmul.f32.gmra.mxu0 %v4464
        %v4526 = vpop.f32.mrf.mxu0
        %v4527 = vadd.f32 0.0, %v4526
        %4528 = vmatmul.f32.gmra.mxu0 %v4466
        %v4529 = vpop.f32.mrf.mxu0
        %v4530 = vadd.f32 0.0, %v4529
        %4531 = vmatmul.f32.gmra.mxu0 %v4468
        %v4532 = vpop.f32.mrf.mxu0
        %v4533 = vadd.f32 0.0, %v4532
        %4534 = vdwg.mxu0
        %v4535 = vadd.f32 %v4349, %v4488
        %v4536 = vadd.f32 %v4352, %v4491
        %v4537 = vadd.f32 %v4355, %v4494
        %v4538 = vadd.f32 %v4358, %v4497
        %v4539 = vadd.f32 %v4361, %v4500
        %v4540 = vadd.f32 %v4364, %v4503
        %v4541 = vadd.f32 %v4367, %v4506
        %v4542 = vadd.f32 %v4370, %v4509
        %v4543 = vadd.f32 %v4373, %v4512
        %v4544 = vadd.f32 %v4376, %v4515
        %v4545 = vadd.f32 %v4379, %v4518
        %v4546 = vadd.f32 %v4382, %v4521
        %v4547 = vadd.f32 %v4385, %v4524
        %v4548 = vadd.f32 %v4388, %v4527
        %v4549 = vadd.f32 %v4391, %v4530
        %v4550 = vadd.f32 %v4394, %v4533
        %v4551 = vld [vmem:[%s8] sm:$0x1]
        %v4553 = vperm.slane %v4551, 0
        %v4555 = vadd.f32 %v4535, %v4553
        %v4556 = vadd.f32 %v4536, %v4553
        %v4557 = vadd.f32 %v4537, %v4553
        %v4558 = vadd.f32 %v4538, %v4553
        %v4559 = vadd.f32 %v4539, %v4553
        %v4560 = vadd.f32 %v4540, %v4553
        %v4561 = vadd.f32 %v4541, %v4553
        %v4562 = vadd.f32 %v4542, %v4553
        %v4563 = vadd.f32 %v4543, %v4553
        %v4564 = vadd.f32 %v4544, %v4553
        %v4565 = vadd.f32 %v4545, %v4553
        %v4566 = vadd.f32 %v4546, %v4553
        %v4567 = vadd.f32 %v4547, %v4553
        %v4568 = vadd.f32 %v4548, %v4553
        %v4569 = vadd.f32 %v4549, %v4553
        %v4570 = vadd.f32 %v4550, %v4553
        %4571 = vxpose.xlu0.b32.start [1/16] %v4555, 128
        %4572 = vxpose.xlu0.b32.cont [2/16] %v4556, 128
        %4573 = vxpose.xlu0.b32.cont [3/16] %v4557, 128
        %4574 = vxpose.xlu0.b32.cont [4/16] %v4558, 128
        %4575 = vxpose.xlu0.b32.cont [5/16] %v4559, 128
        %4576 = vxpose.xlu0.b32.cont [6/16] %v4560, 128
        %4577 = vxpose.xlu0.b32.cont [7/16] %v4561, 128
        %4578 = vxpose.xlu0.b32.cont [8/16] %v4562, 128
        %4579 = vxpose.xlu0.b32.cont [9/16] %v4563, 128
        %4580 = vxpose.xlu0.b32.cont [10/16] %v4564, 128
        %4581 = vxpose.xlu0.b32.cont [11/16] %v4565, 128
        %4582 = vxpose.xlu0.b32.cont [12/16] %v4566, 128
        %4583 = vxpose.xlu0.b32.cont [13/16] %v4567, 128
        %4584 = vxpose.xlu0.b32.cont [14/16] %v4568, 128
        %4585 = vxpose.xlu0.b32.cont [15/16] %v4569, 128
        %4586 = vxpose.xlu0.b32.end [16/16] %v4570, 128
        %v4587 = vpop.trf.xlu0
        %v4588 = vpop.trf.xlu0
        %v4589 = vpop.trf.xlu0
        %v4590 = vpop.trf.xlu0
        %v4591 = vpop.trf.xlu0
        %v4592 = vpop.trf.xlu0
        %v4593 = vpop.trf.xlu0
        %v4594 = vpop.trf.xlu0
        %v4595 = vpop.trf.xlu0
        %v4596 = vpop.trf.xlu0
        %v4597 = vpop.trf.xlu0
        %v4598 = vpop.trf.xlu0
        %v4599 = vpop.trf.xlu0
        %v4600 = vpop.trf.xlu0
        %v4601 = vpop.trf.xlu0
        %v4602 = vpop.trf.xlu0
        %4603 = vst [vmem:[%s339] sm:$0xff] %v4587
        %4604 = vst [vmem:[%s339 + $0x8] sm:$0xff] %v4588
        %s4605 = sand.u32 %s239, 1
        %s4606 = scalar_lea.sflag [#allocation3], %s4605
        %s4607 = sand.u32 %s239, 1
        %s4608 = smul.addr %s4607, 16
        %s4609 = scalar_lea.vmem [#allocation2], %s4608
        // Predicated region
        $region57: #{tpu_custom_call.1} parent=55 // pred_check
          %p4610 = pneg %p249
        $region58: #{tpu_custom_call.1} parent=55 // pred_check_branch
          %4612 = sbr.rel (%p4610) target = $region60
        $region59: #{tpu_custom_call.1} parent=55 // pred_region
          %4614 = vsyncadd %s4606, 0
          %s4615 = smul.addr %s27, 4
          %s4616 = sadd.s32 %s28, %s4615
          %s4617 = smul.addr %s4616, 8
          %s4618 = scalar_lea.hbm %s9, %s4617
          %s4619 = sshll.u32 %s4609, 4
          %s4620 = int_to_ptr.vmem [resolvable:$true] %s4619
          %s4621 = sshll.u32 %s4618, 4
          %s4622 = int_to_ptr.hbm [resolvable:$true] %s4621
          %4627 = dma.vmem_to_hbm [thread:$0]  %s4620, 256, %s4622, %s4606, 128, 256, 8
        $region60: #{tpu_custom_call.1} parent=55 // pred_fallthru
          _
      $region56: #{tpu_custom_call.1} parent=5 // pred_fallthru
        _
      %p4628 = scmp.le.s32.totalorder 2, %s18
      // Predicated region
      $region61: #{tpu_custom_call.1} parent=5 // pred_check
        %p4629 = pneg %p4628
      $region62: #{tpu_custom_call.1} parent=5 // pred_check_branch
        %4631 = sbr.rel (%p4629) target = $region64
      $region63: #{tpu_custom_call.1} parent=5 // pred_region
        %s4632 = ssub.s32 %s18, 2
        // Predicated region
        $region65: #{tpu_custom_call.1} parent=63 // pred_check
          %p4633 = pneg %p255
        $region66: #{tpu_custom_call.1} parent=63 // pred_check_branch
          %4635 = sbr.rel (%p4633) target = $region68
        $region67: #{tpu_custom_call.1} parent=63 // pred_region
          %s4636 = sand.u32 %s240, 1
          %s4637 = scalar_lea.sflag [#allocation3], %s4636
          %s4638 = sand.u32 %s240, 1
          %s4639 = smul.addr %s4638, 16
          %s4640 = scalar_lea.vmem [#allocation2], %s4639
          %4642 = dma.done %s4637, 256
        $region68: #{tpu_custom_call.1} parent=63 // pred_fallthru
          _
      $region64: #{tpu_custom_call.1} parent=5 // pred_fallthru
        _
    $region6: #{tpu_custom_call.1} parent=1 // loop_footer
      %s22 = sadd.s32 1, %s18
    $region7: #{tpu_custom_call.1} parent=1 // loop_footer_branch
      %17 = sbr.rel target = $region3
    $region8: #{tpu_custom_call.1} parent=1 // loop_exit
      _
    %4643 = vsyncpa [#allocation3], 1
    %s4644 = scalar_lea.sflag [#allocation3], 1
    %4645 = vsyncpa %s4644, 1

</llo_original>
